<compile_context>
chip_gen: v6e
topology: v6e:2x2x1
jax: 0.10.0
libtpu: 0.0.40
codegen_flags: <defaults>
</compile_context>

<pallas_src>
import functools

import jax
import jax.numpy as jnp
from jax.experimental import pallas as pl
from jax.experimental.pallas import tpu as pltpu


# ---------------------------------------------------------------------------
# In-kernel math helpers (f32 only; built from ops with guaranteed lowerings).
# ---------------------------------------------------------------------------

def _erf_poly(x):
    # Abramowitz & Stegun 7.1.26 polynomial (|error| < 1.5e-7). Uses only exp,
    # which lowers cleanly through Mosaic (lax.erf does not necessarily).
    a1, a2, a3, a4, a5 = (0.254829592, -0.284496736, 1.421413741,
                          -1.453152027, 1.061405429)
    p = 0.3275911
    s = jnp.where(x >= 0.0, 1.0, -1.0)
    ax = jnp.abs(x)
    t = 1.0 / (1.0 + p * ax)
    poly = ((((a5 * t + a4) * t + a3) * t + a2) * t + a1) * t
    return s * (1.0 - poly * jnp.exp(-ax * ax))


def _gelu(x):
    # Exact (erf-based) GELU, matching nn.GELU() (approximate='none').
    return 0.5 * x * (1.0 + _erf_poly(x * 0.7071067811865476))


def _sigmoid(x):
    return 1.0 / (1.0 + jnp.exp(-x))


# ---------------------------------------------------------------------------
# Kernel 1: fused matmul + per-output-column affine + activation.
#   Used for: ConvTranspose2d(k=s=2)+BN+GELU and Conv3x3(im2col)+BN+GELU.
# ---------------------------------------------------------------------------

def _mm_affine_act_kernel(x_ref, w_ref, scale_ref, shift_ref, o_ref, *, act):
    x = x_ref[...].astype(jnp.float32)
    w = w_ref[...].astype(jnp.float32)
    y = jnp.dot(x, w, preferred_element_type=jnp.float32)
    y = y * scale_ref[...] + shift_ref[...]
    if act == "gelu":
        y = _gelu(y)
    elif act == "sigmoid":
        y = _sigmoid(y)
    o_ref[...] = y.astype(o_ref.dtype)


def _mm_affine_act(x, w, scale, shift, act="none", *, max_block_rows=1024):
    m, k = x.shape
    _, n = w.shape
    bm = min(max_block_rows, m)
    # Ragged last block (if any) is masked by Pallas — no wrapper-side padding
    # copies, per the performance review.
    grid = (pl.cdiv(m, bm),)
    scale2 = jnp.asarray(scale, jnp.float32).reshape(1, n)
    shift2 = jnp.asarray(shift, jnp.float32).reshape(1, n)
    return pl.pallas_call(
        functools.partial(_mm_affine_act_kernel, act=act),
        out_shape=jax.ShapeDtypeStruct((m, n), x.dtype),
        grid_spec=pltpu.PrefetchScalarGridSpec(
            num_scalar_prefetch=0,
            grid=grid,
            in_specs=[
                pl.BlockSpec((bm, k), lambda i: (i, 0)),
                pl.BlockSpec((k, n), lambda i: (0, 0)),
                pl.BlockSpec((1, n), lambda i: (0, 0)),
                pl.BlockSpec((1, n), lambda i: (0, 0)),
            ],
            out_specs=pl.BlockSpec((bm, n), lambda i: (i, 0)),
        ),
        compiler_params=pltpu.CompilerParams(
            dimension_semantics=("parallel",)),
    )(x, w, scale2, shift2)


# ---------------------------------------------------------------------------
# Kernel 2: channel attention = sigmoid(1x1conv(global_avg_pool(cat))).
# ---------------------------------------------------------------------------

def _pool_atten_kernel(x_ref, w_ref, o_ref):
    x = x_ref[...].astype(jnp.float32)                 # (B, HW, 2C)
    pooled = jnp.mean(x, axis=1)                       # (B, 2C)
    att = jnp.dot(pooled, w_ref[...].astype(jnp.float32),
                  preferred_element_type=jnp.float32)
    o_ref[...] = _sigmoid(att).astype(o_ref.dtype)


def _pool_atten(x3, wa_t):
    B, HW, C2 = x3.shape
    return pl.pallas_call(
        _pool_atten_kernel,
        out_shape=jax.ShapeDtypeStruct((B, C2), x3.dtype),
        grid_spec=pltpu.PrefetchScalarGridSpec(
            num_scalar_prefetch=0,
            grid=(1,),
            in_specs=[
                pl.BlockSpec((B, HW, C2), lambda i: (0, 0, 0)),
                pl.BlockSpec((C2, C2), lambda i: (0, 0)),
            ],
            out_specs=pl.BlockSpec((B, C2), lambda i: (0, 0)),
        ),
    )(x3, wa_t)


# ---------------------------------------------------------------------------
# Kernel 3 (per-batch fused): out = ((cat * att_ch) @ Wr^T)
#                                   * sigmoid(cat @ [w1;w2] + (b1+b2))
# ---------------------------------------------------------------------------

def _csfm_fuse_kernel(x_ref, attc_ref, wr_ref, w12_ref, b12_ref, o_ref):
    x = x_ref[0].astype(jnp.float32)                   # (HW, 2C)
    attc = attc_ref[0].astype(jnp.float32)             # (1, 2C)
    redu = jnp.dot(x * attc, wr_ref[...].astype(jnp.float32),
                   preferred_element_type=jnp.float32)  # (HW, C)
    att_sp = _sigmoid(jnp.sum(x * w12_ref[...], axis=-1, keepdims=True)
                      + b12_ref[...])                   # (HW, 1)
    o_ref[0] = (redu * att_sp).astype(o_ref.dtype)


def _csfm_fuse(x3, att_ch, wr_t, w12_row, b12):
    B, HW, C2 = x3.shape
    C = wr_t.shape[1]
    att3 = att_ch.reshape(B, 1, C2)
    return pl.pallas_call(
        _csfm_fuse_kernel,
        out_shape=jax.ShapeDtypeStruct((B, HW, C), x3.dtype),
        grid_spec=pltpu.PrefetchScalarGridSpec(
            num_scalar_prefetch=0,
            grid=(B,),
            in_specs=[
                pl.BlockSpec((1, HW, C2), lambda b: (b, 0, 0)),
                pl.BlockSpec((1, 1, C2), lambda b: (b, 0, 0)),
                pl.BlockSpec((C2, C), lambda b: (0, 0)),
                pl.BlockSpec((1, C2), lambda b: (0, 0)),
                pl.BlockSpec((1, 1), lambda b: (0, 0)),
            ],
            out_specs=pl.BlockSpec((1, HW, C), lambda b: (b, 0, 0)),
        ),
        compiler_params=pltpu.CompilerParams(
            dimension_semantics=("parallel",)),
    )(x3, att3, wr_t, w12_row, b12)


# ---------------------------------------------------------------------------
# CSFM forward (wrapper: layout plumbing only; all compute in Pallas kernels).
# ---------------------------------------------------------------------------

def csfm_forward(x, skip, p, eps=1e-5):
    B, C, H, W = x.shape
    _, C2, h, w = skip.shape
    assert C2 == 2 * C and H == 2 * h and W == 2 * w

    # TODO(synk): BatchNorm2d uses inference-mode running statistics folded
    # into the matmul affine; training-mode batch statistics are not computed.

    # ---- UpsampleBlock stage 1: ConvTranspose2d(k=2,s=2) + BN1 + GELU ------
    # k=s=2 has no overlap: one matmul whose output columns are (dy,dx,c_out),
    # followed by a depth-to-space rearrangement.
    skip_rows = jnp.transpose(skip, (0, 2, 3, 1)).reshape(B * h * w, C2)
    wt_mat = jnp.transpose(p["wt"], (0, 2, 3, 1)).reshape(C2, 4 * C)
    s1 = p["gamma1"] * jax.lax.rsqrt(p["var1"] + eps)
    scale1 = jnp.tile(s1, 4)
    shift1 = jnp.tile(p["beta1"] + s1 * (p["bt"] - p["mean1"]), 4)
    y = _mm_affine_act(skip_rows, wt_mat, scale1, shift1, act="gelu")
    y = (y.reshape(B, h, w, 2, 2, C)
          .transpose(0, 1, 3, 2, 4, 5)
          .reshape(B, H, W, C))                        # NHWC, (B,16,16,C)

    # ---- UpsampleBlock stage 2: Conv2d 3x3 'same' + BN2 + GELU (im2col) ----
    yp = jnp.pad(y, ((0, 0), (1, 1), (1, 1), (0, 0)))
    patches = jnp.stack(
        [yp[:, dy:dy + H, dx:dx + W, :] for dy in range(3) for dx in range(3)],
        axis=3).reshape(B * H * W, 9 * C)
    wc_mat = jnp.transpose(p["wc"], (2, 3, 1, 0)).reshape(9 * C, C)
    s2 = p["gamma2"] * jax.lax.rsqrt(p["var2"] + eps)
    shift2 = p["beta2"] + s2 * (p["bc"] - p["mean2"])
    skip_rows_up = _mm_affine_act(patches, wc_mat, s2, shift2, act="gelu")

    # ---- CSFM head ---------------------------------------------------------
    x_rows = jnp.transpose(x, (0, 2, 3, 1)).reshape(B * H * W, C)
    cat3 = jnp.concatenate([x_rows, skip_rows_up], axis=-1).reshape(B, H * W, C2)

    wa_t = p["wa"].reshape(C2, C2).T                   # (in, out)
    att_ch = _pool_atten(cat3, wa_t)                   # (B, 2C)

    wr_t = p["wr"].reshape(C, C2).T                    # (2C, C)
    w12 = jnp.concatenate(
        [p["w1"].reshape(1, C), p["w2"].reshape(1, C)], axis=1)  # (1, 2C)
    b12 = (p["b1"] + p["b2"]).reshape(1, 1)
    out3 = _csfm_fuse(cat3, att_ch, wr_t, w12, b12)    # (B, HW, C)

    return out3.reshape(B, H, W, C).transpose(0, 3, 1, 2)   # back to NCHW


# ---------------------------------------------------------------------------
# Pure-JAX reference (independent implementation of the same math).
# ---------------------------------------------------------------------------

def csfm_reference(x, skip, p, eps=1e-5):
    B, C, H, W = x.shape

    def bn(z, gamma, beta, mean, var):
        s = gamma * jax.lax.rsqrt(var + eps)
        return (z - mean[None, :, None, None]) * s[None, :, None, None] \
            + beta[None, :, None, None]

    # ConvTranspose2d(k=2,s=2): out[b,o,2i+u,2j+v] = b[o] + sum_c in*W[c,o,u,v]
    t = jnp.einsum('bcij,couv->boiujv', skip, p["wt"])
    t = t.reshape(B, C, H, W) + p["bt"][None, :, None, None]
    t = jax.nn.gelu(bn(t, p["gamma1"], p["beta1"], p["mean1"], p["var1"]),
                    approximate=False)
    t = jax.lax.conv_general_dilated(
        t, p["wc"], window_strides=(1, 1), padding=((1, 1), (1, 1)),
        dimension_numbers=('NCHW', 'OIHW', 'NCHW'))
    t = t + p["bc"][None, :, None, None]
    skip_up = jax.nn.gelu(bn(t, p["gamma2"], p["beta2"], p["mean2"], p["var2"]),
                          approximate=False)

    output = jnp.concatenate([x, skip_up], axis=1)
    pooled = jnp.mean(output, axis=(2, 3), keepdims=True)
    att = jax.nn.sigmoid(jnp.einsum('oi,bixy->boxy', p["wa"][:, :, 0, 0], pooled))
    output = output * att
    output = jnp.einsum('oi,bihw->bohw', p["wr"][:, :, 0, 0], output)
    att2 = (jnp.einsum('oi,bihw->bohw', p["w1"][:, :, 0, 0], x)
            + p["b1"][None, :, None, None]
            + jnp.einsum('oi,bihw->bohw', p["w2"][:, :, 0, 0], skip_up)
            + p["b2"][None, :, None, None])
    return output * jax.nn.sigmoid(att2)


# ---------------------------------------------------------------------------
# Parameter construction + run.
# ---------------------------------------------------------------------------

def init_params(key, C):
    C2 = 2 * C
    ks = jax.random.split(key, 18)

    def rnd(k, shape, s=0.2):
        return (s * jax.random.normal(k, shape)).astype(jnp.float32)

    return {
        "wt": rnd(ks[0], (C2, C, 2, 2)),       # ConvTranspose2d (in,out,kh,kw)
        "bt": rnd(ks[1], (C,), 0.1),
        "gamma1": 1.0 + rnd(ks[2], (C,), 0.1),
        "beta1": rnd(ks[3], (C,), 0.1),
        "mean1": rnd(ks[4], (C,), 0.1),
        "var1": 1.0 + jnp.abs(rnd(ks[5], (C,), 0.1)),
        "wc": rnd(ks[6], (C, C, 3, 3)),        # Conv2d (out,in,kh,kw)
        "bc": rnd(ks[7], (C,), 0.1),
        "gamma2": 1.0 + rnd(ks[8], (C,), 0.1),
        "beta2": rnd(ks[9], (C,), 0.1),
        "mean2": rnd(ks[10], (C,), 0.1),
        "var2": 1.0 + jnp.abs(rnd(ks[11], (C,), 0.1)),
        "wa": rnd(ks[12], (C2, C2, 1, 1)),     # conv_atten (no bias)
        "wr": rnd(ks[13], (C, C2, 1, 1)),      # conv_redu (no bias)
        "w1": rnd(ks[14], (1, C, 1, 1)),
        "b1": rnd(ks[15], (1,), 0.1),
        "w2": rnd(ks[16], (1, C, 1, 1)),
        "b2": rnd(ks[17], (1,), 0.1),
    }


if __name__ == "__main__":
    key = jax.random.PRNGKey(0)
    C = 4                      # embed_dim
    B, H, W = 2, 16, 16
    kx, ks, kp = jax.random.split(key, 3)
    x = jax.random.normal(kx, (B, C, H, W), dtype=jnp.float32)
    skip = jax.random.normal(ks, (B, 2 * C, H // 2, W // 2), dtype=jnp.float32)
    params = init_params(kp, C)

    fwd = jax.jit(csfm_forward)
    y = jax.block_until_ready(fwd(x, skip, params))

    y_ref = csfm_reference(x, skip, params)
    assert y.shape == (B, C, H, W) and y.dtype == x.dtype
    err = float(jnp.max(jnp.abs(y - y_ref)))
    assert err < 1e-4, f"max abs err {err}"

    print("KERNEL_OK")
</pallas_src>

<mosaic_0001>
module attributes {stable_mosaic.version = 11 : i64} {
  func.func @_mm_affine_act_kernel(%arg0: i32, %arg1: memref<128x8xf32, #tpu.memory_space<vmem>>, %arg2: memref<8x16xf32, #tpu.memory_space<vmem>>, %arg3: memref<1x16xf32, #tpu.memory_space<vmem>>, %arg4: memref<1x16xf32, #tpu.memory_space<vmem>>, %arg5: memref<128x16xf32, #tpu.memory_space<vmem>>) attributes {dimension_semantics = [#tpu.dimension_semantics<parallel>], iteration_bounds = array<i64: 1>, scalar_prefetch = 0 : i64, scratch_operands = 0 : i64, tpu.core_type = #tpu.core_type<tc>, window_params = [{transform_indices = @transform_0, window_bounds = array<i64: 128, 8>}, {pipeline_mode = #tpu.pipeline_mode<synchronous>, transform_indices = @transform_1, window_bounds = array<i64: 8, 16>}, {pipeline_mode = #tpu.pipeline_mode<synchronous>, transform_indices = @transform_2, window_bounds = array<i64: 1, 16>}, {pipeline_mode = #tpu.pipeline_mode<synchronous>, transform_indices = @transform_3, window_bounds = array<i64: 1, 16>}, {transform_indices = @transform_4, window_bounds = array<i64: 128, 16>}]} {
    %c0 = arith.constant 0 : index
    %c0_0 = arith.constant 0 : index
    %0 = vector.load %arg1[%c0, %c0_0] : memref<128x8xf32, #tpu.memory_space<vmem>>, vector<128x8xf32>
    %c0_1 = arith.constant 0 : index
    %c0_2 = arith.constant 0 : index
    %1 = vector.load %arg2[%c0_1, %c0_2] : memref<8x16xf32, #tpu.memory_space<vmem>>, vector<8x16xf32>
    %cst = arith.constant dense<0.000000e+00> : vector<128x16xf32>
    %2 = tpu.matmul %0, %1, %cst {dimension_numbers = #tpu.dot_dimension_numbers<[1], [0], [0], [1], [0, 0, 1, 1], [], []>} : vector<128x8xf32>, vector<8x16xf32>, vector<128x16xf32> -> vector<128x16xf32>
    %c0_3 = arith.constant 0 : index
    %c0_4 = arith.constant 0 : index
    %3 = vector.load %arg3[%c0_3, %c0_4] : memref<1x16xf32, #tpu.memory_space<vmem>>, vector<1x16xf32>
    %4 = vector.broadcast %3 : vector<1x16xf32> to vector<128x16xf32>
    %5 = arith.mulf %2, %4 : vector<128x16xf32>
    %c0_5 = arith.constant 0 : index
    %c0_6 = arith.constant 0 : index
    %6 = vector.load %arg4[%c0_5, %c0_6] : memref<1x16xf32, #tpu.memory_space<vmem>>, vector<1x16xf32>
    %7 = vector.broadcast %6 : vector<1x16xf32> to vector<128x16xf32>
    %8 = arith.addf %5, %7 : vector<128x16xf32>
    %cst_7 = arith.constant 5.000000e-01 : f32
    %9 = vector.broadcast %cst_7 : f32 to vector<128x16xf32>
    %10 = arith.mulf %9, %8 : vector<128x16xf32>
    %cst_8 = arith.constant 0.707106769 : f32
    %11 = vector.broadcast %cst_8 : f32 to vector<128x16xf32>
    %12 = arith.mulf %8, %11 : vector<128x16xf32>
    %cst_9 = arith.constant 0.000000e+00 : f32
    %13 = vector.broadcast %cst_9 : f32 to vector<128x16xf32>
    %14 = arith.cmpf oge, %12, %13 : vector<128x16xf32>
    %cst_10 = arith.constant 1.000000e+00 : f32
    %cst_11 = arith.constant -1.000000e+00 : f32
    %15 = vector.broadcast %cst_10 : f32 to vector<128x16xf32>
    %16 = vector.broadcast %cst_11 : f32 to vector<128x16xf32>
    %17 = arith.select %14, %15, %16 : vector<128x16xi1>, vector<128x16xf32>
    %18 = math.absf %12 : vector<128x16xf32>
    %cst_12 = arith.constant 0.327591091 : f32
    %19 = vector.broadcast %cst_12 : f32 to vector<128x16xf32>
    %20 = arith.mulf %19, %18 : vector<128x16xf32>
    %cst_13 = arith.constant 1.000000e+00 : f32
    %21 = vector.broadcast %cst_13 : f32 to vector<128x16xf32>
    %22 = arith.addf %21, %20 : vector<128x16xf32>
    %cst_14 = arith.constant 1.000000e+00 : f32
    %23 = vector.broadcast %cst_14 : f32 to vector<128x16xf32>
    %24 = arith.divf %23, %22 : vector<128x16xf32>
    %cst_15 = arith.constant 1.06140542 : f32
    %25 = vector.broadcast %cst_15 : f32 to vector<128x16xf32>
    %26 = arith.mulf %25, %24 : vector<128x16xf32>
    %cst_16 = arith.constant -1.45315206 : f32
    %27 = vector.broadcast %cst_16 : f32 to vector<128x16xf32>
    %28 = arith.addf %26, %27 : vector<128x16xf32>
    %29 = arith.mulf %28, %24 : vector<128x16xf32>
    %cst_17 = arith.constant 1.42141378 : f32
    %30 = vector.broadcast %cst_17 : f32 to vector<128x16xf32>
    %31 = arith.addf %29, %30 : vector<128x16xf32>
    %32 = arith.mulf %31, %24 : vector<128x16xf32>
    %cst_18 = arith.constant -0.284496725 : f32
    %33 = vector.broadcast %cst_18 : f32 to vector<128x16xf32>
    %34 = arith.addf %32, %33 : vector<128x16xf32>
    %35 = arith.mulf %34, %24 : vector<128x16xf32>
    %cst_19 = arith.constant 0.254829586 : f32
    %36 = vector.broadcast %cst_19 : f32 to vector<128x16xf32>
    %37 = arith.addf %35, %36 : vector<128x16xf32>
    %38 = arith.mulf %37, %24 : vector<128x16xf32>
    %cst_20 = arith.constant 0.000000e+00 : f32
    %39 = vector.broadcast %cst_20 : f32 to vector<128x16xf32>
    %40 = arith.subf %39, %18 : vector<128x16xf32>
    %41 = arith.mulf %40, %18 : vector<128x16xf32>
    %42 = math.exp %41 : vector<128x16xf32>
    %43 = arith.mulf %38, %42 : vector<128x16xf32>
    %cst_21 = arith.constant 1.000000e+00 : f32
    %44 = vector.broadcast %cst_21 : f32 to vector<128x16xf32>
    %45 = arith.subf %44, %43 : vector<128x16xf32>
    %46 = arith.mulf %17, %45 : vector<128x16xf32>
    %cst_22 = arith.constant 1.000000e+00 : f32
    %47 = vector.broadcast %cst_22 : f32 to vector<128x16xf32>
    %48 = arith.addf %47, %46 : vector<128x16xf32>
    %49 = arith.mulf %10, %48 : vector<128x16xf32>
    %c0_23 = arith.constant 0 : index
    %c0_24 = arith.constant 0 : index
    %50 = vector.load %arg5[%c0_23, %c0_24] : memref<128x16xf32, #tpu.memory_space<vmem>>, vector<128x16xf32>
    tpu.vector_store %arg5[%c0_23, %c0_24], %49 {strides = array<i32>} : memref<128x16xf32, #tpu.memory_space<vmem>>, vector<128x16xf32>,
    return
  }
  func.func @transform_0(%arg0: i32) -> (i32, i32) {
    %c0_i32 = arith.constant 0 : i32
    %c0_i32_0 = arith.constant 0 : i32
    return %arg0, %c0_i32 : i32, i32
  }
  func.func @transform_1(%arg0: i32) -> (i32, i32) {
    %c0_i32 = arith.constant 0 : i32
    %c0_i32_0 = arith.constant 0 : i32
    %c0_i32_1 = arith.constant 0 : i32
    return %c0_i32, %c0_i32_0 : i32, i32
  }
  func.func @transform_2(%arg0: i32) -> (i32, i32) {
    %c0_i32 = arith.constant 0 : i32
    %c0_i32_0 = arith.constant 0 : i32
    %c0_i32_1 = arith.constant 0 : i32
    return %c0_i32, %c0_i32_0 : i32, i32
  }
  func.func @transform_3(%arg0: i32) -> (i32, i32) {
    %c0_i32 = arith.constant 0 : i32
    %c0_i32_0 = arith.constant 0 : i32
    %c0_i32_1 = arith.constant 0 : i32
    return %c0_i32, %c0_i32_0 : i32, i32
  }
  func.func @transform_4(%arg0: i32) -> (i32, i32) {
    %c0_i32 = arith.constant 0 : i32
    %c0_i32_0 = arith.constant 0 : i32
    return %arg0, %c0_i32 : i32, i32
  }
}

module attributes {stable_mosaic.version = 11 : i64} {
  func.func @_mm_affine_act_kernel(%arg0: i32, %arg1: memref<512x36xf32, #tpu.memory_space<vmem>>, %arg2: memref<36x4xf32, #tpu.memory_space<vmem>>, %arg3: memref<1x4xf32, #tpu.memory_space<vmem>>, %arg4: memref<1x4xf32, #tpu.memory_space<vmem>>, %arg5: memref<512x4xf32, #tpu.memory_space<vmem>>) attributes {dimension_semantics = [#tpu.dimension_semantics<parallel>], iteration_bounds = array<i64: 1>, scalar_prefetch = 0 : i64, scratch_operands = 0 : i64, tpu.core_type = #tpu.core_type<tc>, window_params = [{transform_indices = @transform_0, window_bounds = array<i64: 512, 36>}, {pipeline_mode = #tpu.pipeline_mode<synchronous>, transform_indices = @transform_1, window_bounds = array<i64: 36, 4>}, {pipeline_mode = #tpu.pipeline_mode<synchronous>, transform_indices = @transform_2, window_bounds = array<i64: 1, 4>}, {pipeline_mode = #tpu.pipeline_mode<synchronous>, transform_indices = @transform_3, window_bounds = array<i64: 1, 4>}, {transform_indices = @transform_4, window_bounds = array<i64: 512, 4>}]} {
    %c0 = arith.constant 0 : index
    %c0_0 = arith.constant 0 : index
    %0 = vector.load %arg1[%c0, %c0_0] : memref<512x36xf32, #tpu.memory_space<vmem>>, vector<512x36xf32>
    %c0_1 = arith.constant 0 : index
    %c0_2 = arith.constant 0 : index
    %1 = vector.load %arg2[%c0_1, %c0_2] : memref<36x4xf32, #tpu.memory_space<vmem>>, vector<36x4xf32>
    %cst = arith.constant dense<0.000000e+00> : vector<512x4xf32>
    %2 = tpu.matmul %0, %1, %cst {dimension_numbers = #tpu.dot_dimension_numbers<[1], [0], [0], [1], [0, 0, 1, 1], [], []>} : vector<512x36xf32>, vector<36x4xf32>, vector<512x4xf32> -> vector<512x4xf32>
    %c0_3 = arith.constant 0 : index
    %c0_4 = arith.constant 0 : index
    %3 = vector.load %arg3[%c0_3, %c0_4] : memref<1x4xf32, #tpu.memory_space<vmem>>, vector<1x4xf32>
    %4 = vector.broadcast %3 : vector<1x4xf32> to vector<512x4xf32>
    %5 = arith.mulf %2, %4 : vector<512x4xf32>
    %c0_5 = arith.constant 0 : index
    %c0_6 = arith.constant 0 : index
    %6 = vector.load %arg4[%c0_5, %c0_6] : memref<1x4xf32, #tpu.memory_space<vmem>>, vector<1x4xf32>
    %7 = vector.broadcast %6 : vector<1x4xf32> to vector<512x4xf32>
    %8 = arith.addf %5, %7 : vector<512x4xf32>
    %cst_7 = arith.constant 5.000000e-01 : f32
    %9 = vector.broadcast %cst_7 : f32 to vector<512x4xf32>
    %10 = arith.mulf %9, %8 : vector<512x4xf32>
    %cst_8 = arith.constant 0.707106769 : f32
    %11 = vector.broadcast %cst_8 : f32 to vector<512x4xf32>
    %12 = arith.mulf %8, %11 : vector<512x4xf32>
    %cst_9 = arith.constant 0.000000e+00 : f32
    %13 = vector.broadcast %cst_9 : f32 to vector<512x4xf32>
    %14 = arith.cmpf oge, %12, %13 : vector<512x4xf32>
    %cst_10 = arith.constant 1.000000e+00 : f32
    %cst_11 = arith.constant -1.000000e+00 : f32
    %15 = vector.broadcast %cst_10 : f32 to vector<512x4xf32>
    %16 = vector.broadcast %cst_11 : f32 to vector<512x4xf32>
    %17 = arith.select %14, %15, %16 : vector<512x4xi1>, vector<512x4xf32>
    %18 = math.absf %12 : vector<512x4xf32>
    %cst_12 = arith.constant 0.327591091 : f32
    %19 = vector.broadcast %cst_12 : f32 to vector<512x4xf32>
    %20 = arith.mulf %19, %18 : vector<512x4xf32>
    %cst_13 = arith.constant 1.000000e+00 : f32
    %21 = vector.broadcast %cst_13 : f32 to vector<512x4xf32>
    %22 = arith.addf %21, %20 : vector<512x4xf32>
    %cst_14 = arith.constant 1.000000e+00 : f32
    %23 = vector.broadcast %cst_14 : f32 to vector<512x4xf32>
    %24 = arith.divf %23, %22 : vector<512x4xf32>
    %cst_15 = arith.constant 1.06140542 : f32
    %25 = vector.broadcast %cst_15 : f32 to vector<512x4xf32>
    %26 = arith.mulf %25, %24 : vector<512x4xf32>
    %cst_16 = arith.constant -1.45315206 : f32
    %27 = vector.broadcast %cst_16 : f32 to vector<512x4xf32>
    %28 = arith.addf %26, %27 : vector<512x4xf32>
    %29 = arith.mulf %28, %24 : vector<512x4xf32>
    %cst_17 = arith.constant 1.42141378 : f32
    %30 = vector.broadcast %cst_17 : f32 to vector<512x4xf32>
    %31 = arith.addf %29, %30 : vector<512x4xf32>
    %32 = arith.mulf %31, %24 : vector<512x4xf32>
    %cst_18 = arith.constant -0.284496725 : f32
    %33 = vector.broadcast %cst_18 : f32 to vector<512x4xf32>
    %34 = arith.addf %32, %33 : vector<512x4xf32>
    %35 = arith.mulf %34, %24 : vector<512x4xf32>
    %cst_19 = arith.constant 0.254829586 : f32
    %36 = vector.broadcast %cst_19 : f32 to vector<512x4xf32>
    %37 = arith.addf %35, %36 : vector<512x4xf32>
    %38 = arith.mulf %37, %24 : vector<512x4xf32>
    %cst_20 = arith.constant 0.000000e+00 : f32
    %39 = vector.broadcast %cst_20 : f32 to vector<512x4xf32>
    %40 = arith.subf %39, %18 : vector<512x4xf32>
    %41 = arith.mulf %40, %18 : vector<512x4xf32>
    %42 = math.exp %41 : vector<512x4xf32>
    %43 = arith.mulf %38, %42 : vector<512x4xf32>
    %cst_21 = arith.constant 1.000000e+00 : f32
    %44 = vector.broadcast %cst_21 : f32 to vector<512x4xf32>
    %45 = arith.subf %44, %43 : vector<512x4xf32>
    %46 = arith.mulf %17, %45 : vector<512x4xf32>
    %cst_22 = arith.constant 1.000000e+00 : f32
    %47 = vector.broadcast %cst_22 : f32 to vector<512x4xf32>
    %48 = arith.addf %47, %46 : vector<512x4xf32>
    %49 = arith.mulf %10, %48 : vector<512x4xf32>
    %c0_23 = arith.constant 0 : index
    %c0_24 = arith.constant 0 : index
    %50 = vector.load %arg5[%c0_23, %c0_24] : memref<512x4xf32, #tpu.memory_space<vmem>>, vector<512x4xf32>
    tpu.vector_store %arg5[%c0_23, %c0_24], %49 {strides = array<i32>} : memref<512x4xf32, #tpu.memory_space<vmem>>, vector<512x4xf32>,
    return
  }
  func.func @transform_0(%arg0: i32) -> (i32, i32) {
    %c0_i32 = arith.constant 0 : i32
    %c0_i32_0 = arith.constant 0 : i32
    return %arg0, %c0_i32 : i32, i32
  }
  func.func @transform_1(%arg0: i32) -> (i32, i32) {
    %c0_i32 = arith.constant 0 : i32
    %c0_i32_0 = arith.constant 0 : i32
    %c0_i32_1 = arith.constant 0 : i32
    return %c0_i32, %c0_i32_0 : i32, i32
  }
  func.func @transform_2(%arg0: i32) -> (i32, i32) {
    %c0_i32 = arith.constant 0 : i32
    %c0_i32_0 = arith.constant 0 : i32
    %c0_i32_1 = arith.constant 0 : i32
    return %c0_i32, %c0_i32_0 : i32, i32
  }
  func.func @transform_3(%arg0: i32) -> (i32, i32) {
    %c0_i32 = arith.constant 0 : i32
    %c0_i32_0 = arith.constant 0 : i32
    %c0_i32_1 = arith.constant 0 : i32
    return %c0_i32, %c0_i32_0 : i32, i32
  }
  func.func @transform_4(%arg0: i32) -> (i32, i32) {
    %c0_i32 = arith.constant 0 : i32
    %c0_i32_0 = arith.constant 0 : i32
    return %arg0, %c0_i32 : i32, i32
  }
}

module attributes {stable_mosaic.version = 11 : i64} {
  func.func @_pool_atten_kernel(%arg0: i32, %arg1: memref<2x256x8xf32, #tpu.memory_space<vmem>>, %arg2: memref<8x8xf32, #tpu.memory_space<vmem>>, %arg3: memref<2x8xf32, #tpu.memory_space<vmem>>) attributes {dimension_semantics = [#tpu.dimension_semantics<arbitrary>], iteration_bounds = array<i64: 1>, scalar_prefetch = 0 : i64, scratch_operands = 0 : i64, tpu.core_type = #tpu.core_type<tc>, window_params = [{pipeline_mode = #tpu.pipeline_mode<synchronous>, transform_indices = @transform_0, window_bounds = array<i64: 2, 256, 8>}, {pipeline_mode = #tpu.pipeline_mode<synchronous>, transform_indices = @transform_1, window_bounds = array<i64: 8, 8>}, {pipeline_mode = #tpu.pipeline_mode<synchronous>, transform_indices = @transform_2, window_bounds = array<i64: 2, 8>}]} {
    %c0 = arith.constant 0 : index
    %c0_0 = arith.constant 0 : index
    %c0_1 = arith.constant 0 : index
    %0 = vector.load %arg1[%c0, %c0_0, %c0_1] : memref<2x256x8xf32, #tpu.memory_space<vmem>>, vector<2x256x8xf32>
    %cst = arith.constant dense<0.000000e+00> : vector<2x8xf32>
    %1 = vector.multi_reduction <add>, %0, %cst [1] : vector<2x256x8xf32> to vector<2x8xf32>
    %cst_2 = arith.constant 2.560000e+02 : f32
    %2 = vector.broadcast %cst_2 : f32 to vector<2x8xf32>
    %3 = arith.divf %1, %2 : vector<2x8xf32>
    %c0_3 = arith.constant 0 : index
    %c0_4 = arith.constant 0 : index
    %4 = vector.load %arg2[%c0_3, %c0_4] : memref<8x8xf32, #tpu.memory_space<vmem>>, vector<8x8xf32>
    %cst_5 = arith.constant dense<0.000000e+00> : vector<2x8xf32>
    %5 = tpu.matmul %3, %4, %cst_5 {dimension_numbers = #tpu.dot_dimension_numbers<[1], [0], [0], [1], [0, 0, 1, 1], [], []>} : vector<2x8xf32>, vector<8x8xf32>, vector<2x8xf32> -> vector<2x8xf32>
    %cst_6 = arith.constant 0.000000e+00 : f32
    %6 = vector.broadcast %cst_6 : f32 to vector<2x8xf32>
    %7 = arith.subf %6, %5 : vector<2x8xf32>
    %8 = math.exp %7 : vector<2x8xf32>
    %cst_7 = arith.constant 1.000000e+00 : f32
    %9 = vector.broadcast %cst_7 : f32 to vector<2x8xf32>
    %10 = arith.addf %9, %8 : vector<2x8xf32>
    %cst_8 = arith.constant 1.000000e+00 : f32
    %11 = vector.broadcast %cst_8 : f32 to vector<2x8xf32>
    %12 = arith.divf %11, %10 : vector<2x8xf32>
    %c0_9 = arith.constant 0 : index
    %c0_10 = arith.constant 0 : index
    %13 = vector.load %arg3[%c0_9, %c0_10] : memref<2x8xf32, #tpu.memory_space<vmem>>, vector<2x8xf32>
    tpu.vector_store %arg3[%c0_9, %c0_10], %12 {strides = array<i32>} : memref<2x8xf32, #tpu.memory_space<vmem>>, vector<2x8xf32>,
    return
  }
  func.func @transform_0(%arg0: i32) -> (i32, i32, i32) {
    %c0_i32 = arith.constant 0 : i32
    %c0_i32_0 = arith.constant 0 : i32
    %c0_i32_1 = arith.constant 0 : i32
    %c0_i32_2 = arith.constant 0 : i32
    return %c0_i32, %c0_i32_0, %c0_i32_1 : i32, i32, i32
  }
  func.func @transform_1(%arg0: i32) -> (i32, i32) {
    %c0_i32 = arith.constant 0 : i32
    %c0_i32_0 = arith.constant 0 : i32
    %c0_i32_1 = arith.constant 0 : i32
    return %c0_i32, %c0_i32_0 : i32, i32
  }
  func.func @transform_2(%arg0: i32) -> (i32, i32) {
    %c0_i32 = arith.constant 0 : i32
    %c0_i32_0 = arith.constant 0 : i32
    %c0_i32_1 = arith.constant 0 : i32
    return %c0_i32, %c0_i32_0 : i32, i32
  }
}

module attributes {stable_mosaic.version = 11 : i64} {
  func.func @_csfm_fuse_kernel(%arg0: i32, %arg1: memref<1x256x8xf32, #tpu.memory_space<vmem>>, %arg2: memref<1x1x8xf32, #tpu.memory_space<vmem>>, %arg3: memref<8x4xf32, #tpu.memory_space<vmem>>, %arg4: memref<1x8xf32, #tpu.memory_space<vmem>>, %arg5: memref<1x1xf32, #tpu.memory_space<vmem>>, %arg6: memref<1x256x4xf32, #tpu.memory_space<vmem>>) attributes {dimension_semantics = [#tpu.dimension_semantics<parallel>], iteration_bounds = array<i64: 2>, scalar_prefetch = 0 : i64, scratch_operands = 0 : i64, tpu.core_type = #tpu.core_type<tc>, window_params = [{transform_indices = @transform_0, window_bounds = array<i64: 1, 256, 8>}, {transform_indices = @transform_1, window_bounds = array<i64: 1, 1, 8>}, {pipeline_mode = #tpu.pipeline_mode<synchronous>, transform_indices = @transform_2, window_bounds = array<i64: 8, 4>}, {pipeline_mode = #tpu.pipeline_mode<synchronous>, transform_indices = @transform_3, window_bounds = array<i64: 1, 8>}, {pipeline_mode = #tpu.pipeline_mode<synchronous>, transform_indices = @transform_4, window_bounds = array<i64: 1, 1>}, {transform_indices = @transform_5, window_bounds = array<i64: 1, 256, 4>}]} {
    %c0 = arith.constant 0 : index
    %c0_0 = arith.constant 0 : index
    %c0_1 = arith.constant 0 : index
    %0 = vector.load %arg1[%c0, %c0_0, %c0_1] : memref<1x256x8xf32, #tpu.memory_space<vmem>>, vector<1x256x8xf32>
    %1 = vector.shape_cast %0 : vector<1x256x8xf32> to vector<256x8xf32>
    %c0_2 = arith.constant 0 : index
    %c0_3 = arith.constant 0 : index
    %c0_4 = arith.constant 0 : index
    %2 = vector.load %arg2[%c0_2, %c0_3, %c0_4] : memref<1x1x8xf32, #tpu.memory_space<vmem>>, vector<1x1x8xf32>
    %3 = vector.shape_cast %2 : vector<1x1x8xf32> to vector<1x8xf32>
    %4 = vector.broadcast %3 : vector<1x8xf32> to vector<256x8xf32>
    %5 = arith.mulf %1, %4 : vector<256x8xf32>
    %c0_5 = arith.constant 0 : index
    %c0_6 = arith.constant 0 : index
    %6 = vector.load %arg3[%c0_5, %c0_6] : memref<8x4xf32, #tpu.memory_space<vmem>>, vector<8x4xf32>
    %cst = arith.constant dense<0.000000e+00> : vector<256x4xf32>
    %7 = tpu.matmul %5, %6, %cst {dimension_numbers = #tpu.dot_dimension_numbers<[1], [0], [0], [1], [0, 0, 1, 1], [], []>} : vector<256x8xf32>, vector<8x4xf32>, vector<256x4xf32> -> vector<256x4xf32>
    %c0_7 = arith.constant 0 : index
    %c0_8 = arith.constant 0 : index
    %8 = vector.load %arg4[%c0_7, %c0_8] : memref<1x8xf32, #tpu.memory_space<vmem>>, vector<1x8xf32>
    %9 = vector.broadcast %8 : vector<1x8xf32> to vector<256x8xf32>
    %10 = arith.mulf %1, %9 : vector<256x8xf32>
    %cst_9 = arith.constant dense<0.000000e+00> : vector<256xf32>
    %11 = vector.multi_reduction <add>, %10, %cst_9 [1] : vector<256x8xf32> to vector<256xf32>
    %12 = vector.shape_cast %11 : vector<256xf32> to vector<256x1xf32>
    %c0_10 = arith.constant 0 : index
    %c0_11 = arith.constant 0 : index
    %13 = vector.load %arg5[%c0_10, %c0_11] : memref<1x1xf32, #tpu.memory_space<vmem>>, vector<1x1xf32>
    %14 = vector.broadcast %13 : vector<1x1xf32> to vector<256x1xf32>
    %15 = arith.addf %12, %14 : vector<256x1xf32>
    %cst_12 = arith.constant 0.000000e+00 : f32
    %16 = vector.broadcast %cst_12 : f32 to vector<256x1xf32>
    %17 = arith.subf %16, %15 : vector<256x1xf32>
    %18 = math.exp %17 : vector<256x1xf32>
    %cst_13 = arith.constant 1.000000e+00 : f32
    %19 = vector.broadcast %cst_13 : f32 to vector<256x1xf32>
    %20 = arith.addf %19, %18 : vector<256x1xf32>
    %cst_14 = arith.constant 1.000000e+00 : f32
    %21 = vector.broadcast %cst_14 : f32 to vector<256x1xf32>
    %22 = arith.divf %21, %20 : vector<256x1xf32>
    %23 = vector.broadcast %22 : vector<256x1xf32> to vector<256x4xf32>
    %24 = arith.mulf %7, %23 : vector<256x4xf32>
    %c0_15 = arith.constant 0 : index
    %c0_16 = arith.constant 0 : index
    %c0_17 = arith.constant 0 : index
    %25 = vector.load %arg6[%c0_15, %c0_16, %c0_17] : memref<1x256x4xf32, #tpu.memory_space<vmem>>, vector<1x256x4xf32>
    %26 = vector.shape_cast %25 : vector<1x256x4xf32> to vector<256x4xf32>
    %27 = vector.shape_cast %24 : vector<256x4xf32> to vector<1x256x4xf32>
    tpu.vector_store %arg6[%c0_15, %c0_16, %c0_17], %27 {strides = array<i32>} : memref<1x256x4xf32, #tpu.memory_space<vmem>>, vector<1x256x4xf32>,
    return
  }
  func.func @transform_0(%arg0: i32) -> (i32, i32, i32) {
    %c0_i32 = arith.constant 0 : i32
    %c0_i32_0 = arith.constant 0 : i32
    %c0_i32_1 = arith.constant 0 : i32
    return %arg0, %c0_i32, %c0_i32_0 : i32, i32, i32
  }
  func.func @transform_1(%arg0: i32) -> (i32, i32, i32) {
    %c0_i32 = arith.constant 0 : i32
    %c0_i32_0 = arith.constant 0 : i32
    %c0_i32_1 = arith.constant 0 : i32
    return %arg0, %c0_i32, %c0_i32_0 : i32, i32, i32
  }
  func.func @transform_2(%arg0: i32) -> (i32, i32) {
    %c0_i32 = arith.constant 0 : i32
    %c0_i32_0 = arith.constant 0 : i32
    %c0_i32_1 = arith.constant 0 : i32
    return %c0_i32, %c0_i32_0 : i32, i32
  }
  func.func @transform_3(%arg0: i32) -> (i32, i32) {
    %c0_i32 = arith.constant 0 : i32
    %c0_i32_0 = arith.constant 0 : i32
    %c0_i32_1 = arith.constant 0 : i32
    return %c0_i32, %c0_i32_0 : i32, i32
  }
  func.func @transform_4(%arg0: i32) -> (i32, i32) {
    %c0_i32 = arith.constant 0 : i32
    %c0_i32_0 = arith.constant 0 : i32
    %c0_i32_1 = arith.constant 0 : i32
    return %c0_i32, %c0_i32_0 : i32, i32
  }
  func.func @transform_5(%arg0: i32) -> (i32, i32, i32) {
    %c0_i32 = arith.constant 0 : i32
    %c0_i32_0 = arith.constant 0 : i32
    %c0_i32_1 = arith.constant 0 : i32
    return %arg0, %c0_i32, %c0_i32_0 : i32, i32, i32
  }
}

</mosaic_0001>

<llo_original>
// kernel: tile.13
$region0: #{tile.13}
  #allocation0 [shape = 's32[1]{0}', space=sflag, size = 0x4, scoped, tag = 'scoped memory for tile.13']
  %s0 = inlined_call_operand.vmem [shape: f32[4], index: 0, kind: input, shape index: {}]
  %s1 = inlined_call_operand.vmem [shape: f32[4,4], index: 1, kind: output, shape index: {}]
  // Predicated region
  $region2: #{tile.13} parent=0 // pred_check
    _
  $region3: #{tile.13} parent=0 // pred_check_branch
    %3 = sbr.rel (0) target = $region5
  $region4: #{tile.13} parent=0 // pred_region
    _
  $region5: #{tile.13} parent=0 // pred_fallthru
    _
  %v4 = vld [vmem:[%s0] ss:$0 sm:$0xff]
  %5 = vst [vmem:[%s1] sm:$0xf] %v4

// kernel: tile.18
$region0: #{tile.18}
  %s0 = inlined_call_operand.vmem [shape: f32[4,4], index: 0, kind: input, shape index: {}]
  %s1 = inlined_call_operand.vmem [shape: f32[1,16], index: 1, kind: output, shape index: {}]
  $region1: #{tile.18} parent=0
    #allocation0 [shape = 'u8[4096]{0}', space=vmem, size = 0x1000, scoped, tag = 'scoped mem for output reshape']
    #allocation1 [shape = 'u8[4096]{0}', space=vmem, size = 0x1000, scoped, tag = 'scoped mem for input reshape']
    %s3 = sshll.u32 1, 4
    %s4 = ssub.s32 %s3, 1
    %v5 = vld [vmem:[%s0] sm:%s4]
    %6 = vst [vmem:[#allocation1] sm:%s4] %v5
    %v7 = vld [vmem:[#allocation1] sm:$0x1]
    %vm8 = vcmask 31744
    %9 = vst.msk [vmem:[#allocation0] sm:$0x1] %vm8, %v7
    %s10 = scalar_lea.vmem [#allocation1], 3
    %v11 = vld [vmem:[%s10] sm:$0x1]
    %12 = vrot.lane.b32.xlu0 %v11, 12
    %v13 = vpop.permute.xlu0 %12
    %vm14 = vcmask 130144
    %15 = vst.msk [vmem:[#allocation0] sm:$0x1] %vm14, %v13
    %s16 = scalar_lea.vmem [#allocation1], 2
    %v17 = vld [vmem:[%s16] sm:$0x1]
    %18 = vrot.lane.b32.xlu0 %v17, 8
    %v19 = vpop.permute.xlu0 %18
    %vm20 = vcmask 97344
    %21 = vst.msk [vmem:[#allocation0] sm:$0x1] %vm20, %v19
    %s22 = scalar_lea.vmem [#allocation1], 1
    %v23 = vld [vmem:[%s22] sm:$0x1]
    %24 = vrot.lane.b32.xlu0 %v23, 4
    %v25 = vpop.permute.xlu0 %24
    %vm26 = vcmask 64544
    %27 = vst.msk [vmem:[#allocation0] sm:$0x1] %vm26, %v25
    %s29 = sshll.u32 1, 1
    %s30 = ssub.s32 %s29, 1
    %v32 = vld [vmem:[#allocation0] sm:%s30]
    %s33 = sshll.u32 1, 1
    %s34 = ssub.s32 %s33, 1
    %35 = vst [vmem:[%s1] sm:%s34] %v32

// kernel: csfm_forward.4
$region0: #{csfm_forward.4}
  #allocation0 [shape = 'u32[]', space=smem, size = 0x4, offset = 0x4, fixed_abs, tag = 'smem constant byte address 0x4 - core index']
  #allocation1 [shape = 'u32[144,128]{1,0:T(1,128)}', space=vmem, size = 0x12000, scoped, tag = 'internal scratch']
  %s0 = inlined_call_operand.vmem [shape: f32[128,8], index: 0, kind: input, shape index: {}]
  %s1 = inlined_call_operand.vmem [shape: f32[8,16], index: 1, kind: input, shape index: {}]
  %s2 = inlined_call_operand.vmem [shape: f32[1,16], index: 2, kind: input, shape index: {}]
  %s3 = inlined_call_operand.vmem [shape: f32[1,16], index: 3, kind: input, shape index: {}]
  %s4 = inlined_call_operand.vmem [shape: f32[128,16], index: 4, kind: output, shape index: {}]
  %s5 = sld [smem:[#allocation0]]
  $region26: #{csfm_forward.4} parent=0
    _
  %s7 = ssub.s32 1, %s5
  %s8 = scalar_select 0, %s7, %s5
  // Predicated region
  $region2: #{csfm_forward.4} parent=0 // pred_check
    _
  $region3: #{csfm_forward.4} parent=0 // pred_check_branch
    %10 = sbr.rel (0) target = $region5
  $region4: #{csfm_forward.4} parent=0 // pred_region
    _
  $region5: #{csfm_forward.4} parent=0 // pred_fallthru
    _
  // Predicated region
  $region6: #{csfm_forward.4} parent=0 // pred_check
    _
  $region7: #{csfm_forward.4} parent=0 // pred_check_branch
    %12 = sbr.rel (0) target = $region9
  $region8: #{csfm_forward.4} parent=0 // pred_region
    _
  $region9: #{csfm_forward.4} parent=0 // pred_fallthru
    _
  // Predicated region
  $region10: #{csfm_forward.4} parent=0 // pred_check
    _
  $region11: #{csfm_forward.4} parent=0 // pred_check_branch
    %14 = sbr.rel (0) target = $region13
  $region12: #{csfm_forward.4} parent=0 // pred_region
    _
  $region13: #{csfm_forward.4} parent=0 // pred_fallthru
    _
  // Predicated region
  $region14: #{csfm_forward.4} parent=0 // pred_check
    _
  $region15: #{csfm_forward.4} parent=0 // pred_check_branch
    %16 = sbr.rel (0) target = $region17
  $region16: #{csfm_forward.4} parent=0 // pred_region
    _
  $region17: #{csfm_forward.4} parent=0 // pred_fallthru
    _
  %v17 = vld [vmem:[%s0] sm:$0xff]
  %v18 = vld [vmem:[%s0 + $0x8] sm:$0xff]
  %v19 = vld [vmem:[%s0 + $0x10] sm:$0xff]
  %v20 = vld [vmem:[%s0 + $0x18] sm:$0xff]
  %v21 = vld [vmem:[%s0 + $0x20] sm:$0xff]
  %v22 = vld [vmem:[%s0 + $0x28] sm:$0xff]
  %v23 = vld [vmem:[%s0 + $0x30] sm:$0xff]
  %v24 = vld [vmem:[%s0 + $0x38] sm:$0xff]
  %v25 = vld [vmem:[%s0 + $0x40] sm:$0xff]
  %v26 = vld [vmem:[%s0 + $0x48] sm:$0xff]
  %v27 = vld [vmem:[%s0 + $0x50] sm:$0xff]
  %v28 = vld [vmem:[%s0 + $0x58] sm:$0xff]
  %v29 = vld [vmem:[%s0 + $0x60] sm:$0xff]
  %v30 = vld [vmem:[%s0 + $0x68] sm:$0xff]
  %v31 = vld [vmem:[%s0 + $0x70] sm:$0xff]
  %v32 = vld [vmem:[%s0 + $0x78] sm:$0xff]
  %v33 = vld [vmem:[%s1] sm:$0xff]
  %vm34 = vcmask 64512
  %v36 = vsel %vm34, %v17, 0
  %v39 = vsel %vm34, %v18, 0
  %v42 = vsel %vm34, %v19, 0
  %v45 = vsel %vm34, %v20, 0
  %v48 = vsel %vm34, %v21, 0
  %v51 = vsel %vm34, %v22, 0
  %v54 = vsel %vm34, %v23, 0
  %v57 = vsel %vm34, %v24, 0
  %v60 = vsel %vm34, %v25, 0
  %v63 = vsel %vm34, %v26, 0
  %v66 = vsel %vm34, %v27, 0
  %v69 = vsel %vm34, %v28, 0
  %v72 = vsel %vm34, %v29, 0
  %v75 = vsel %vm34, %v30, 0
  %v78 = vsel %vm34, %v31, 0
  %v81 = vsel %vm34, %v32, 0
  %83 = vmatprep.subr.mxu0 0.0
  %84 = vmatpush1.msra.mxu0 0.0
  %85 = vmatprep.subr.mxu0 0.0
  %86 = vmatpush1.msra.mxu0 0.0
  %87 = vmatprep.subr.mxu0 0.0
  %88 = vmatpush1.msra.mxu0 0.0
  %89 = vmatprep.subr.mxu0 0.0
  %90 = vmatpush1.msra.mxu0 0.0
  %91 = vmatprep.subr.mxu0 0.0
  %92 = vmatpush1.msra.mxu0 0.0
  %93 = vmatprep.subr.mxu0 0.0
  %94 = vmatpush1.msra.mxu0 0.0
  %95 = vmatprep.subr.mxu0 0.0
  %96 = vmatpush1.msra.mxu0 0.0
  %97 = vmatprep.subr.mxu0 0.0
  %98 = vmatpush1.msra.mxu0 0.0
  %99 = vmatprep.subr.mxu0 0.0
  %100 = vmatpush1.msra.mxu0 0.0
  %101 = vmatprep.subr.mxu0 0.0
  %102 = vmatpush1.msra.mxu0 0.0
  %103 = vmatprep.subr.mxu0 0.0
  %104 = vmatpush1.msra.mxu0 0.0
  %105 = vmatprep.subr.mxu0 0.0
  %106 = vmatpush1.msra.mxu0 0.0
  %107 = vmatprep.subr.mxu0 0.0
  %108 = vmatpush1.msra.mxu0 0.0
  %109 = vmatprep.subr.mxu0 0.0
  %110 = vmatpush1.msra.mxu0 0.0
  %111 = vmatprep.subr.mxu0 0.0
  %112 = vmatpush1.msra.mxu0 0.0
  %113 = vmatprep.subr.mxu0 0.0
  %114 = vmatpush1.msra.mxu0 %v33
  %115 = vmatprep.subr.mxu0 0.0
  %116 = vmatpush2.msra.mxu0 0.0
  %117 = vmatprep.subr.mxu0 0.0
  %118 = vmatpush2.msra.mxu0 0.0
  %119 = vmatprep.subr.mxu0 0.0
  %120 = vmatpush2.msra.mxu0 0.0
  %121 = vmatprep.subr.mxu0 0.0
  %122 = vmatpush2.msra.mxu0 0.0
  %123 = vmatprep.subr.mxu0 0.0
  %124 = vmatpush2.msra.mxu0 0.0
  %125 = vmatprep.subr.mxu0 0.0
  %126 = vmatpush2.msra.mxu0 0.0
  %127 = vmatprep.subr.mxu0 0.0
  %128 = vmatpush2.msra.mxu0 0.0
  %129 = vmatprep.subr.mxu0 0.0
  %130 = vmatpush2.msra.mxu0 0.0
  %131 = vmatprep.subr.mxu0 0.0
  %132 = vmatpush2.msra.mxu0 0.0
  %133 = vmatprep.subr.mxu0 0.0
  %134 = vmatpush2.msra.mxu0 0.0
  %135 = vmatprep.subr.mxu0 0.0
  %136 = vmatpush2.msra.mxu0 0.0
  %137 = vmatprep.subr.mxu0 0.0
  %138 = vmatpush2.msra.mxu0 0.0
  %139 = vmatprep.subr.mxu0 0.0
  %140 = vmatpush2.msra.mxu0 0.0
  %141 = vmatprep.subr.mxu0 0.0
  %142 = vmatpush2.msra.mxu0 0.0
  %143 = vmatprep.subr.mxu0 0.0
  %144 = vmatpush2.msra.mxu0 0.0
  %145 = vmatprep.subr.mxu0 0.0
  %146 = vmatpush2.msra.mxu0 0.0
  %147 = vmatprep.mubr.f32.mxu0 0.0
  %148 = vmatmul.mubr.f32.gmra.mxu0 %v36
  %v149 = vpop.f32.mrf.mxu0
  %v150 = vadd.f32 0.0, %v149
  %v151 = vpop.f32.mrf.mxu0
  %152 = vmatprep.mubr.f32.mxu0 0.0
  %153 = vmatmul.mubr.f32.gmra.mxu0 %v39
  %v154 = vpop.f32.mrf.mxu0
  %v155 = vadd.f32 0.0, %v154
  %v156 = vpop.f32.mrf.mxu0
  %157 = vmatprep.mubr.f32.mxu0 0.0
  %158 = vmatmul.mubr.f32.gmra.mxu0 %v42
  %v159 = vpop.f32.mrf.mxu0
  %v160 = vadd.f32 0.0, %v159
  %v161 = vpop.f32.mrf.mxu0
  %162 = vmatprep.mubr.f32.mxu0 0.0
  %163 = vmatmul.mubr.f32.gmra.mxu0 %v45
  %v164 = vpop.f32.mrf.mxu0
  %v165 = vadd.f32 0.0, %v164
  %v166 = vpop.f32.mrf.mxu0
  %167 = vmatprep.mubr.f32.mxu0 0.0
  %168 = vmatmul.mubr.f32.gmra.mxu0 %v48
  %v169 = vpop.f32.mrf.mxu0
  %v170 = vadd.f32 0.0, %v169
  %v171 = vpop.f32.mrf.mxu0
  %172 = vmatprep.mubr.f32.mxu0 0.0
  %173 = vmatmul.mubr.f32.gmra.mxu0 %v51
  %v174 = vpop.f32.mrf.mxu0
  %v175 = vadd.f32 0.0, %v174
  %v176 = vpop.f32.mrf.mxu0
  %177 = vmatprep.mubr.f32.mxu0 0.0
  %178 = vmatmul.mubr.f32.gmra.mxu0 %v54
  %v179 = vpop.f32.mrf.mxu0
  %v180 = vadd.f32 0.0, %v179
  %v181 = vpop.f32.mrf.mxu0
  %182 = vmatprep.mubr.f32.mxu0 0.0
  %183 = vmatmul.mubr.f32.gmra.mxu0 %v57
  %v184 = vpop.f32.mrf.mxu0
  %v185 = vadd.f32 0.0, %v184
  %v186 = vpop.f32.mrf.mxu0
  %187 = vmatprep.mubr.f32.mxu0 0.0
  %188 = vmatmul.mubr.f32.gmra.mxu0 %v60
  %v189 = vpop.f32.mrf.mxu0
  %v190 = vadd.f32 0.0, %v189
  %v191 = vpop.f32.mrf.mxu0
  %192 = vmatprep.mubr.f32.mxu0 0.0
  %193 = vmatmul.mubr.f32.gmra.mxu0 %v63
  %v194 = vpop.f32.mrf.mxu0
  %v195 = vadd.f32 0.0, %v194
  %v196 = vpop.f32.mrf.mxu0
  %197 = vmatprep.mubr.f32.mxu0 0.0
  %198 = vmatmul.mubr.f32.gmra.mxu0 %v66
  %v199 = vpop.f32.mrf.mxu0
  %v200 = vadd.f32 0.0, %v199
  %v201 = vpop.f32.mrf.mxu0
  %202 = vmatprep.mubr.f32.mxu0 0.0
  %203 = vmatmul.mubr.f32.gmra.mxu0 %v69
  %v204 = vpop.f32.mrf.mxu0
  %v205 = vadd.f32 0.0, %v204
  %v206 = vpop.f32.mrf.mxu0
  %207 = vmatprep.mubr.f32.mxu0 0.0
  %208 = vmatmul.mubr.f32.gmra.mxu0 %v72
  %v209 = vpop.f32.mrf.mxu0
  %v210 = vadd.f32 0.0, %v209
  %v211 = vpop.f32.mrf.mxu0
  %212 = vmatprep.mubr.f32.mxu0 0.0
  %213 = vmatmul.mubr.f32.gmra.mxu0 %v75
  %v214 = vpop.f32.mrf.mxu0
  %v215 = vadd.f32 0.0, %v214
  %v216 = vpop.f32.mrf.mxu0
  %217 = vmatprep.mubr.f32.mxu0 0.0
  %218 = vmatmul.mubr.f32.gmra.mxu0 %v78
  %v219 = vpop.f32.mrf.mxu0
  %v220 = vadd.f32 0.0, %v219
  %v221 = vpop.f32.mrf.mxu0
  %222 = vmatprep.mubr.f32.mxu0 0.0
  %223 = vmatmul.mubr.f32.gmra.mxu0 %v81
  %v224 = vpop.f32.mrf.mxu0
  %v225 = vadd.f32 0.0, %v224
  %v226 = vpop.f32.mrf.mxu0
  %227 = vdwg.mxu0
  %v228 = vld [vmem:[%s2] sm:$0x1]
  %v230 = vlaneseq
  %v231 = vshrl.u32 %v230, 7
  %v232 = vsub.s32 0, %v231
  %v233 = vrot.slane %v228, %v232
  %v235 = vmul.f32 %v150, %v233
  %v236 = vmul.f32 %v155, %v233
  %v237 = vmul.f32 %v160, %v233
  %v238 = vmul.f32 %v165, %v233
  %v239 = vmul.f32 %v170, %v233
  %v240 = vmul.f32 %v175, %v233
  %v241 = vmul.f32 %v180, %v233
  %v242 = vmul.f32 %v185, %v233
  %v243 = vmul.f32 %v190, %v233
  %v244 = vmul.f32 %v195, %v233
  %v245 = vmul.f32 %v200, %v233
  %v246 = vmul.f32 %v205, %v233
  %v247 = vmul.f32 %v210, %v233
  %v248 = vmul.f32 %v215, %v233
  %v249 = vmul.f32 %v220, %v233
  %v250 = vmul.f32 %v225, %v233
  %v251 = vld [vmem:[%s3] sm:$0x1]
  %v253 = vlaneseq
  %v254 = vshrl.u32 %v253, 7
  %v255 = vsub.s32 0, %v254
  %v256 = vrot.slane %v251, %v255
  %v258 = vadd.f32 %v235, %v256
  %v259 = vadd.f32 %v236, %v256
  %v260 = vadd.f32 %v237, %v256
  %v261 = vadd.f32 %v238, %v256
  %v262 = vadd.f32 %v239, %v256
  %v263 = vadd.f32 %v240, %v256
  %v264 = vadd.f32 %v241, %v256
  %v265 = vadd.f32 %v242, %v256
  %v266 = vadd.f32 %v243, %v256
  %v267 = vadd.f32 %v244, %v256
  %v268 = vadd.f32 %v245, %v256
  %v269 = vadd.f32 %v246, %v256
  %v270 = vadd.f32 %v247, %v256
  %v271 = vadd.f32 %v248, %v256
  %v272 = vadd.f32 %v249, %v256
  %v273 = vadd.f32 %v250, %v256
  %v274 = vmul.f32 %v258, 0.5
  %v275 = vmul.f32 %v259, 0.5
  %v276 = vmul.f32 %v260, 0.5
  %v277 = vmul.f32 %v261, 0.5
  %v278 = vmul.f32 %v262, 0.5
  %v279 = vmul.f32 %v263, 0.5
  %v280 = vmul.f32 %v264, 0.5
  %v281 = vmul.f32 %v265, 0.5
  %v282 = vmul.f32 %v266, 0.5
  %v283 = vmul.f32 %v267, 0.5
  %v284 = vmul.f32 %v268, 0.5
  %v285 = vmul.f32 %v269, 0.5
  %v286 = vmul.f32 %v270, 0.5
  %v287 = vmul.f32 %v271, 0.5
  %v288 = vmul.f32 %v272, 0.5
  %v289 = vmul.f32 %v273, 0.5
  %v290 = vmul.f32 %v258, 0.70710677
  %v291 = vmul.f32 %v259, 0.70710677
  %v292 = vmul.f32 %v260, 0.70710677
  %v293 = vmul.f32 %v261, 0.70710677
  %v294 = vmul.f32 %v262, 0.70710677
  %v295 = vmul.f32 %v263, 0.70710677
  %v296 = vmul.f32 %v264, 0.70710677
  %v297 = vmul.f32 %v265, 0.70710677
  %v298 = vmul.f32 %v266, 0.70710677
  %v299 = vmul.f32 %v267, 0.70710677
  %v300 = vmul.f32 %v268, 0.70710677
  %v301 = vmul.f32 %v269, 0.70710677
  %v302 = vmul.f32 %v270, 0.70710677
  %v303 = vmul.f32 %v271, 0.70710677
  %v304 = vmul.f32 %v272, 0.70710677
  %v305 = vmul.f32 %v273, 0.70710677
  %vm306 = vcmp.ge.f32.partialorder %v290, 0.0
  %vm307 = vcmp.ge.f32.partialorder %v291, 0.0
  %vm308 = vcmp.ge.f32.partialorder %v292, 0.0
  %vm309 = vcmp.ge.f32.partialorder %v293, 0.0
  %vm310 = vcmp.ge.f32.partialorder %v294, 0.0
  %vm311 = vcmp.ge.f32.partialorder %v295, 0.0
  %vm312 = vcmp.ge.f32.partialorder %v296, 0.0
  %vm313 = vcmp.ge.f32.partialorder %v297, 0.0
  %vm314 = vcmp.ge.f32.partialorder %v298, 0.0
  %vm315 = vcmp.ge.f32.partialorder %v299, 0.0
  %vm316 = vcmp.ge.f32.partialorder %v300, 0.0
  %vm317 = vcmp.ge.f32.partialorder %v301, 0.0
  %vm318 = vcmp.ge.f32.partialorder %v302, 0.0
  %vm319 = vcmp.ge.f32.partialorder %v303, 0.0
  %vm320 = vcmp.ge.f32.partialorder %v304, 0.0
  %vm321 = vcmp.ge.f32.partialorder %v305, 0.0
  %v322 = vsel %vm306, 1.0, -1.0
  %v323 = vsel %vm307, 1.0, -1.0
  %v324 = vsel %vm308, 1.0, -1.0
  %v325 = vsel %vm309, 1.0, -1.0
  %v326 = vsel %vm310, 1.0, -1.0
  %v327 = vsel %vm311, 1.0, -1.0
  %v328 = vsel %vm312, 1.0, -1.0
  %v329 = vsel %vm313, 1.0, -1.0
  %v330 = vsel %vm314, 1.0, -1.0
  %v331 = vsel %vm315, 1.0, -1.0
  %v332 = vsel %vm316, 1.0, -1.0
  %v333 = vsel %vm317, 1.0, -1.0
  %v334 = vsel %vm318, 1.0, -1.0
  %v335 = vsel %vm319, 1.0, -1.0
  %v336 = vsel %vm320, 1.0, -1.0
  %v337 = vsel %vm321, 1.0, -1.0
  %v338 = vand.u32 2147483647, %v290
  %v339 = vand.u32 2147483647, %v291
  %v340 = vand.u32 2147483647, %v292
  %v341 = vand.u32 2147483647, %v293
  %v342 = vand.u32 2147483647, %v294
  %v343 = vand.u32 2147483647, %v295
  %v344 = vand.u32 2147483647, %v296
  %v345 = vand.u32 2147483647, %v297
  %v346 = vand.u32 2147483647, %v298
  %v347 = vand.u32 2147483647, %v299
  %v348 = vand.u32 2147483647, %v300
  %v349 = vand.u32 2147483647, %v301
  %v350 = vand.u32 2147483647, %v302
  %v351 = vand.u32 2147483647, %v303
  %v352 = vand.u32 2147483647, %v304
  %v353 = vand.u32 2147483647, %v305
  %v354 = vmul.f32 %v338, 0.3275911
  %v355 = vmul.f32 %v339, 0.3275911
  %v356 = vmul.f32 %v340, 0.3275911
  %v357 = vmul.f32 %v341, 0.3275911
  %v358 = vmul.f32 %v342, 0.3275911
  %v359 = vmul.f32 %v343, 0.3275911
  %v360 = vmul.f32 %v344, 0.3275911
  %v361 = vmul.f32 %v345, 0.3275911
  %v362 = vmul.f32 %v346, 0.3275911
  %v363 = vmul.f32 %v347, 0.3275911
  %v364 = vmul.f32 %v348, 0.3275911
  %v365 = vmul.f32 %v349, 0.3275911
  %v366 = vmul.f32 %v350, 0.3275911
  %v367 = vmul.f32 %v351, 0.3275911
  %v368 = vmul.f32 %v352, 0.3275911
  %v369 = vmul.f32 %v353, 0.3275911
  %v370 = vadd.f32 %v354, 1.0
  %v371 = vadd.f32 %v355, 1.0
  %v372 = vadd.f32 %v356, 1.0
  %v373 = vadd.f32 %v357, 1.0
  %v374 = vadd.f32 %v358, 1.0
  %v375 = vadd.f32 %v359, 1.0
  %v376 = vadd.f32 %v360, 1.0
  %v377 = vadd.f32 %v361, 1.0
  %v378 = vadd.f32 %v362, 1.0
  %v379 = vadd.f32 %v363, 1.0
  %v380 = vadd.f32 %v364, 1.0
  %v381 = vadd.f32 %v365, 1.0
  %v382 = vadd.f32 %v366, 1.0
  %v383 = vadd.f32 %v367, 1.0
  %v384 = vadd.f32 %v368, 1.0
  %v385 = vadd.f32 %v369, 1.0
  %v386 = vrcp.pop %v370
  %v387 = vmul.f32 1.0, %v386
  %v388 = vrcp.pop %v371
  %v389 = vmul.f32 1.0, %v388
  %v390 = vrcp.pop %v372
  %v391 = vmul.f32 1.0, %v390
  %v392 = vrcp.pop %v373
  %v393 = vmul.f32 1.0, %v392
  %v394 = vrcp.pop %v374
  %v395 = vmul.f32 1.0, %v394
  %v396 = vrcp.pop %v375
  %v397 = vmul.f32 1.0, %v396
  %v398 = vrcp.pop %v376
  %v399 = vmul.f32 1.0, %v398
  %v400 = vrcp.pop %v377
  %v401 = vmul.f32 1.0, %v400
  %v402 = vrcp.pop %v378
  %v403 = vmul.f32 1.0, %v402
  %v404 = vrcp.pop %v379
  %v405 = vmul.f32 1.0, %v404
  %v406 = vrcp.pop %v380
  %v407 = vmul.f32 1.0, %v406
  %v408 = vrcp.pop %v381
  %v409 = vmul.f32 1.0, %v408
  %v410 = vrcp.pop %v382
  %v411 = vmul.f32 1.0, %v410
  %v412 = vrcp.pop %v383
  %v413 = vmul.f32 1.0, %v412
  %v414 = vrcp.pop %v384
  %v415 = vmul.f32 1.0, %v414
  %v416 = vrcp.pop %v385
  %v417 = vmul.f32 1.0, %v416
  %v418 = vmul.f32 %v387, 1.0614054
  %v419 = vmul.f32 %v389, 1.0614054
  %v420 = vmul.f32 %v391, 1.0614054
  %v421 = vmul.f32 %v393, 1.0614054
  %v422 = vmul.f32 %v395, 1.0614054
  %v423 = vmul.f32 %v397, 1.0614054
  %v424 = vmul.f32 %v399, 1.0614054
  %v425 = vmul.f32 %v401, 1.0614054
  %v426 = vmul.f32 %v403, 1.0614054
  %v427 = vmul.f32 %v405, 1.0614054
  %v428 = vmul.f32 %v407, 1.0614054
  %v429 = vmul.f32 %v409, 1.0614054
  %v430 = vmul.f32 %v411, 1.0614054
  %v431 = vmul.f32 %v413, 1.0614054
  %v432 = vmul.f32 %v415, 1.0614054
  %v433 = vmul.f32 %v417, 1.0614054
  %v434 = vadd.f32 %v418, -1.4531521
  %v435 = vadd.f32 %v419, -1.4531521
  %v436 = vadd.f32 %v420, -1.4531521
  %v437 = vadd.f32 %v421, -1.4531521
  %v438 = vadd.f32 %v422, -1.4531521
  %v439 = vadd.f32 %v423, -1.4531521
  %v440 = vadd.f32 %v424, -1.4531521
  %v441 = vadd.f32 %v425, -1.4531521
  %v442 = vadd.f32 %v426, -1.4531521
  %v443 = vadd.f32 %v427, -1.4531521
  %v444 = vadd.f32 %v428, -1.4531521
  %v445 = vadd.f32 %v429, -1.4531521
  %v446 = vadd.f32 %v430, -1.4531521
  %v447 = vadd.f32 %v431, -1.4531521
  %v448 = vadd.f32 %v432, -1.4531521
  %v449 = vadd.f32 %v433, -1.4531521
  %v450 = vmul.f32 %v434, %v387
  %v451 = vmul.f32 %v435, %v389
  %v452 = vmul.f32 %v436, %v391
  %v453 = vmul.f32 %v437, %v393
  %v454 = vmul.f32 %v438, %v395
  %v455 = vmul.f32 %v439, %v397
  %v456 = vmul.f32 %v440, %v399
  %v457 = vmul.f32 %v441, %v401
  %v458 = vmul.f32 %v442, %v403
  %v459 = vmul.f32 %v443, %v405
  %v460 = vmul.f32 %v444, %v407
  %v461 = vmul.f32 %v445, %v409
  %v462 = vmul.f32 %v446, %v411
  %v463 = vmul.f32 %v447, %v413
  %v464 = vmul.f32 %v448, %v415
  %v465 = vmul.f32 %v449, %v417
  %v466 = vadd.f32 %v450, 1.4214138
  %v467 = vadd.f32 %v451, 1.4214138
  %v468 = vadd.f32 %v452, 1.4214138
  %v469 = vadd.f32 %v453, 1.4214138
  %v470 = vadd.f32 %v454, 1.4214138
  %v471 = vadd.f32 %v455, 1.4214138
  %v472 = vadd.f32 %v456, 1.4214138
  %v473 = vadd.f32 %v457, 1.4214138
  %v474 = vadd.f32 %v458, 1.4214138
  %v475 = vadd.f32 %v459, 1.4214138
  %v476 = vadd.f32 %v460, 1.4214138
  %v477 = vadd.f32 %v461, 1.4214138
  %v478 = vadd.f32 %v462, 1.4214138
  %v479 = vadd.f32 %v463, 1.4214138
  %v480 = vadd.f32 %v464, 1.4214138
  %v481 = vadd.f32 %v465, 1.4214138
  %v482 = vmul.f32 %v466, %v387
  %v483 = vmul.f32 %v467, %v389
  %v484 = vmul.f32 %v468, %v391
  %v485 = vmul.f32 %v469, %v393
  %v486 = vmul.f32 %v470, %v395
  %v487 = vmul.f32 %v471, %v397
  %v488 = vmul.f32 %v472, %v399
  %v489 = vmul.f32 %v473, %v401
  %v490 = vmul.f32 %v474, %v403
  %v491 = vmul.f32 %v475, %v405
  %v492 = vmul.f32 %v476, %v407
  %v493 = vmul.f32 %v477, %v409
  %v494 = vmul.f32 %v478, %v411
  %v495 = vmul.f32 %v479, %v413
  %v496 = vmul.f32 %v480, %v415
  %v497 = vmul.f32 %v481, %v417
  %v498 = vadd.f32 %v482, -0.28449672
  %v499 = vadd.f32 %v483, -0.28449672
  %v500 = vadd.f32 %v484, -0.28449672
  %v501 = vadd.f32 %v485, -0.28449672
  %v502 = vadd.f32 %v486, -0.28449672
  %v503 = vadd.f32 %v487, -0.28449672
  %v504 = vadd.f32 %v488, -0.28449672
  %v505 = vadd.f32 %v489, -0.28449672
  %v506 = vadd.f32 %v490, -0.28449672
  %v507 = vadd.f32 %v491, -0.28449672
  %v508 = vadd.f32 %v492, -0.28449672
  %v509 = vadd.f32 %v493, -0.28449672
  %v510 = vadd.f32 %v494, -0.28449672
  %v511 = vadd.f32 %v495, -0.28449672
  %v512 = vadd.f32 %v496, -0.28449672
  %v513 = vadd.f32 %v497, -0.28449672
  %v514 = vmul.f32 %v498, %v387
  %v515 = vmul.f32 %v499, %v389
  %v516 = vmul.f32 %v500, %v391
  %v517 = vmul.f32 %v501, %v393
  %v518 = vmul.f32 %v502, %v395
  %v519 = vmul.f32 %v503, %v397
  %v520 = vmul.f32 %v504, %v399
  %v521 = vmul.f32 %v505, %v401
  %v522 = vmul.f32 %v506, %v403
  %v523 = vmul.f32 %v507, %v405
  %v524 = vmul.f32 %v508, %v407
  %v525 = vmul.f32 %v509, %v409
  %v526 = vmul.f32 %v510, %v411
  %v527 = vmul.f32 %v511, %v413
  %v528 = vmul.f32 %v512, %v415
  %v529 = vmul.f32 %v513, %v417
  %v530 = vadd.f32 %v514, 0.2548296
  %v531 = vadd.f32 %v515, 0.2548296
  %v532 = vadd.f32 %v516, 0.2548296
  %v533 = vadd.f32 %v517, 0.2548296
  %v534 = vadd.f32 %v518, 0.2548296
  %v535 = vadd.f32 %v519, 0.2548296
  %v536 = vadd.f32 %v520, 0.2548296
  %v537 = vadd.f32 %v521, 0.2548296
  %v538 = vadd.f32 %v522, 0.2548296
  %v539 = vadd.f32 %v523, 0.2548296
  %v540 = vadd.f32 %v524, 0.2548296
  %v541 = vadd.f32 %v525, 0.2548296
  %v542 = vadd.f32 %v526, 0.2548296
  %v543 = vadd.f32 %v527, 0.2548296
  %v544 = vadd.f32 %v528, 0.2548296
  %v545 = vadd.f32 %v529, 0.2548296
  %v546 = vmul.f32 %v530, %v387
  %v547 = vmul.f32 %v531, %v389
  %v548 = vmul.f32 %v532, %v391
  %v549 = vmul.f32 %v533, %v393
  %v550 = vmul.f32 %v534, %v395
  %v551 = vmul.f32 %v535, %v397
  %v552 = vmul.f32 %v536, %v399
  %v553 = vmul.f32 %v537, %v401
  %v554 = vmul.f32 %v538, %v403
  %v555 = vmul.f32 %v539, %v405
  %v556 = vmul.f32 %v540, %v407
  %v557 = vmul.f32 %v541, %v409
  %v558 = vmul.f32 %v542, %v411
  %v559 = vmul.f32 %v543, %v413
  %v560 = vmul.f32 %v544, %v415
  %v561 = vmul.f32 %v545, %v417
  %v562 = vsub.f32 0.0, %v338
  %v563 = vsub.f32 0.0, %v339
  %v564 = vsub.f32 0.0, %v340
  %v565 = vsub.f32 0.0, %v341
  %v566 = vsub.f32 0.0, %v342
  %v567 = vsub.f32 0.0, %v343
  %v568 = vsub.f32 0.0, %v344
  %v569 = vsub.f32 0.0, %v345
  %v570 = vsub.f32 0.0, %v346
  %v571 = vsub.f32 0.0, %v347
  %v572 = vsub.f32 0.0, %v348
  %v573 = vsub.f32 0.0, %v349
  %v574 = vsub.f32 0.0, %v350
  %v575 = vsub.f32 0.0, %v351
  %v576 = vsub.f32 0.0, %v352
  %v577 = vsub.f32 0.0, %v353
  %v578 = vmul.f32 %v562, %v338
  %v579 = vmul.f32 %v563, %v339
  %v580 = vmul.f32 %v564, %v340
  %v581 = vmul.f32 %v565, %v341
  %v582 = vmul.f32 %v566, %v342
  %v583 = vmul.f32 %v567, %v343
  %v584 = vmul.f32 %v568, %v344
  %v585 = vmul.f32 %v569, %v345
  %v586 = vmul.f32 %v570, %v346
  %v587 = vmul.f32 %v571, %v347
  %v588 = vmul.f32 %v572, %v348
  %v589 = vmul.f32 %v573, %v349
  %v590 = vmul.f32 %v574, %v350
  %v591 = vmul.f32 %v575, %v351
  %v592 = vmul.f32 %v576, %v352
  %v593 = vmul.f32 %v577, %v353
  %v594 = vmul.f32 %v578, 1.442695
  %v595 = vpow.pop %v594
  %v596 = vmul.f32 %v579, 1.442695
  %v597 = vpow.pop %v596
  %v598 = vmul.f32 %v580, 1.442695
  %v599 = vpow.pop %v598
  %v600 = vmul.f32 %v581, 1.442695
  %v601 = vpow.pop %v600
  %v602 = vmul.f32 %v582, 1.442695
  %v603 = vpow.pop %v602
  %v604 = vmul.f32 %v583, 1.442695
  %v605 = vpow.pop %v604
  %v606 = vmul.f32 %v584, 1.442695
  %v607 = vpow.pop %v606
  %v608 = vmul.f32 %v585, 1.442695
  %v609 = vpow.pop %v608
  %v610 = vmul.f32 %v586, 1.442695
  %v611 = vpow.pop %v610
  %v612 = vmul.f32 %v587, 1.442695
  %v613 = vpow.pop %v612
  %v614 = vmul.f32 %v588, 1.442695
  %v615 = vpow.pop %v614
  %v616 = vmul.f32 %v589, 1.442695
  %v617 = vpow.pop %v616
  %v618 = vmul.f32 %v590, 1.442695
  %v619 = vpow.pop %v618
  %v620 = vmul.f32 %v591, 1.442695
  %v621 = vpow.pop %v620
  %v622 = vmul.f32 %v592, 1.442695
  %v623 = vpow.pop %v622
  %v624 = vmul.f32 %v593, 1.442695
  %v625 = vpow.pop %v624
  %v626 = vmul.f32 %v546, %v595
  %v627 = vmul.f32 %v547, %v597
  %v628 = vmul.f32 %v548, %v599
  %v629 = vmul.f32 %v549, %v601
  %v630 = vmul.f32 %v550, %v603
  %v631 = vmul.f32 %v551, %v605
  %v632 = vmul.f32 %v552, %v607
  %v633 = vmul.f32 %v553, %v609
  %v634 = vmul.f32 %v554, %v611
  %v635 = vmul.f32 %v555, %v613
  %v636 = vmul.f32 %v556, %v615
  %v637 = vmul.f32 %v557, %v617
  %v638 = vmul.f32 %v558, %v619
  %v639 = vmul.f32 %v559, %v621
  %v640 = vmul.f32 %v560, %v623
  %v641 = vmul.f32 %v561, %v625
  %v642 = vsub.f32 1.0, %v626
  %v643 = vsub.f32 1.0, %v627
  %v644 = vsub.f32 1.0, %v628
  %v645 = vsub.f32 1.0, %v629
  %v646 = vsub.f32 1.0, %v630
  %v647 = vsub.f32 1.0, %v631
  %v648 = vsub.f32 1.0, %v632
  %v649 = vsub.f32 1.0, %v633
  %v650 = vsub.f32 1.0, %v634
  %v651 = vsub.f32 1.0, %v635
  %v652 = vsub.f32 1.0, %v636
  %v653 = vsub.f32 1.0, %v637
  %v654 = vsub.f32 1.0, %v638
  %v655 = vsub.f32 1.0, %v639
  %v656 = vsub.f32 1.0, %v640
  %v657 = vsub.f32 1.0, %v641
  %v658 = vmul.f32 %v322, %v642
  %v659 = vmul.f32 %v323, %v643
  %v660 = vmul.f32 %v324, %v644
  %v661 = vmul.f32 %v325, %v645
  %v662 = vmul.f32 %v326, %v646
  %v663 = vmul.f32 %v327, %v647
  %v664 = vmul.f32 %v328, %v648
  %v665 = vmul.f32 %v329, %v649
  %v666 = vmul.f32 %v330, %v650
  %v667 = vmul.f32 %v331, %v651
  %v668 = vmul.f32 %v332, %v652
  %v669 = vmul.f32 %v333, %v653
  %v670 = vmul.f32 %v334, %v654
  %v671 = vmul.f32 %v335, %v655
  %v672 = vmul.f32 %v336, %v656
  %v673 = vmul.f32 %v337, %v657
  %v674 = vadd.f32 %v658, 1.0
  %v675 = vadd.f32 %v659, 1.0
  %v676 = vadd.f32 %v660, 1.0
  %v677 = vadd.f32 %v661, 1.0
  %v678 = vadd.f32 %v662, 1.0
  %v679 = vadd.f32 %v663, 1.0
  %v680 = vadd.f32 %v664, 1.0
  %v681 = vadd.f32 %v665, 1.0
  %v682 = vadd.f32 %v666, 1.0
  %v683 = vadd.f32 %v667, 1.0
  %v684 = vadd.f32 %v668, 1.0
  %v685 = vadd.f32 %v669, 1.0
  %v686 = vadd.f32 %v670, 1.0
  %v687 = vadd.f32 %v671, 1.0
  %v688 = vadd.f32 %v672, 1.0
  %v689 = vadd.f32 %v673, 1.0
  %v690 = vmul.f32 %v274, %v674
  %v691 = vmul.f32 %v275, %v675
  %v692 = vmul.f32 %v276, %v676
  %v693 = vmul.f32 %v277, %v677
  %v694 = vmul.f32 %v278, %v678
  %v695 = vmul.f32 %v279, %v679
  %v696 = vmul.f32 %v280, %v680
  %v697 = vmul.f32 %v281, %v681
  %v698 = vmul.f32 %v282, %v682
  %v699 = vmul.f32 %v283, %v683
  %v700 = vmul.f32 %v284, %v684
  %v701 = vmul.f32 %v285, %v685
  %v702 = vmul.f32 %v286, %v686
  %v703 = vmul.f32 %v287, %v687
  %v704 = vmul.f32 %v288, %v688
  %v705 = vmul.f32 %v289, %v689
  %vm706 = vcmask 130048
  %707 = vst.msk [vmem:[%s4] sm:$0xff] %vm706, %v690
  %708 = vst.msk [vmem:[%s4 + $0x8] sm:$0xff] %vm706, %v691
  %709 = vst.msk [vmem:[%s4 + $0x10] sm:$0xff] %vm706, %v692
  %710 = vst.msk [vmem:[%s4 + $0x18] sm:$0xff] %vm706, %v693
  %711 = vst.msk [vmem:[%s4 + $0x20] sm:$0xff] %vm706, %v694
  %712 = vst.msk [vmem:[%s4 + $0x28] sm:$0xff] %vm706, %v695
  %713 = vst.msk [vmem:[%s4 + $0x30] sm:$0xff] %vm706, %v696
  %714 = vst.msk [vmem:[%s4 + $0x38] sm:$0xff] %vm706, %v697
  %715 = vst.msk [vmem:[%s4 + $0x40] sm:$0xff] %vm706, %v698
  %716 = vst.msk [vmem:[%s4 + $0x48] sm:$0xff] %vm706, %v699
  %717 = vst.msk [vmem:[%s4 + $0x50] sm:$0xff] %vm706, %v700
  %718 = vst.msk [vmem:[%s4 + $0x58] sm:$0xff] %vm706, %v701
  %719 = vst.msk [vmem:[%s4 + $0x60] sm:$0xff] %vm706, %v702
  %720 = vst.msk [vmem:[%s4 + $0x68] sm:$0xff] %vm706, %v703
  %721 = vst.msk [vmem:[%s4 + $0x70] sm:$0xff] %vm706, %v704
  %722 = vst.msk [vmem:[%s4 + $0x78] sm:$0xff] %vm706, %v705
  // Predicated region
  $region18: #{csfm_forward.4} parent=0 // pred_check
    _
  $region19: #{csfm_forward.4} parent=0 // pred_check_branch
    %724 = sbr.rel (0) target = $region21
  $region20: #{csfm_forward.4} parent=0 // pred_region
    _
  $region21: #{csfm_forward.4} parent=0 // pred_fallthru
    _
  // Predicated region
  $region22: #{csfm_forward.4} parent=0 // pred_check
    _
  $region23: #{csfm_forward.4} parent=0 // pred_check_branch
    %726 = sbr.rel (0) target = $region25
  $region24: #{csfm_forward.4} parent=0 // pred_region
    _
  $region25: #{csfm_forward.4} parent=0 // pred_fallthru
    _

// kernel: csfm_forward.5
$region0: #{csfm_forward.5}
  #allocation0 [shape = 'u32[]', space=smem, size = 0x4, offset = 0x4, fixed_abs, tag = 'smem constant byte address 0x4 - core index']
  #allocation1 [shape = 'u32[144,128]{1,0:T(1,128)}', space=vmem, size = 0x12000, scoped, tag = 'internal scratch']
  %s0 = inlined_call_operand.vmem [shape: f32[512,36], index: 0, kind: input, shape index: {}]
  %s1 = inlined_call_operand.vmem [shape: f32[36,4], index: 1, kind: input, shape index: {}]
  %s2 = inlined_call_operand.vmem [shape: f32[1,4], index: 2, kind: input, shape index: {}]
  %s3 = inlined_call_operand.vmem [shape: f32[1,4], index: 3, kind: input, shape index: {}]
  %s4 = inlined_call_operand.vmem [shape: f32[512,4], index: 4, kind: output, shape index: {}]
  %s5 = sld [smem:[#allocation0]]
  $region26: #{csfm_forward.5} parent=0
    _
  %s7 = ssub.s32 1, %s5
  %s8 = scalar_select 0, %s7, %s5
  // Predicated region
  $region2: #{csfm_forward.5} parent=0 // pred_check
    _
  $region3: #{csfm_forward.5} parent=0 // pred_check_branch
    %10 = sbr.rel (0) target = $region5
  $region4: #{csfm_forward.5} parent=0 // pred_region
    _
  $region5: #{csfm_forward.5} parent=0 // pred_fallthru
    _
  // Predicated region
  $region6: #{csfm_forward.5} parent=0 // pred_check
    _
  $region7: #{csfm_forward.5} parent=0 // pred_check_branch
    %12 = sbr.rel (0) target = $region9
  $region8: #{csfm_forward.5} parent=0 // pred_region
    _
  $region9: #{csfm_forward.5} parent=0 // pred_fallthru
    _
  // Predicated region
  $region10: #{csfm_forward.5} parent=0 // pred_check
    _
  $region11: #{csfm_forward.5} parent=0 // pred_check_branch
    %14 = sbr.rel (0) target = $region13
  $region12: #{csfm_forward.5} parent=0 // pred_region
    _
  $region13: #{csfm_forward.5} parent=0 // pred_fallthru
    _
  // Predicated region
  $region14: #{csfm_forward.5} parent=0 // pred_check
    _
  $region15: #{csfm_forward.5} parent=0 // pred_check_branch
    %16 = sbr.rel (0) target = $region17
  $region16: #{csfm_forward.5} parent=0 // pred_region
    _
  $region17: #{csfm_forward.5} parent=0 // pred_fallthru
    _
  %v17 = vld [vmem:[%s0] sm:$0xff]
  %v18 = vld [vmem:[%s0 + $0x8] sm:$0xff]
  %v19 = vld [vmem:[%s0 + $0x10] sm:$0xff]
  %v20 = vld [vmem:[%s0 + $0x18] sm:$0xff]
  %v21 = vld [vmem:[%s0 + $0x20] sm:$0xff]
  %v22 = vld [vmem:[%s0 + $0x28] sm:$0xff]
  %v23 = vld [vmem:[%s0 + $0x30] sm:$0xff]
  %v24 = vld [vmem:[%s0 + $0x38] sm:$0xff]
  %v25 = vld [vmem:[%s0 + $0x40] sm:$0xff]
  %v26 = vld [vmem:[%s0 + $0x48] sm:$0xff]
  %v27 = vld [vmem:[%s0 + $0x50] sm:$0xff]
  %v28 = vld [vmem:[%s0 + $0x58] sm:$0xff]
  %v29 = vld [vmem:[%s0 + $0x60] sm:$0xff]
  %v30 = vld [vmem:[%s0 + $0x68] sm:$0xff]
  %v31 = vld [vmem:[%s0 + $0x70] sm:$0xff]
  %v32 = vld [vmem:[%s0 + $0x78] sm:$0xff]
  %v33 = vld [vmem:[%s0 + $0x80] sm:$0xff]
  %v34 = vld [vmem:[%s0 + $0x88] sm:$0xff]
  %v35 = vld [vmem:[%s0 + $0x90] sm:$0xff]
  %v36 = vld [vmem:[%s0 + $0x98] sm:$0xff]
  %v37 = vld [vmem:[%s0 + $0xa0] sm:$0xff]
  %v38 = vld [vmem:[%s0 + $0xa8] sm:$0xff]
  %v39 = vld [vmem:[%s0 + $0xb0] sm:$0xff]
  %v40 = vld [vmem:[%s0 + $0xb8] sm:$0xff]
  %v41 = vld [vmem:[%s0 + $0xc0] sm:$0xff]
  %v42 = vld [vmem:[%s0 + $0xc8] sm:$0xff]
  %v43 = vld [vmem:[%s0 + $0xd0] sm:$0xff]
  %v44 = vld [vmem:[%s0 + $0xd8] sm:$0xff]
  %v45 = vld [vmem:[%s0 + $0xe0] sm:$0xff]
  %v46 = vld [vmem:[%s0 + $0xe8] sm:$0xff]
  %v47 = vld [vmem:[%s0 + $0xf0] sm:$0xff]
  %v48 = vld [vmem:[%s0 + $0xf8] sm:$0xff]
  %v49 = vld [vmem:[%s0 + $0x100] sm:$0xff]
  %v50 = vld [vmem:[%s0 + $0x108] sm:$0xff]
  %v51 = vld [vmem:[%s0 + $0x110] sm:$0xff]
  %v52 = vld [vmem:[%s0 + $0x118] sm:$0xff]
  %v53 = vld [vmem:[%s0 + $0x120] sm:$0xff]
  %v54 = vld [vmem:[%s0 + $0x128] sm:$0xff]
  %v55 = vld [vmem:[%s0 + $0x130] sm:$0xff]
  %v56 = vld [vmem:[%s0 + $0x138] sm:$0xff]
  %v57 = vld [vmem:[%s0 + $0x140] sm:$0xff]
  %v58 = vld [vmem:[%s0 + $0x148] sm:$0xff]
  %v59 = vld [vmem:[%s0 + $0x150] sm:$0xff]
  %v60 = vld [vmem:[%s0 + $0x158] sm:$0xff]
  %v61 = vld [vmem:[%s0 + $0x160] sm:$0xff]
  %v62 = vld [vmem:[%s0 + $0x168] sm:$0xff]
  %v63 = vld [vmem:[%s0 + $0x170] sm:$0xff]
  %v64 = vld [vmem:[%s0 + $0x178] sm:$0xff]
  %v65 = vld [vmem:[%s0 + $0x180] sm:$0xff]
  %v66 = vld [vmem:[%s0 + $0x188] sm:$0xff]
  %v67 = vld [vmem:[%s0 + $0x190] sm:$0xff]
  %v68 = vld [vmem:[%s0 + $0x198] sm:$0xff]
  %v69 = vld [vmem:[%s0 + $0x1a0] sm:$0xff]
  %v70 = vld [vmem:[%s0 + $0x1a8] sm:$0xff]
  %v71 = vld [vmem:[%s0 + $0x1b0] sm:$0xff]
  %v72 = vld [vmem:[%s0 + $0x1b8] sm:$0xff]
  %v73 = vld [vmem:[%s0 + $0x1c0] sm:$0xff]
  %v74 = vld [vmem:[%s0 + $0x1c8] sm:$0xff]
  %v75 = vld [vmem:[%s0 + $0x1d0] sm:$0xff]
  %v76 = vld [vmem:[%s0 + $0x1d8] sm:$0xff]
  %v77 = vld [vmem:[%s0 + $0x1e0] sm:$0xff]
  %v78 = vld [vmem:[%s0 + $0x1e8] sm:$0xff]
  %v79 = vld [vmem:[%s0 + $0x1f0] sm:$0xff]
  %v80 = vld [vmem:[%s0 + $0x1f8] sm:$0xff]
  %v81 = vld [vmem:[%s1] sm:$0xff]
  %v82 = vld [vmem:[%s1 + $0x8] sm:$0xff]
  %v83 = vld [vmem:[%s1 + $0x10] sm:$0xff]
  %v84 = vld [vmem:[%s1 + $0x18] sm:$0xff]
  %v85 = vld [vmem:[%s1 + $0x20] sm:$0xf]
  %vm86 = vcmask 293888
  %v88 = vsel %vm86, %v17, 0
  %v91 = vsel %vm86, %v18, 0
  %v94 = vsel %vm86, %v19, 0
  %v97 = vsel %vm86, %v20, 0
  %v100 = vsel %vm86, %v21, 0
  %v103 = vsel %vm86, %v22, 0
  %v106 = vsel %vm86, %v23, 0
  %v109 = vsel %vm86, %v24, 0
  %v112 = vsel %vm86, %v25, 0
  %v115 = vsel %vm86, %v26, 0
  %v118 = vsel %vm86, %v27, 0
  %v121 = vsel %vm86, %v28, 0
  %v124 = vsel %vm86, %v29, 0
  %v127 = vsel %vm86, %v30, 0
  %v130 = vsel %vm86, %v31, 0
  %v133 = vsel %vm86, %v32, 0
  %v136 = vsel %vm86, %v33, 0
  %v139 = vsel %vm86, %v34, 0
  %v142 = vsel %vm86, %v35, 0
  %v145 = vsel %vm86, %v36, 0
  %v148 = vsel %vm86, %v37, 0
  %v151 = vsel %vm86, %v38, 0
  %v154 = vsel %vm86, %v39, 0
  %v157 = vsel %vm86, %v40, 0
  %v160 = vsel %vm86, %v41, 0
  %v163 = vsel %vm86, %v42, 0
  %v166 = vsel %vm86, %v43, 0
  %v169 = vsel %vm86, %v44, 0
  %v172 = vsel %vm86, %v45, 0
  %v175 = vsel %vm86, %v46, 0
  %v178 = vsel %vm86, %v47, 0
  %v181 = vsel %vm86, %v48, 0
  %v184 = vsel %vm86, %v49, 0
  %v187 = vsel %vm86, %v50, 0
  %v190 = vsel %vm86, %v51, 0
  %v193 = vsel %vm86, %v52, 0
  %v196 = vsel %vm86, %v53, 0
  %v199 = vsel %vm86, %v54, 0
  %v202 = vsel %vm86, %v55, 0
  %v205 = vsel %vm86, %v56, 0
  %v208 = vsel %vm86, %v57, 0
  %v211 = vsel %vm86, %v58, 0
  %v214 = vsel %vm86, %v59, 0
  %v217 = vsel %vm86, %v60, 0
  %v220 = vsel %vm86, %v61, 0
  %v223 = vsel %vm86, %v62, 0
  %v226 = vsel %vm86, %v63, 0
  %v229 = vsel %vm86, %v64, 0
  %v232 = vsel %vm86, %v65, 0
  %v235 = vsel %vm86, %v66, 0
  %v238 = vsel %vm86, %v67, 0
  %v241 = vsel %vm86, %v68, 0
  %v244 = vsel %vm86, %v69, 0
  %v247 = vsel %vm86, %v70, 0
  %v250 = vsel %vm86, %v71, 0
  %v253 = vsel %vm86, %v72, 0
  %v256 = vsel %vm86, %v73, 0
  %v259 = vsel %vm86, %v74, 0
  %v262 = vsel %vm86, %v75, 0
  %v265 = vsel %vm86, %v76, 0
  %v268 = vsel %vm86, %v77, 0
  %v271 = vsel %vm86, %v78, 0
  %v274 = vsel %vm86, %v79, 0
  %v277 = vsel %vm86, %v80, 0
  %vm279 = vcmask 1043456
  %v281 = vsel %vm279, %v85, 0
  %283 = vmatprep.subr.mxu0 0.0
  %284 = vmatpush1.msra.mxu0 0.0
  %285 = vmatprep.subr.mxu0 0.0
  %286 = vmatpush1.msra.mxu0 0.0
  %287 = vmatprep.subr.mxu0 0.0
  %288 = vmatpush1.msra.mxu0 0.0
  %289 = vmatprep.subr.mxu0 0.0
  %290 = vmatpush1.msra.mxu0 0.0
  %291 = vmatprep.subr.mxu0 0.0
  %292 = vmatpush1.msra.mxu0 0.0
  %293 = vmatprep.subr.mxu0 0.0
  %294 = vmatpush1.msra.mxu0 0.0
  %295 = vmatprep.subr.mxu0 0.0
  %296 = vmatpush1.msra.mxu0 0.0
  %297 = vmatprep.subr.mxu0 0.0
  %298 = vmatpush1.msra.mxu0 0.0
  %299 = vmatprep.subr.mxu0 0.0
  %300 = vmatpush1.msra.mxu0 0.0
  %301 = vmatprep.subr.mxu0 0.0
  %302 = vmatpush1.msra.mxu0 0.0
  %303 = vmatprep.subr.mxu0 0.0
  %304 = vmatpush1.msra.mxu0 0.0
  %305 = vmatprep.subr.mxu0 0.0
  %306 = vmatpush1.msra.mxu0 %v281
  %307 = vmatprep.subr.mxu0 0.0
  %308 = vmatpush1.msra.mxu0 %v84
  %309 = vmatprep.subr.mxu0 0.0
  %310 = vmatpush1.msra.mxu0 %v83
  %311 = vmatprep.subr.mxu0 0.0
  %312 = vmatpush1.msra.mxu0 %v82
  %313 = vmatprep.subr.mxu0 0.0
  %314 = vmatpush1.msra.mxu0 %v81
  %315 = vmatprep.subr.mxu0 0.0
  %316 = vmatpush2.msra.mxu0 0.0
  %317 = vmatprep.subr.mxu0 0.0
  %318 = vmatpush2.msra.mxu0 0.0
  %319 = vmatprep.subr.mxu0 0.0
  %320 = vmatpush2.msra.mxu0 0.0
  %321 = vmatprep.subr.mxu0 0.0
  %322 = vmatpush2.msra.mxu0 0.0
  %323 = vmatprep.subr.mxu0 0.0
  %324 = vmatpush2.msra.mxu0 0.0
  %325 = vmatprep.subr.mxu0 0.0
  %326 = vmatpush2.msra.mxu0 0.0
  %327 = vmatprep.subr.mxu0 0.0
  %328 = vmatpush2.msra.mxu0 0.0
  %329 = vmatprep.subr.mxu0 0.0
  %330 = vmatpush2.msra.mxu0 0.0
  %331 = vmatprep.subr.mxu0 0.0
  %332 = vmatpush2.msra.mxu0 0.0
  %333 = vmatprep.subr.mxu0 0.0
  %334 = vmatpush2.msra.mxu0 0.0
  %335 = vmatprep.subr.mxu0 0.0
  %336 = vmatpush2.msra.mxu0 0.0
  %337 = vmatprep.subr.mxu0 0.0
  %338 = vmatpush2.msra.mxu0 0.0
  %339 = vmatprep.subr.mxu0 0.0
  %340 = vmatpush2.msra.mxu0 0.0
  %341 = vmatprep.subr.mxu0 0.0
  %342 = vmatpush2.msra.mxu0 0.0
  %343 = vmatprep.subr.mxu0 0.0
  %344 = vmatpush2.msra.mxu0 0.0
  %345 = vmatprep.subr.mxu0 0.0
  %346 = vmatpush2.msra.mxu0 0.0
  %347 = vmatprep.mubr.f32.mxu0 0.0
  %348 = vmatmul.mubr.f32.gmra.mxu0 %v88
  %v349 = vpop.f32.mrf.mxu0
  %v350 = vadd.f32 0.0, %v349
  %v351 = vpop.f32.mrf.mxu0
  %352 = vmatprep.mubr.f32.mxu0 0.0
  %353 = vmatmul.mubr.f32.gmra.mxu0 %v91
  %v354 = vpop.f32.mrf.mxu0
  %v355 = vadd.f32 0.0, %v354
  %v356 = vpop.f32.mrf.mxu0
  %357 = vmatprep.mubr.f32.mxu0 0.0
  %358 = vmatmul.mubr.f32.gmra.mxu0 %v94
  %v359 = vpop.f32.mrf.mxu0
  %v360 = vadd.f32 0.0, %v359
  %v361 = vpop.f32.mrf.mxu0
  %362 = vmatprep.mubr.f32.mxu0 0.0
  %363 = vmatmul.mubr.f32.gmra.mxu0 %v97
  %v364 = vpop.f32.mrf.mxu0
  %v365 = vadd.f32 0.0, %v364
  %v366 = vpop.f32.mrf.mxu0
  %367 = vmatprep.mubr.f32.mxu0 0.0
  %368 = vmatmul.mubr.f32.gmra.mxu0 %v100
  %v369 = vpop.f32.mrf.mxu0
  %v370 = vadd.f32 0.0, %v369
  %v371 = vpop.f32.mrf.mxu0
  %372 = vmatprep.mubr.f32.mxu0 0.0
  %373 = vmatmul.mubr.f32.gmra.mxu0 %v103
  %v374 = vpop.f32.mrf.mxu0
  %v375 = vadd.f32 0.0, %v374
  %v376 = vpop.f32.mrf.mxu0
  %377 = vmatprep.mubr.f32.mxu0 0.0
  %378 = vmatmul.mubr.f32.gmra.mxu0 %v106
  %v379 = vpop.f32.mrf.mxu0
  %v380 = vadd.f32 0.0, %v379
  %v381 = vpop.f32.mrf.mxu0
  %382 = vmatprep.mubr.f32.mxu0 0.0
  %383 = vmatmul.mubr.f32.gmra.mxu0 %v109
  %v384 = vpop.f32.mrf.mxu0
  %v385 = vadd.f32 0.0, %v384
  %v386 = vpop.f32.mrf.mxu0
  %387 = vmatprep.mubr.f32.mxu0 0.0
  %388 = vmatmul.mubr.f32.gmra.mxu0 %v112
  %v389 = vpop.f32.mrf.mxu0
  %v390 = vadd.f32 0.0, %v389
  %v391 = vpop.f32.mrf.mxu0
  %392 = vmatprep.mubr.f32.mxu0 0.0
  %393 = vmatmul.mubr.f32.gmra.mxu0 %v115
  %v394 = vpop.f32.mrf.mxu0
  %v395 = vadd.f32 0.0, %v394
  %v396 = vpop.f32.mrf.mxu0
  %397 = vmatprep.mubr.f32.mxu0 0.0
  %398 = vmatmul.mubr.f32.gmra.mxu0 %v118
  %v399 = vpop.f32.mrf.mxu0
  %v400 = vadd.f32 0.0, %v399
  %v401 = vpop.f32.mrf.mxu0
  %402 = vmatprep.mubr.f32.mxu0 0.0
  %403 = vmatmul.mubr.f32.gmra.mxu0 %v121
  %v404 = vpop.f32.mrf.mxu0
  %v405 = vadd.f32 0.0, %v404
  %v406 = vpop.f32.mrf.mxu0
  %407 = vmatprep.mubr.f32.mxu0 0.0
  %408 = vmatmul.mubr.f32.gmra.mxu0 %v124
  %v409 = vpop.f32.mrf.mxu0
  %v410 = vadd.f32 0.0, %v409
  %v411 = vpop.f32.mrf.mxu0
  %412 = vmatprep.mubr.f32.mxu0 0.0
  %413 = vmatmul.mubr.f32.gmra.mxu0 %v127
  %v414 = vpop.f32.mrf.mxu0
  %v415 = vadd.f32 0.0, %v414
  %v416 = vpop.f32.mrf.mxu0
  %417 = vmatprep.mubr.f32.mxu0 0.0
  %418 = vmatmul.mubr.f32.gmra.mxu0 %v130
  %v419 = vpop.f32.mrf.mxu0
  %v420 = vadd.f32 0.0, %v419
  %v421 = vpop.f32.mrf.mxu0
  %422 = vmatprep.mubr.f32.mxu0 0.0
  %423 = vmatmul.mubr.f32.gmra.mxu0 %v133
  %v424 = vpop.f32.mrf.mxu0
  %v425 = vadd.f32 0.0, %v424
  %v426 = vpop.f32.mrf.mxu0
  %427 = vmatprep.mubr.f32.mxu0 0.0
  %428 = vmatmul.mubr.f32.gmra.mxu0 %v136
  %v429 = vpop.f32.mrf.mxu0
  %v430 = vadd.f32 0.0, %v429
  %v431 = vpop.f32.mrf.mxu0
  %432 = vmatprep.mubr.f32.mxu0 0.0
  %433 = vmatmul.mubr.f32.gmra.mxu0 %v139
  %v434 = vpop.f32.mrf.mxu0
  %v435 = vadd.f32 0.0, %v434
  %v436 = vpop.f32.mrf.mxu0
  %437 = vmatprep.mubr.f32.mxu0 0.0
  %438 = vmatmul.mubr.f32.gmra.mxu0 %v142
  %v439 = vpop.f32.mrf.mxu0
  %v440 = vadd.f32 0.0, %v439
  %v441 = vpop.f32.mrf.mxu0
  %442 = vmatprep.mubr.f32.mxu0 0.0
  %443 = vmatmul.mubr.f32.gmra.mxu0 %v145
  %v444 = vpop.f32.mrf.mxu0
  %v445 = vadd.f32 0.0, %v444
  %v446 = vpop.f32.mrf.mxu0
  %447 = vmatprep.mubr.f32.mxu0 0.0
  %448 = vmatmul.mubr.f32.gmra.mxu0 %v148
  %v449 = vpop.f32.mrf.mxu0
  %v450 = vadd.f32 0.0, %v449
  %v451 = vpop.f32.mrf.mxu0
  %452 = vmatprep.mubr.f32.mxu0 0.0
  %453 = vmatmul.mubr.f32.gmra.mxu0 %v151
  %v454 = vpop.f32.mrf.mxu0
  %v455 = vadd.f32 0.0, %v454
  %v456 = vpop.f32.mrf.mxu0
  %457 = vmatprep.mubr.f32.mxu0 0.0
  %458 = vmatmul.mubr.f32.gmra.mxu0 %v154
  %v459 = vpop.f32.mrf.mxu0
  %v460 = vadd.f32 0.0, %v459
  %v461 = vpop.f32.mrf.mxu0
  %462 = vmatprep.mubr.f32.mxu0 0.0
  %463 = vmatmul.mubr.f32.gmra.mxu0 %v157
  %v464 = vpop.f32.mrf.mxu0
  %v465 = vadd.f32 0.0, %v464
  %v466 = vpop.f32.mrf.mxu0
  %467 = vmatprep.mubr.f32.mxu0 0.0
  %468 = vmatmul.mubr.f32.gmra.mxu0 %v160
  %v469 = vpop.f32.mrf.mxu0
  %v470 = vadd.f32 0.0, %v469
  %v471 = vpop.f32.mrf.mxu0
  %472 = vmatprep.mubr.f32.mxu0 0.0
  %473 = vmatmul.mubr.f32.gmra.mxu0 %v163
  %v474 = vpop.f32.mrf.mxu0
  %v475 = vadd.f32 0.0, %v474
  %v476 = vpop.f32.mrf.mxu0
  %477 = vmatprep.mubr.f32.mxu0 0.0
  %478 = vmatmul.mubr.f32.gmra.mxu0 %v166
  %v479 = vpop.f32.mrf.mxu0
  %v480 = vadd.f32 0.0, %v479
  %v481 = vpop.f32.mrf.mxu0
  %482 = vmatprep.mubr.f32.mxu0 0.0
  %483 = vmatmul.mubr.f32.gmra.mxu0 %v169
  %v484 = vpop.f32.mrf.mxu0
  %v485 = vadd.f32 0.0, %v484
  %v486 = vpop.f32.mrf.mxu0
  %487 = vmatprep.mubr.f32.mxu0 0.0
  %488 = vmatmul.mubr.f32.gmra.mxu0 %v172
  %v489 = vpop.f32.mrf.mxu0
  %v490 = vadd.f32 0.0, %v489
  %v491 = vpop.f32.mrf.mxu0
  %492 = vmatprep.mubr.f32.mxu0 0.0
  %493 = vmatmul.mubr.f32.gmra.mxu0 %v175
  %v494 = vpop.f32.mrf.mxu0
  %v495 = vadd.f32 0.0, %v494
  %v496 = vpop.f32.mrf.mxu0
  %497 = vmatprep.mubr.f32.mxu0 0.0
  %498 = vmatmul.mubr.f32.gmra.mxu0 %v178
  %v499 = vpop.f32.mrf.mxu0
  %v500 = vadd.f32 0.0, %v499
  %v501 = vpop.f32.mrf.mxu0
  %502 = vmatprep.mubr.f32.mxu0 0.0
  %503 = vmatmul.mubr.f32.gmra.mxu0 %v181
  %v504 = vpop.f32.mrf.mxu0
  %v505 = vadd.f32 0.0, %v504
  %v506 = vpop.f32.mrf.mxu0
  %507 = vmatprep.mubr.f32.mxu0 0.0
  %508 = vmatmul.mubr.f32.gmra.mxu0 %v184
  %v509 = vpop.f32.mrf.mxu0
  %v510 = vadd.f32 0.0, %v509
  %v511 = vpop.f32.mrf.mxu0
  %512 = vmatprep.mubr.f32.mxu0 0.0
  %513 = vmatmul.mubr.f32.gmra.mxu0 %v187
  %v514 = vpop.f32.mrf.mxu0
  %v515 = vadd.f32 0.0, %v514
  %v516 = vpop.f32.mrf.mxu0
  %517 = vmatprep.mubr.f32.mxu0 0.0
  %518 = vmatmul.mubr.f32.gmra.mxu0 %v190
  %v519 = vpop.f32.mrf.mxu0
  %v520 = vadd.f32 0.0, %v519
  %v521 = vpop.f32.mrf.mxu0
  %522 = vmatprep.mubr.f32.mxu0 0.0
  %523 = vmatmul.mubr.f32.gmra.mxu0 %v193
  %v524 = vpop.f32.mrf.mxu0
  %v525 = vadd.f32 0.0, %v524
  %v526 = vpop.f32.mrf.mxu0
  %527 = vmatprep.mubr.f32.mxu0 0.0
  %528 = vmatmul.mubr.f32.gmra.mxu0 %v196
  %v529 = vpop.f32.mrf.mxu0
  %v530 = vadd.f32 0.0, %v529
  %v531 = vpop.f32.mrf.mxu0
  %532 = vmatprep.mubr.f32.mxu0 0.0
  %533 = vmatmul.mubr.f32.gmra.mxu0 %v199
  %v534 = vpop.f32.mrf.mxu0
  %v535 = vadd.f32 0.0, %v534
  %v536 = vpop.f32.mrf.mxu0
  %537 = vmatprep.mubr.f32.mxu0 0.0
  %538 = vmatmul.mubr.f32.gmra.mxu0 %v202
  %v539 = vpop.f32.mrf.mxu0
  %v540 = vadd.f32 0.0, %v539
  %v541 = vpop.f32.mrf.mxu0
  %542 = vmatprep.mubr.f32.mxu0 0.0
  %543 = vmatmul.mubr.f32.gmra.mxu0 %v205
  %v544 = vpop.f32.mrf.mxu0
  %v545 = vadd.f32 0.0, %v544
  %v546 = vpop.f32.mrf.mxu0
  %547 = vmatprep.mubr.f32.mxu0 0.0
  %548 = vmatmul.mubr.f32.gmra.mxu0 %v208
  %v549 = vpop.f32.mrf.mxu0
  %v550 = vadd.f32 0.0, %v549
  %v551 = vpop.f32.mrf.mxu0
  %552 = vmatprep.mubr.f32.mxu0 0.0
  %553 = vmatmul.mubr.f32.gmra.mxu0 %v211
  %v554 = vpop.f32.mrf.mxu0
  %v555 = vadd.f32 0.0, %v554
  %v556 = vpop.f32.mrf.mxu0
  %557 = vmatprep.mubr.f32.mxu0 0.0
  %558 = vmatmul.mubr.f32.gmra.mxu0 %v214
  %v559 = vpop.f32.mrf.mxu0
  %v560 = vadd.f32 0.0, %v559
  %v561 = vpop.f32.mrf.mxu0
  %562 = vmatprep.mubr.f32.mxu0 0.0
  %563 = vmatmul.mubr.f32.gmra.mxu0 %v217
  %v564 = vpop.f32.mrf.mxu0
  %v565 = vadd.f32 0.0, %v564
  %v566 = vpop.f32.mrf.mxu0
  %567 = vmatprep.mubr.f32.mxu0 0.0
  %568 = vmatmul.mubr.f32.gmra.mxu0 %v220
  %v569 = vpop.f32.mrf.mxu0
  %v570 = vadd.f32 0.0, %v569
  %v571 = vpop.f32.mrf.mxu0
  %572 = vmatprep.mubr.f32.mxu0 0.0
  %573 = vmatmul.mubr.f32.gmra.mxu0 %v223
  %v574 = vpop.f32.mrf.mxu0
  %v575 = vadd.f32 0.0, %v574
  %v576 = vpop.f32.mrf.mxu0
  %577 = vmatprep.mubr.f32.mxu0 0.0
  %578 = vmatmul.mubr.f32.gmra.mxu0 %v226
  %v579 = vpop.f32.mrf.mxu0
  %v580 = vadd.f32 0.0, %v579
  %v581 = vpop.f32.mrf.mxu0
  %582 = vmatprep.mubr.f32.mxu0 0.0
  %583 = vmatmul.mubr.f32.gmra.mxu0 %v229
  %v584 = vpop.f32.mrf.mxu0
  %v585 = vadd.f32 0.0, %v584
  %v586 = vpop.f32.mrf.mxu0
  %587 = vmatprep.mubr.f32.mxu0 0.0
  %588 = vmatmul.mubr.f32.gmra.mxu0 %v232
  %v589 = vpop.f32.mrf.mxu0
  %v590 = vadd.f32 0.0, %v589
  %v591 = vpop.f32.mrf.mxu0
  %592 = vmatprep.mubr.f32.mxu0 0.0
  %593 = vmatmul.mubr.f32.gmra.mxu0 %v235
  %v594 = vpop.f32.mrf.mxu0
  %v595 = vadd.f32 0.0, %v594
  %v596 = vpop.f32.mrf.mxu0
  %597 = vmatprep.mubr.f32.mxu0 0.0
  %598 = vmatmul.mubr.f32.gmra.mxu0 %v238
  %v599 = vpop.f32.mrf.mxu0
  %v600 = vadd.f32 0.0, %v599
  %v601 = vpop.f32.mrf.mxu0
  %602 = vmatprep.mubr.f32.mxu0 0.0
  %603 = vmatmul.mubr.f32.gmra.mxu0 %v241
  %v604 = vpop.f32.mrf.mxu0
  %v605 = vadd.f32 0.0, %v604
  %v606 = vpop.f32.mrf.mxu0
  %607 = vmatprep.mubr.f32.mxu0 0.0
  %608 = vmatmul.mubr.f32.gmra.mxu0 %v244
  %v609 = vpop.f32.mrf.mxu0
  %v610 = vadd.f32 0.0, %v609
  %v611 = vpop.f32.mrf.mxu0
  %612 = vmatprep.mubr.f32.mxu0 0.0
  %613 = vmatmul.mubr.f32.gmra.mxu0 %v247
  %v614 = vpop.f32.mrf.mxu0
  %v615 = vadd.f32 0.0, %v614
  %v616 = vpop.f32.mrf.mxu0
  %617 = vmatprep.mubr.f32.mxu0 0.0
  %618 = vmatmul.mubr.f32.gmra.mxu0 %v250
  %v619 = vpop.f32.mrf.mxu0
  %v620 = vadd.f32 0.0, %v619
  %v621 = vpop.f32.mrf.mxu0
  %622 = vmatprep.mubr.f32.mxu0 0.0
  %623 = vmatmul.mubr.f32.gmra.mxu0 %v253
  %v624 = vpop.f32.mrf.mxu0
  %v625 = vadd.f32 0.0, %v624
  %v626 = vpop.f32.mrf.mxu0
  %627 = vmatprep.mubr.f32.mxu0 0.0
  %628 = vmatmul.mubr.f32.gmra.mxu0 %v256
  %v629 = vpop.f32.mrf.mxu0
  %v630 = vadd.f32 0.0, %v629
  %v631 = vpop.f32.mrf.mxu0
  %632 = vmatprep.mubr.f32.mxu0 0.0
  %633 = vmatmul.mubr.f32.gmra.mxu0 %v259
  %v634 = vpop.f32.mrf.mxu0
  %v635 = vadd.f32 0.0, %v634
  %v636 = vpop.f32.mrf.mxu0
  %637 = vmatprep.mubr.f32.mxu0 0.0
  %638 = vmatmul.mubr.f32.gmra.mxu0 %v262
  %v639 = vpop.f32.mrf.mxu0
  %v640 = vadd.f32 0.0, %v639
  %v641 = vpop.f32.mrf.mxu0
  %642 = vmatprep.mubr.f32.mxu0 0.0
  %643 = vmatmul.mubr.f32.gmra.mxu0 %v265
  %v644 = vpop.f32.mrf.mxu0
  %v645 = vadd.f32 0.0, %v644
  %v646 = vpop.f32.mrf.mxu0
  %647 = vmatprep.mubr.f32.mxu0 0.0
  %648 = vmatmul.mubr.f32.gmra.mxu0 %v268
  %v649 = vpop.f32.mrf.mxu0
  %v650 = vadd.f32 0.0, %v649
  %v651 = vpop.f32.mrf.mxu0
  %652 = vmatprep.mubr.f32.mxu0 0.0
  %653 = vmatmul.mubr.f32.gmra.mxu0 %v271
  %v654 = vpop.f32.mrf.mxu0
  %v655 = vadd.f32 0.0, %v654
  %v656 = vpop.f32.mrf.mxu0
  %657 = vmatprep.mubr.f32.mxu0 0.0
  %658 = vmatmul.mubr.f32.gmra.mxu0 %v274
  %v659 = vpop.f32.mrf.mxu0
  %v660 = vadd.f32 0.0, %v659
  %v661 = vpop.f32.mrf.mxu0
  %662 = vmatprep.mubr.f32.mxu0 0.0
  %663 = vmatmul.mubr.f32.gmra.mxu0 %v277
  %v664 = vpop.f32.mrf.mxu0
  %v665 = vadd.f32 0.0, %v664
  %v666 = vpop.f32.mrf.mxu0
  %667 = vdwg.mxu0
  %v668 = vld [vmem:[%s2] sm:$0x1]
  %v670 = vlaneseq
  %v671 = vshrl.u32 %v670, 7
  %v672 = vsub.s32 0, %v671
  %v673 = vrot.slane %v668, %v672
  %v675 = vmul.f32 %v350, %v673
  %v676 = vmul.f32 %v355, %v673
  %v677 = vmul.f32 %v360, %v673
  %v678 = vmul.f32 %v365, %v673
  %v679 = vmul.f32 %v370, %v673
  %v680 = vmul.f32 %v375, %v673
  %v681 = vmul.f32 %v380, %v673
  %v682 = vmul.f32 %v385, %v673
  %v683 = vmul.f32 %v390, %v673
  %v684 = vmul.f32 %v395, %v673
  %v685 = vmul.f32 %v400, %v673
  %v686 = vmul.f32 %v405, %v673
  %v687 = vmul.f32 %v410, %v673
  %v688 = vmul.f32 %v415, %v673
  %v689 = vmul.f32 %v420, %v673
  %v690 = vmul.f32 %v425, %v673
  %v691 = vmul.f32 %v430, %v673
  %v692 = vmul.f32 %v435, %v673
  %v693 = vmul.f32 %v440, %v673
  %v694 = vmul.f32 %v445, %v673
  %v695 = vmul.f32 %v450, %v673
  %v696 = vmul.f32 %v455, %v673
  %v697 = vmul.f32 %v460, %v673
  %v698 = vmul.f32 %v465, %v673
  %v699 = vmul.f32 %v470, %v673
  %v700 = vmul.f32 %v475, %v673
  %v701 = vmul.f32 %v480, %v673
  %v702 = vmul.f32 %v485, %v673
  %v703 = vmul.f32 %v490, %v673
  %v704 = vmul.f32 %v495, %v673
  %v705 = vmul.f32 %v500, %v673
  %v706 = vmul.f32 %v505, %v673
  %v707 = vmul.f32 %v510, %v673
  %v708 = vmul.f32 %v515, %v673
  %v709 = vmul.f32 %v520, %v673
  %v710 = vmul.f32 %v525, %v673
  %v711 = vmul.f32 %v530, %v673
  %v712 = vmul.f32 %v535, %v673
  %v713 = vmul.f32 %v540, %v673
  %v714 = vmul.f32 %v545, %v673
  %v715 = vmul.f32 %v550, %v673
  %v716 = vmul.f32 %v555, %v673
  %v717 = vmul.f32 %v560, %v673
  %v718 = vmul.f32 %v565, %v673
  %v719 = vmul.f32 %v570, %v673
  %v720 = vmul.f32 %v575, %v673
  %v721 = vmul.f32 %v580, %v673
  %v722 = vmul.f32 %v585, %v673
  %v723 = vmul.f32 %v590, %v673
  %v724 = vmul.f32 %v595, %v673
  %v725 = vmul.f32 %v600, %v673
  %v726 = vmul.f32 %v605, %v673
  %v727 = vmul.f32 %v610, %v673
  %v728 = vmul.f32 %v615, %v673
  %v729 = vmul.f32 %v620, %v673
  %v730 = vmul.f32 %v625, %v673
  %v731 = vmul.f32 %v630, %v673
  %v732 = vmul.f32 %v635, %v673
  %v733 = vmul.f32 %v640, %v673
  %v734 = vmul.f32 %v645, %v673
  %v735 = vmul.f32 %v650, %v673
  %v736 = vmul.f32 %v655, %v673
  %v737 = vmul.f32 %v660, %v673
  %v738 = vmul.f32 %v665, %v673
  %v739 = vld [vmem:[%s3] sm:$0x1]
  %v741 = vlaneseq
  %v742 = vshrl.u32 %v741, 7
  %v743 = vsub.s32 0, %v742
  %v744 = vrot.slane %v739, %v743
  %v746 = vadd.f32 %v675, %v744
  %v747 = vadd.f32 %v676, %v744
  %v748 = vadd.f32 %v677, %v744
  %v749 = vadd.f32 %v678, %v744
  %v750 = vadd.f32 %v679, %v744
  %v751 = vadd.f32 %v680, %v744
  %v752 = vadd.f32 %v681, %v744
  %v753 = vadd.f32 %v682, %v744
  %v754 = vadd.f32 %v683, %v744
  %v755 = vadd.f32 %v684, %v744
  %v756 = vadd.f32 %v685, %v744
  %v757 = vadd.f32 %v686, %v744
  %v758 = vadd.f32 %v687, %v744
  %v759 = vadd.f32 %v688, %v744
  %v760 = vadd.f32 %v689, %v744
  %v761 = vadd.f32 %v690, %v744
  %v762 = vadd.f32 %v691, %v744
  %v763 = vadd.f32 %v692, %v744
  %v764 = vadd.f32 %v693, %v744
  %v765 = vadd.f32 %v694, %v744
  %v766 = vadd.f32 %v695, %v744
  %v767 = vadd.f32 %v696, %v744
  %v768 = vadd.f32 %v697, %v744
  %v769 = vadd.f32 %v698, %v744
  %v770 = vadd.f32 %v699, %v744
  %v771 = vadd.f32 %v700, %v744
  %v772 = vadd.f32 %v701, %v744
  %v773 = vadd.f32 %v702, %v744
  %v774 = vadd.f32 %v703, %v744
  %v775 = vadd.f32 %v704, %v744
  %v776 = vadd.f32 %v705, %v744
  %v777 = vadd.f32 %v706, %v744
  %v778 = vadd.f32 %v707, %v744
  %v779 = vadd.f32 %v708, %v744
  %v780 = vadd.f32 %v709, %v744
  %v781 = vadd.f32 %v710, %v744
  %v782 = vadd.f32 %v711, %v744
  %v783 = vadd.f32 %v712, %v744
  %v784 = vadd.f32 %v713, %v744
  %v785 = vadd.f32 %v714, %v744
  %v786 = vadd.f32 %v715, %v744
  %v787 = vadd.f32 %v716, %v744
  %v788 = vadd.f32 %v717, %v744
  %v789 = vadd.f32 %v718, %v744
  %v790 = vadd.f32 %v719, %v744
  %v791 = vadd.f32 %v720, %v744
  %v792 = vadd.f32 %v721, %v744
  %v793 = vadd.f32 %v722, %v744
  %v794 = vadd.f32 %v723, %v744
  %v795 = vadd.f32 %v724, %v744
  %v796 = vadd.f32 %v725, %v744
  %v797 = vadd.f32 %v726, %v744
  %v798 = vadd.f32 %v727, %v744
  %v799 = vadd.f32 %v728, %v744
  %v800 = vadd.f32 %v729, %v744
  %v801 = vadd.f32 %v730, %v744
  %v802 = vadd.f32 %v731, %v744
  %v803 = vadd.f32 %v732, %v744
  %v804 = vadd.f32 %v733, %v744
  %v805 = vadd.f32 %v734, %v744
  %v806 = vadd.f32 %v735, %v744
  %v807 = vadd.f32 %v736, %v744
  %v808 = vadd.f32 %v737, %v744
  %v809 = vadd.f32 %v738, %v744
  %v810 = vmul.f32 %v746, 0.5
  %v811 = vmul.f32 %v747, 0.5
  %v812 = vmul.f32 %v748, 0.5
  %v813 = vmul.f32 %v749, 0.5
  %v814 = vmul.f32 %v750, 0.5
  %v815 = vmul.f32 %v751, 0.5
  %v816 = vmul.f32 %v752, 0.5
  %v817 = vmul.f32 %v753, 0.5
  %v818 = vmul.f32 %v754, 0.5
  %v819 = vmul.f32 %v755, 0.5
  %v820 = vmul.f32 %v756, 0.5
  %v821 = vmul.f32 %v757, 0.5
  %v822 = vmul.f32 %v758, 0.5
  %v823 = vmul.f32 %v759, 0.5
  %v824 = vmul.f32 %v760, 0.5
  %v825 = vmul.f32 %v761, 0.5
  %v826 = vmul.f32 %v762, 0.5
  %v827 = vmul.f32 %v763, 0.5
  %v828 = vmul.f32 %v764, 0.5
  %v829 = vmul.f32 %v765, 0.5
  %v830 = vmul.f32 %v766, 0.5
  %v831 = vmul.f32 %v767, 0.5
  %v832 = vmul.f32 %v768, 0.5
  %v833 = vmul.f32 %v769, 0.5
  %v834 = vmul.f32 %v770, 0.5
  %v835 = vmul.f32 %v771, 0.5
  %v836 = vmul.f32 %v772, 0.5
  %v837 = vmul.f32 %v773, 0.5
  %v838 = vmul.f32 %v774, 0.5
  %v839 = vmul.f32 %v775, 0.5
  %v840 = vmul.f32 %v776, 0.5
  %v841 = vmul.f32 %v777, 0.5
  %v842 = vmul.f32 %v778, 0.5
  %v843 = vmul.f32 %v779, 0.5
  %v844 = vmul.f32 %v780, 0.5
  %v845 = vmul.f32 %v781, 0.5
  %v846 = vmul.f32 %v782, 0.5
  %v847 = vmul.f32 %v783, 0.5
  %v848 = vmul.f32 %v784, 0.5
  %v849 = vmul.f32 %v785, 0.5
  %v850 = vmul.f32 %v786, 0.5
  %v851 = vmul.f32 %v787, 0.5
  %v852 = vmul.f32 %v788, 0.5
  %v853 = vmul.f32 %v789, 0.5
  %v854 = vmul.f32 %v790, 0.5
  %v855 = vmul.f32 %v791, 0.5
  %v856 = vmul.f32 %v792, 0.5
  %v857 = vmul.f32 %v793, 0.5
  %v858 = vmul.f32 %v794, 0.5
  %v859 = vmul.f32 %v795, 0.5
  %v860 = vmul.f32 %v796, 0.5
  %v861 = vmul.f32 %v797, 0.5
  %v862 = vmul.f32 %v798, 0.5
  %v863 = vmul.f32 %v799, 0.5
  %v864 = vmul.f32 %v800, 0.5
  %v865 = vmul.f32 %v801, 0.5
  %v866 = vmul.f32 %v802, 0.5
  %v867 = vmul.f32 %v803, 0.5
  %v868 = vmul.f32 %v804, 0.5
  %v869 = vmul.f32 %v805, 0.5
  %v870 = vmul.f32 %v806, 0.5
  %v871 = vmul.f32 %v807, 0.5
  %v872 = vmul.f32 %v808, 0.5
  %v873 = vmul.f32 %v809, 0.5
  %v874 = vmul.f32 %v746, 0.70710677
  %v875 = vmul.f32 %v747, 0.70710677
  %v876 = vmul.f32 %v748, 0.70710677
  %v877 = vmul.f32 %v749, 0.70710677
  %v878 = vmul.f32 %v750, 0.70710677
  %v879 = vmul.f32 %v751, 0.70710677
  %v880 = vmul.f32 %v752, 0.70710677
  %v881 = vmul.f32 %v753, 0.70710677
  %v882 = vmul.f32 %v754, 0.70710677
  %v883 = vmul.f32 %v755, 0.70710677
  %v884 = vmul.f32 %v756, 0.70710677
  %v885 = vmul.f32 %v757, 0.70710677
  %v886 = vmul.f32 %v758, 0.70710677
  %v887 = vmul.f32 %v759, 0.70710677
  %v888 = vmul.f32 %v760, 0.70710677
  %v889 = vmul.f32 %v761, 0.70710677
  %v890 = vmul.f32 %v762, 0.70710677
  %v891 = vmul.f32 %v763, 0.70710677
  %v892 = vmul.f32 %v764, 0.70710677
  %v893 = vmul.f32 %v765, 0.70710677
  %v894 = vmul.f32 %v766, 0.70710677
  %v895 = vmul.f32 %v767, 0.70710677
  %v896 = vmul.f32 %v768, 0.70710677
  %v897 = vmul.f32 %v769, 0.70710677
  %v898 = vmul.f32 %v770, 0.70710677
  %v899 = vmul.f32 %v771, 0.70710677
  %v900 = vmul.f32 %v772, 0.70710677
  %v901 = vmul.f32 %v773, 0.70710677
  %v902 = vmul.f32 %v774, 0.70710677
  %v903 = vmul.f32 %v775, 0.70710677
  %v904 = vmul.f32 %v776, 0.70710677
  %v905 = vmul.f32 %v777, 0.70710677
  %v906 = vmul.f32 %v778, 0.70710677
  %v907 = vmul.f32 %v779, 0.70710677
  %v908 = vmul.f32 %v780, 0.70710677
  %v909 = vmul.f32 %v781, 0.70710677
  %v910 = vmul.f32 %v782, 0.70710677
  %v911 = vmul.f32 %v783, 0.70710677
  %v912 = vmul.f32 %v784, 0.70710677
  %v913 = vmul.f32 %v785, 0.70710677
  %v914 = vmul.f32 %v786, 0.70710677
  %v915 = vmul.f32 %v787, 0.70710677
  %v916 = vmul.f32 %v788, 0.70710677
  %v917 = vmul.f32 %v789, 0.70710677
  %v918 = vmul.f32 %v790, 0.70710677
  %v919 = vmul.f32 %v791, 0.70710677
  %v920 = vmul.f32 %v792, 0.70710677
  %v921 = vmul.f32 %v793, 0.70710677
  %v922 = vmul.f32 %v794, 0.70710677
  %v923 = vmul.f32 %v795, 0.70710677
  %v924 = vmul.f32 %v796, 0.70710677
  %v925 = vmul.f32 %v797, 0.70710677
  %v926 = vmul.f32 %v798, 0.70710677
  %v927 = vmul.f32 %v799, 0.70710677
  %v928 = vmul.f32 %v800, 0.70710677
  %v929 = vmul.f32 %v801, 0.70710677
  %v930 = vmul.f32 %v802, 0.70710677
  %v931 = vmul.f32 %v803, 0.70710677
  %v932 = vmul.f32 %v804, 0.70710677
  %v933 = vmul.f32 %v805, 0.70710677
  %v934 = vmul.f32 %v806, 0.70710677
  %v935 = vmul.f32 %v807, 0.70710677
  %v936 = vmul.f32 %v808, 0.70710677
  %v937 = vmul.f32 %v809, 0.70710677
  %vm938 = vcmp.ge.f32.partialorder %v874, 0.0
  %vm939 = vcmp.ge.f32.partialorder %v875, 0.0
  %vm940 = vcmp.ge.f32.partialorder %v876, 0.0
  %vm941 = vcmp.ge.f32.partialorder %v877, 0.0
  %vm942 = vcmp.ge.f32.partialorder %v878, 0.0
  %vm943 = vcmp.ge.f32.partialorder %v879, 0.0
  %vm944 = vcmp.ge.f32.partialorder %v880, 0.0
  %vm945 = vcmp.ge.f32.partialorder %v881, 0.0
  %vm946 = vcmp.ge.f32.partialorder %v882, 0.0
  %vm947 = vcmp.ge.f32.partialorder %v883, 0.0
  %vm948 = vcmp.ge.f32.partialorder %v884, 0.0
  %vm949 = vcmp.ge.f32.partialorder %v885, 0.0
  %vm950 = vcmp.ge.f32.partialorder %v886, 0.0
  %vm951 = vcmp.ge.f32.partialorder %v887, 0.0
  %vm952 = vcmp.ge.f32.partialorder %v888, 0.0
  %vm953 = vcmp.ge.f32.partialorder %v889, 0.0
  %vm954 = vcmp.ge.f32.partialorder %v890, 0.0
  %vm955 = vcmp.ge.f32.partialorder %v891, 0.0
  %vm956 = vcmp.ge.f32.partialorder %v892, 0.0
  %vm957 = vcmp.ge.f32.partialorder %v893, 0.0
  %vm958 = vcmp.ge.f32.partialorder %v894, 0.0
  %vm959 = vcmp.ge.f32.partialorder %v895, 0.0
  %vm960 = vcmp.ge.f32.partialorder %v896, 0.0
  %vm961 = vcmp.ge.f32.partialorder %v897, 0.0
  %vm962 = vcmp.ge.f32.partialorder %v898, 0.0
  %vm963 = vcmp.ge.f32.partialorder %v899, 0.0
  %vm964 = vcmp.ge.f32.partialorder %v900, 0.0
  %vm965 = vcmp.ge.f32.partialorder %v901, 0.0
  %vm966 = vcmp.ge.f32.partialorder %v902, 0.0
  %vm967 = vcmp.ge.f32.partialorder %v903, 0.0
  %vm968 = vcmp.ge.f32.partialorder %v904, 0.0
  %vm969 = vcmp.ge.f32.partialorder %v905, 0.0
  %vm970 = vcmp.ge.f32.partialorder %v906, 0.0
  %vm971 = vcmp.ge.f32.partialorder %v907, 0.0
  %vm972 = vcmp.ge.f32.partialorder %v908, 0.0
  %vm973 = vcmp.ge.f32.partialorder %v909, 0.0
  %vm974 = vcmp.ge.f32.partialorder %v910, 0.0
  %vm975 = vcmp.ge.f32.partialorder %v911, 0.0
  %vm976 = vcmp.ge.f32.partialorder %v912, 0.0
  %vm977 = vcmp.ge.f32.partialorder %v913, 0.0
  %vm978 = vcmp.ge.f32.partialorder %v914, 0.0
  %vm979 = vcmp.ge.f32.partialorder %v915, 0.0
  %vm980 = vcmp.ge.f32.partialorder %v916, 0.0
  %vm981 = vcmp.ge.f32.partialorder %v917, 0.0
  %vm982 = vcmp.ge.f32.partialorder %v918, 0.0
  %vm983 = vcmp.ge.f32.partialorder %v919, 0.0
  %vm984 = vcmp.ge.f32.partialorder %v920, 0.0
  %vm985 = vcmp.ge.f32.partialorder %v921, 0.0
  %vm986 = vcmp.ge.f32.partialorder %v922, 0.0
  %vm987 = vcmp.ge.f32.partialorder %v923, 0.0
  %vm988 = vcmp.ge.f32.partialorder %v924, 0.0
  %vm989 = vcmp.ge.f32.partialorder %v925, 0.0
  %vm990 = vcmp.ge.f32.partialorder %v926, 0.0
  %vm991 = vcmp.ge.f32.partialorder %v927, 0.0
  %vm992 = vcmp.ge.f32.partialorder %v928, 0.0
  %vm993 = vcmp.ge.f32.partialorder %v929, 0.0
  %vm994 = vcmp.ge.f32.partialorder %v930, 0.0
  %vm995 = vcmp.ge.f32.partialorder %v931, 0.0
  %vm996 = vcmp.ge.f32.partialorder %v932, 0.0
  %vm997 = vcmp.ge.f32.partialorder %v933, 0.0
  %vm998 = vcmp.ge.f32.partialorder %v934, 0.0
  %vm999 = vcmp.ge.f32.partialorder %v935, 0.0
  %vm1000 = vcmp.ge.f32.partialorder %v936, 0.0
  %vm1001 = vcmp.ge.f32.partialorder %v937, 0.0
  %v1002 = vsel %vm938, 1.0, -1.0
  %v1003 = vsel %vm939, 1.0, -1.0
  %v1004 = vsel %vm940, 1.0, -1.0
  %v1005 = vsel %vm941, 1.0, -1.0
  %v1006 = vsel %vm942, 1.0, -1.0
  %v1007 = vsel %vm943, 1.0, -1.0
  %v1008 = vsel %vm944, 1.0, -1.0
  %v1009 = vsel %vm945, 1.0, -1.0
  %v1010 = vsel %vm946, 1.0, -1.0
  %v1011 = vsel %vm947, 1.0, -1.0
  %v1012 = vsel %vm948, 1.0, -1.0
  %v1013 = vsel %vm949, 1.0, -1.0
  %v1014 = vsel %vm950, 1.0, -1.0
  %v1015 = vsel %vm951, 1.0, -1.0
  %v1016 = vsel %vm952, 1.0, -1.0
  %v1017 = vsel %vm953, 1.0, -1.0
  %v1018 = vsel %vm954, 1.0, -1.0
  %v1019 = vsel %vm955, 1.0, -1.0
  %v1020 = vsel %vm956, 1.0, -1.0
  %v1021 = vsel %vm957, 1.0, -1.0
  %v1022 = vsel %vm958, 1.0, -1.0
  %v1023 = vsel %vm959, 1.0, -1.0
  %v1024 = vsel %vm960, 1.0, -1.0
  %v1025 = vsel %vm961, 1.0, -1.0
  %v1026 = vsel %vm962, 1.0, -1.0
  %v1027 = vsel %vm963, 1.0, -1.0
  %v1028 = vsel %vm964, 1.0, -1.0
  %v1029 = vsel %vm965, 1.0, -1.0
  %v1030 = vsel %vm966, 1.0, -1.0
  %v1031 = vsel %vm967, 1.0, -1.0
  %v1032 = vsel %vm968, 1.0, -1.0
  %v1033 = vsel %vm969, 1.0, -1.0
  %v1034 = vsel %vm970, 1.0, -1.0
  %v1035 = vsel %vm971, 1.0, -1.0
  %v1036 = vsel %vm972, 1.0, -1.0
  %v1037 = vsel %vm973, 1.0, -1.0
  %v1038 = vsel %vm974, 1.0, -1.0
  %v1039 = vsel %vm975, 1.0, -1.0
  %v1040 = vsel %vm976, 1.0, -1.0
  %v1041 = vsel %vm977, 1.0, -1.0
  %v1042 = vsel %vm978, 1.0, -1.0
  %v1043 = vsel %vm979, 1.0, -1.0
  %v1044 = vsel %vm980, 1.0, -1.0
  %v1045 = vsel %vm981, 1.0, -1.0
  %v1046 = vsel %vm982, 1.0, -1.0
  %v1047 = vsel %vm983, 1.0, -1.0
  %v1048 = vsel %vm984, 1.0, -1.0
  %v1049 = vsel %vm985, 1.0, -1.0
  %v1050 = vsel %vm986, 1.0, -1.0
  %v1051 = vsel %vm987, 1.0, -1.0
  %v1052 = vsel %vm988, 1.0, -1.0
  %v1053 = vsel %vm989, 1.0, -1.0
  %v1054 = vsel %vm990, 1.0, -1.0
  %v1055 = vsel %vm991, 1.0, -1.0
  %v1056 = vsel %vm992, 1.0, -1.0
  %v1057 = vsel %vm993, 1.0, -1.0
  %v1058 = vsel %vm994, 1.0, -1.0
  %v1059 = vsel %vm995, 1.0, -1.0
  %v1060 = vsel %vm996, 1.0, -1.0
  %v1061 = vsel %vm997, 1.0, -1.0
  %v1062 = vsel %vm998, 1.0, -1.0
  %v1063 = vsel %vm999, 1.0, -1.0
  %v1064 = vsel %vm1000, 1.0, -1.0
  %v1065 = vsel %vm1001, 1.0, -1.0
  %v1066 = vand.u32 2147483647, %v874
  %v1067 = vand.u32 2147483647, %v875
  %v1068 = vand.u32 2147483647, %v876
  %v1069 = vand.u32 2147483647, %v877
  %v1070 = vand.u32 2147483647, %v878
  %v1071 = vand.u32 2147483647, %v879
  %v1072 = vand.u32 2147483647, %v880
  %v1073 = vand.u32 2147483647, %v881
  %v1074 = vand.u32 2147483647, %v882
  %v1075 = vand.u32 2147483647, %v883
  %v1076 = vand.u32 2147483647, %v884
  %v1077 = vand.u32 2147483647, %v885
  %v1078 = vand.u32 2147483647, %v886
  %v1079 = vand.u32 2147483647, %v887
  %v1080 = vand.u32 2147483647, %v888
  %v1081 = vand.u32 2147483647, %v889
  %v1082 = vand.u32 2147483647, %v890
  %v1083 = vand.u32 2147483647, %v891
  %v1084 = vand.u32 2147483647, %v892
  %v1085 = vand.u32 2147483647, %v893
  %v1086 = vand.u32 2147483647, %v894
  %v1087 = vand.u32 2147483647, %v895
  %v1088 = vand.u32 2147483647, %v896
  %v1089 = vand.u32 2147483647, %v897
  %v1090 = vand.u32 2147483647, %v898
  %v1091 = vand.u32 2147483647, %v899
  %v1092 = vand.u32 2147483647, %v900
  %v1093 = vand.u32 2147483647, %v901
  %v1094 = vand.u32 2147483647, %v902
  %v1095 = vand.u32 2147483647, %v903
  %v1096 = vand.u32 2147483647, %v904
  %v1097 = vand.u32 2147483647, %v905
  %v1098 = vand.u32 2147483647, %v906
  %v1099 = vand.u32 2147483647, %v907
  %v1100 = vand.u32 2147483647, %v908
  %v1101 = vand.u32 2147483647, %v909
  %v1102 = vand.u32 2147483647, %v910
  %v1103 = vand.u32 2147483647, %v911
  %v1104 = vand.u32 2147483647, %v912
  %v1105 = vand.u32 2147483647, %v913
  %v1106 = vand.u32 2147483647, %v914
  %v1107 = vand.u32 2147483647, %v915
  %v1108 = vand.u32 2147483647, %v916
  %v1109 = vand.u32 2147483647, %v917
  %v1110 = vand.u32 2147483647, %v918
  %v1111 = vand.u32 2147483647, %v919
  %v1112 = vand.u32 2147483647, %v920
  %v1113 = vand.u32 2147483647, %v921
  %v1114 = vand.u32 2147483647, %v922
  %v1115 = vand.u32 2147483647, %v923
  %v1116 = vand.u32 2147483647, %v924
  %v1117 = vand.u32 2147483647, %v925
  %v1118 = vand.u32 2147483647, %v926
  %v1119 = vand.u32 2147483647, %v927
  %v1120 = vand.u32 2147483647, %v928
  %v1121 = vand.u32 2147483647, %v929
  %v1122 = vand.u32 2147483647, %v930
  %v1123 = vand.u32 2147483647, %v931
  %v1124 = vand.u32 2147483647, %v932
  %v1125 = vand.u32 2147483647, %v933
  %v1126 = vand.u32 2147483647, %v934
  %v1127 = vand.u32 2147483647, %v935
  %v1128 = vand.u32 2147483647, %v936
  %v1129 = vand.u32 2147483647, %v937
  %v1130 = vmul.f32 %v1066, 0.3275911
  %v1131 = vmul.f32 %v1067, 0.3275911
  %v1132 = vmul.f32 %v1068, 0.3275911
  %v1133 = vmul.f32 %v1069, 0.3275911
  %v1134 = vmul.f32 %v1070, 0.3275911
  %v1135 = vmul.f32 %v1071, 0.3275911
  %v1136 = vmul.f32 %v1072, 0.3275911
  %v1137 = vmul.f32 %v1073, 0.3275911
  %v1138 = vmul.f32 %v1074, 0.3275911
  %v1139 = vmul.f32 %v1075, 0.3275911
  %v1140 = vmul.f32 %v1076, 0.3275911
  %v1141 = vmul.f32 %v1077, 0.3275911
  %v1142 = vmul.f32 %v1078, 0.3275911
  %v1143 = vmul.f32 %v1079, 0.3275911
  %v1144 = vmul.f32 %v1080, 0.3275911
  %v1145 = vmul.f32 %v1081, 0.3275911
  %v1146 = vmul.f32 %v1082, 0.3275911
  %v1147 = vmul.f32 %v1083, 0.3275911
  %v1148 = vmul.f32 %v1084, 0.3275911
  %v1149 = vmul.f32 %v1085, 0.3275911
  %v1150 = vmul.f32 %v1086, 0.3275911
  %v1151 = vmul.f32 %v1087, 0.3275911
  %v1152 = vmul.f32 %v1088, 0.3275911
  %v1153 = vmul.f32 %v1089, 0.3275911
  %v1154 = vmul.f32 %v1090, 0.3275911
  %v1155 = vmul.f32 %v1091, 0.3275911
  %v1156 = vmul.f32 %v1092, 0.3275911
  %v1157 = vmul.f32 %v1093, 0.3275911
  %v1158 = vmul.f32 %v1094, 0.3275911
  %v1159 = vmul.f32 %v1095, 0.3275911
  %v1160 = vmul.f32 %v1096, 0.3275911
  %v1161 = vmul.f32 %v1097, 0.3275911
  %v1162 = vmul.f32 %v1098, 0.3275911
  %v1163 = vmul.f32 %v1099, 0.3275911
  %v1164 = vmul.f32 %v1100, 0.3275911
  %v1165 = vmul.f32 %v1101, 0.3275911
  %v1166 = vmul.f32 %v1102, 0.3275911
  %v1167 = vmul.f32 %v1103, 0.3275911
  %v1168 = vmul.f32 %v1104, 0.3275911
  %v1169 = vmul.f32 %v1105, 0.3275911
  %v1170 = vmul.f32 %v1106, 0.3275911
  %v1171 = vmul.f32 %v1107, 0.3275911
  %v1172 = vmul.f32 %v1108, 0.3275911
  %v1173 = vmul.f32 %v1109, 0.3275911
  %v1174 = vmul.f32 %v1110, 0.3275911
  %v1175 = vmul.f32 %v1111, 0.3275911
  %v1176 = vmul.f32 %v1112, 0.3275911
  %v1177 = vmul.f32 %v1113, 0.3275911
  %v1178 = vmul.f32 %v1114, 0.3275911
  %v1179 = vmul.f32 %v1115, 0.3275911
  %v1180 = vmul.f32 %v1116, 0.3275911
  %v1181 = vmul.f32 %v1117, 0.3275911
  %v1182 = vmul.f32 %v1118, 0.3275911
  %v1183 = vmul.f32 %v1119, 0.3275911
  %v1184 = vmul.f32 %v1120, 0.3275911
  %v1185 = vmul.f32 %v1121, 0.3275911
  %v1186 = vmul.f32 %v1122, 0.3275911
  %v1187 = vmul.f32 %v1123, 0.3275911
  %v1188 = vmul.f32 %v1124, 0.3275911
  %v1189 = vmul.f32 %v1125, 0.3275911
  %v1190 = vmul.f32 %v1126, 0.3275911
  %v1191 = vmul.f32 %v1127, 0.3275911
  %v1192 = vmul.f32 %v1128, 0.3275911
  %v1193 = vmul.f32 %v1129, 0.3275911
  %v1194 = vadd.f32 %v1130, 1.0
  %v1195 = vadd.f32 %v1131, 1.0
  %v1196 = vadd.f32 %v1132, 1.0
  %v1197 = vadd.f32 %v1133, 1.0
  %v1198 = vadd.f32 %v1134, 1.0
  %v1199 = vadd.f32 %v1135, 1.0
  %v1200 = vadd.f32 %v1136, 1.0
  %v1201 = vadd.f32 %v1137, 1.0
  %v1202 = vadd.f32 %v1138, 1.0
  %v1203 = vadd.f32 %v1139, 1.0
  %v1204 = vadd.f32 %v1140, 1.0
  %v1205 = vadd.f32 %v1141, 1.0
  %v1206 = vadd.f32 %v1142, 1.0
  %v1207 = vadd.f32 %v1143, 1.0
  %v1208 = vadd.f32 %v1144, 1.0
  %v1209 = vadd.f32 %v1145, 1.0
  %v1210 = vadd.f32 %v1146, 1.0
  %v1211 = vadd.f32 %v1147, 1.0
  %v1212 = vadd.f32 %v1148, 1.0
  %v1213 = vadd.f32 %v1149, 1.0
  %v1214 = vadd.f32 %v1150, 1.0
  %v1215 = vadd.f32 %v1151, 1.0
  %v1216 = vadd.f32 %v1152, 1.0
  %v1217 = vadd.f32 %v1153, 1.0
  %v1218 = vadd.f32 %v1154, 1.0
  %v1219 = vadd.f32 %v1155, 1.0
  %v1220 = vadd.f32 %v1156, 1.0
  %v1221 = vadd.f32 %v1157, 1.0
  %v1222 = vadd.f32 %v1158, 1.0
  %v1223 = vadd.f32 %v1159, 1.0
  %v1224 = vadd.f32 %v1160, 1.0
  %v1225 = vadd.f32 %v1161, 1.0
  %v1226 = vadd.f32 %v1162, 1.0
  %v1227 = vadd.f32 %v1163, 1.0
  %v1228 = vadd.f32 %v1164, 1.0
  %v1229 = vadd.f32 %v1165, 1.0
  %v1230 = vadd.f32 %v1166, 1.0
  %v1231 = vadd.f32 %v1167, 1.0
  %v1232 = vadd.f32 %v1168, 1.0
  %v1233 = vadd.f32 %v1169, 1.0
  %v1234 = vadd.f32 %v1170, 1.0
  %v1235 = vadd.f32 %v1171, 1.0
  %v1236 = vadd.f32 %v1172, 1.0
  %v1237 = vadd.f32 %v1173, 1.0
  %v1238 = vadd.f32 %v1174, 1.0
  %v1239 = vadd.f32 %v1175, 1.0
  %v1240 = vadd.f32 %v1176, 1.0
  %v1241 = vadd.f32 %v1177, 1.0
  %v1242 = vadd.f32 %v1178, 1.0
  %v1243 = vadd.f32 %v1179, 1.0
  %v1244 = vadd.f32 %v1180, 1.0
  %v1245 = vadd.f32 %v1181, 1.0
  %v1246 = vadd.f32 %v1182, 1.0
  %v1247 = vadd.f32 %v1183, 1.0
  %v1248 = vadd.f32 %v1184, 1.0
  %v1249 = vadd.f32 %v1185, 1.0
  %v1250 = vadd.f32 %v1186, 1.0
  %v1251 = vadd.f32 %v1187, 1.0
  %v1252 = vadd.f32 %v1188, 1.0
  %v1253 = vadd.f32 %v1189, 1.0
  %v1254 = vadd.f32 %v1190, 1.0
  %v1255 = vadd.f32 %v1191, 1.0
  %v1256 = vadd.f32 %v1192, 1.0
  %v1257 = vadd.f32 %v1193, 1.0
  %v1258 = vrcp.pop %v1194
  %v1259 = vmul.f32 1.0, %v1258
  %v1260 = vrcp.pop %v1195
  %v1261 = vmul.f32 1.0, %v1260
  %v1262 = vrcp.pop %v1196
  %v1263 = vmul.f32 1.0, %v1262
  %v1264 = vrcp.pop %v1197
  %v1265 = vmul.f32 1.0, %v1264
  %v1266 = vrcp.pop %v1198
  %v1267 = vmul.f32 1.0, %v1266
  %v1268 = vrcp.pop %v1199
  %v1269 = vmul.f32 1.0, %v1268
  %v1270 = vrcp.pop %v1200
  %v1271 = vmul.f32 1.0, %v1270
  %v1272 = vrcp.pop %v1201
  %v1273 = vmul.f32 1.0, %v1272
  %v1274 = vrcp.pop %v1202
  %v1275 = vmul.f32 1.0, %v1274
  %v1276 = vrcp.pop %v1203
  %v1277 = vmul.f32 1.0, %v1276
  %v1278 = vrcp.pop %v1204
  %v1279 = vmul.f32 1.0, %v1278
  %v1280 = vrcp.pop %v1205
  %v1281 = vmul.f32 1.0, %v1280
  %v1282 = vrcp.pop %v1206
  %v1283 = vmul.f32 1.0, %v1282
  %v1284 = vrcp.pop %v1207
  %v1285 = vmul.f32 1.0, %v1284
  %v1286 = vrcp.pop %v1208
  %v1287 = vmul.f32 1.0, %v1286
  %v1288 = vrcp.pop %v1209
  %v1289 = vmul.f32 1.0, %v1288
  %v1290 = vrcp.pop %v1210
  %v1291 = vmul.f32 1.0, %v1290
  %v1292 = vrcp.pop %v1211
  %v1293 = vmul.f32 1.0, %v1292
  %v1294 = vrcp.pop %v1212
  %v1295 = vmul.f32 1.0, %v1294
  %v1296 = vrcp.pop %v1213
  %v1297 = vmul.f32 1.0, %v1296
  %v1298 = vrcp.pop %v1214
  %v1299 = vmul.f32 1.0, %v1298
  %v1300 = vrcp.pop %v1215
  %v1301 = vmul.f32 1.0, %v1300
  %v1302 = vrcp.pop %v1216
  %v1303 = vmul.f32 1.0, %v1302
  %v1304 = vrcp.pop %v1217
  %v1305 = vmul.f32 1.0, %v1304
  %v1306 = vrcp.pop %v1218
  %v1307 = vmul.f32 1.0, %v1306
  %v1308 = vrcp.pop %v1219
  %v1309 = vmul.f32 1.0, %v1308
  %v1310 = vrcp.pop %v1220
  %v1311 = vmul.f32 1.0, %v1310
  %v1312 = vrcp.pop %v1221
  %v1313 = vmul.f32 1.0, %v1312
  %v1314 = vrcp.pop %v1222
  %v1315 = vmul.f32 1.0, %v1314
  %v1316 = vrcp.pop %v1223
  %v1317 = vmul.f32 1.0, %v1316
  %v1318 = vrcp.pop %v1224
  %v1319 = vmul.f32 1.0, %v1318
  %v1320 = vrcp.pop %v1225
  %v1321 = vmul.f32 1.0, %v1320
  %v1322 = vrcp.pop %v1226
  %v1323 = vmul.f32 1.0, %v1322
  %v1324 = vrcp.pop %v1227
  %v1325 = vmul.f32 1.0, %v1324
  %v1326 = vrcp.pop %v1228
  %v1327 = vmul.f32 1.0, %v1326
  %v1328 = vrcp.pop %v1229
  %v1329 = vmul.f32 1.0, %v1328
  %v1330 = vrcp.pop %v1230
  %v1331 = vmul.f32 1.0, %v1330
  %v1332 = vrcp.pop %v1231
  %v1333 = vmul.f32 1.0, %v1332
  %v1334 = vrcp.pop %v1232
  %v1335 = vmul.f32 1.0, %v1334
  %v1336 = vrcp.pop %v1233
  %v1337 = vmul.f32 1.0, %v1336
  %v1338 = vrcp.pop %v1234
  %v1339 = vmul.f32 1.0, %v1338
  %v1340 = vrcp.pop %v1235
  %v1341 = vmul.f32 1.0, %v1340
  %v1342 = vrcp.pop %v1236
  %v1343 = vmul.f32 1.0, %v1342
  %v1344 = vrcp.pop %v1237
  %v1345 = vmul.f32 1.0, %v1344
  %v1346 = vrcp.pop %v1238
  %v1347 = vmul.f32 1.0, %v1346
  %v1348 = vrcp.pop %v1239
  %v1349 = vmul.f32 1.0, %v1348
  %v1350 = vrcp.pop %v1240
  %v1351 = vmul.f32 1.0, %v1350
  %v1352 = vrcp.pop %v1241
  %v1353 = vmul.f32 1.0, %v1352
  %v1354 = vrcp.pop %v1242
  %v1355 = vmul.f32 1.0, %v1354
  %v1356 = vrcp.pop %v1243
  %v1357 = vmul.f32 1.0, %v1356
  %v1358 = vrcp.pop %v1244
  %v1359 = vmul.f32 1.0, %v1358
  %v1360 = vrcp.pop %v1245
  %v1361 = vmul.f32 1.0, %v1360
  %v1362 = vrcp.pop %v1246
  %v1363 = vmul.f32 1.0, %v1362
  %v1364 = vrcp.pop %v1247
  %v1365 = vmul.f32 1.0, %v1364
  %v1366 = vrcp.pop %v1248
  %v1367 = vmul.f32 1.0, %v1366
  %v1368 = vrcp.pop %v1249
  %v1369 = vmul.f32 1.0, %v1368
  %v1370 = vrcp.pop %v1250
  %v1371 = vmul.f32 1.0, %v1370
  %v1372 = vrcp.pop %v1251
  %v1373 = vmul.f32 1.0, %v1372
  %v1374 = vrcp.pop %v1252
  %v1375 = vmul.f32 1.0, %v1374
  %v1376 = vrcp.pop %v1253
  %v1377 = vmul.f32 1.0, %v1376
  %v1378 = vrcp.pop %v1254
  %v1379 = vmul.f32 1.0, %v1378
  %v1380 = vrcp.pop %v1255
  %v1381 = vmul.f32 1.0, %v1380
  %v1382 = vrcp.pop %v1256
  %v1383 = vmul.f32 1.0, %v1382
  %v1384 = vrcp.pop %v1257
  %v1385 = vmul.f32 1.0, %v1384
  %v1386 = vmul.f32 %v1259, 1.0614054
  %v1387 = vmul.f32 %v1261, 1.0614054
  %v1388 = vmul.f32 %v1263, 1.0614054
  %v1389 = vmul.f32 %v1265, 1.0614054
  %v1390 = vmul.f32 %v1267, 1.0614054
  %v1391 = vmul.f32 %v1269, 1.0614054
  %v1392 = vmul.f32 %v1271, 1.0614054
  %v1393 = vmul.f32 %v1273, 1.0614054
  %v1394 = vmul.f32 %v1275, 1.0614054
  %v1395 = vmul.f32 %v1277, 1.0614054
  %v1396 = vmul.f32 %v1279, 1.0614054
  %v1397 = vmul.f32 %v1281, 1.0614054
  %v1398 = vmul.f32 %v1283, 1.0614054
  %v1399 = vmul.f32 %v1285, 1.0614054
  %v1400 = vmul.f32 %v1287, 1.0614054
  %v1401 = vmul.f32 %v1289, 1.0614054
  %v1402 = vmul.f32 %v1291, 1.0614054
  %v1403 = vmul.f32 %v1293, 1.0614054
  %v1404 = vmul.f32 %v1295, 1.0614054
  %v1405 = vmul.f32 %v1297, 1.0614054
  %v1406 = vmul.f32 %v1299, 1.0614054
  %v1407 = vmul.f32 %v1301, 1.0614054
  %v1408 = vmul.f32 %v1303, 1.0614054
  %v1409 = vmul.f32 %v1305, 1.0614054
  %v1410 = vmul.f32 %v1307, 1.0614054
  %v1411 = vmul.f32 %v1309, 1.0614054
  %v1412 = vmul.f32 %v1311, 1.0614054
  %v1413 = vmul.f32 %v1313, 1.0614054
  %v1414 = vmul.f32 %v1315, 1.0614054
  %v1415 = vmul.f32 %v1317, 1.0614054
  %v1416 = vmul.f32 %v1319, 1.0614054
  %v1417 = vmul.f32 %v1321, 1.0614054
  %v1418 = vmul.f32 %v1323, 1.0614054
  %v1419 = vmul.f32 %v1325, 1.0614054
  %v1420 = vmul.f32 %v1327, 1.0614054
  %v1421 = vmul.f32 %v1329, 1.0614054
  %v1422 = vmul.f32 %v1331, 1.0614054
  %v1423 = vmul.f32 %v1333, 1.0614054
  %v1424 = vmul.f32 %v1335, 1.0614054
  %v1425 = vmul.f32 %v1337, 1.0614054
  %v1426 = vmul.f32 %v1339, 1.0614054
  %v1427 = vmul.f32 %v1341, 1.0614054
  %v1428 = vmul.f32 %v1343, 1.0614054
  %v1429 = vmul.f32 %v1345, 1.0614054
  %v1430 = vmul.f32 %v1347, 1.0614054
  %v1431 = vmul.f32 %v1349, 1.0614054
  %v1432 = vmul.f32 %v1351, 1.0614054
  %v1433 = vmul.f32 %v1353, 1.0614054
  %v1434 = vmul.f32 %v1355, 1.0614054
  %v1435 = vmul.f32 %v1357, 1.0614054
  %v1436 = vmul.f32 %v1359, 1.0614054
  %v1437 = vmul.f32 %v1361, 1.0614054
  %v1438 = vmul.f32 %v1363, 1.0614054
  %v1439 = vmul.f32 %v1365, 1.0614054
  %v1440 = vmul.f32 %v1367, 1.0614054
  %v1441 = vmul.f32 %v1369, 1.0614054
  %v1442 = vmul.f32 %v1371, 1.0614054
  %v1443 = vmul.f32 %v1373, 1.0614054
  %v1444 = vmul.f32 %v1375, 1.0614054
  %v1445 = vmul.f32 %v1377, 1.0614054
  %v1446 = vmul.f32 %v1379, 1.0614054
  %v1447 = vmul.f32 %v1381, 1.0614054
  %v1448 = vmul.f32 %v1383, 1.0614054
  %v1449 = vmul.f32 %v1385, 1.0614054
  %v1450 = vadd.f32 %v1386, -1.4531521
  %v1451 = vadd.f32 %v1387, -1.4531521
  %v1452 = vadd.f32 %v1388, -1.4531521
  %v1453 = vadd.f32 %v1389, -1.4531521
  %v1454 = vadd.f32 %v1390, -1.4531521
  %v1455 = vadd.f32 %v1391, -1.4531521
  %v1456 = vadd.f32 %v1392, -1.4531521
  %v1457 = vadd.f32 %v1393, -1.4531521
  %v1458 = vadd.f32 %v1394, -1.4531521
  %v1459 = vadd.f32 %v1395, -1.4531521
  %v1460 = vadd.f32 %v1396, -1.4531521
  %v1461 = vadd.f32 %v1397, -1.4531521
  %v1462 = vadd.f32 %v1398, -1.4531521
  %v1463 = vadd.f32 %v1399, -1.4531521
  %v1464 = vadd.f32 %v1400, -1.4531521
  %v1465 = vadd.f32 %v1401, -1.4531521
  %v1466 = vadd.f32 %v1402, -1.4531521
  %v1467 = vadd.f32 %v1403, -1.4531521
  %v1468 = vadd.f32 %v1404, -1.4531521
  %v1469 = vadd.f32 %v1405, -1.4531521
  %v1470 = vadd.f32 %v1406, -1.4531521
  %v1471 = vadd.f32 %v1407, -1.4531521
  %v1472 = vadd.f32 %v1408, -1.4531521
  %v1473 = vadd.f32 %v1409, -1.4531521
  %v1474 = vadd.f32 %v1410, -1.4531521
  %v1475 = vadd.f32 %v1411, -1.4531521
  %v1476 = vadd.f32 %v1412, -1.4531521
  %v1477 = vadd.f32 %v1413, -1.4531521
  %v1478 = vadd.f32 %v1414, -1.4531521
  %v1479 = vadd.f32 %v1415, -1.4531521
  %v1480 = vadd.f32 %v1416, -1.4531521
  %v1481 = vadd.f32 %v1417, -1.4531521
  %v1482 = vadd.f32 %v1418, -1.4531521
  %v1483 = vadd.f32 %v1419, -1.4531521
  %v1484 = vadd.f32 %v1420, -1.4531521
  %v1485 = vadd.f32 %v1421, -1.4531521
  %v1486 = vadd.f32 %v1422, -1.4531521
  %v1487 = vadd.f32 %v1423, -1.4531521
  %v1488 = vadd.f32 %v1424, -1.4531521
  %v1489 = vadd.f32 %v1425, -1.4531521
  %v1490 = vadd.f32 %v1426, -1.4531521
  %v1491 = vadd.f32 %v1427, -1.4531521
  %v1492 = vadd.f32 %v1428, -1.4531521
  %v1493 = vadd.f32 %v1429, -1.4531521
  %v1494 = vadd.f32 %v1430, -1.4531521
  %v1495 = vadd.f32 %v1431, -1.4531521
  %v1496 = vadd.f32 %v1432, -1.4531521
  %v1497 = vadd.f32 %v1433, -1.4531521
  %v1498 = vadd.f32 %v1434, -1.4531521
  %v1499 = vadd.f32 %v1435, -1.4531521
  %v1500 = vadd.f32 %v1436, -1.4531521
  %v1501 = vadd.f32 %v1437, -1.4531521
  %v1502 = vadd.f32 %v1438, -1.4531521
  %v1503 = vadd.f32 %v1439, -1.4531521
  %v1504 = vadd.f32 %v1440, -1.4531521
  %v1505 = vadd.f32 %v1441, -1.4531521
  %v1506 = vadd.f32 %v1442, -1.4531521
  %v1507 = vadd.f32 %v1443, -1.4531521
  %v1508 = vadd.f32 %v1444, -1.4531521
  %v1509 = vadd.f32 %v1445, -1.4531521
  %v1510 = vadd.f32 %v1446, -1.4531521
  %v1511 = vadd.f32 %v1447, -1.4531521
  %v1512 = vadd.f32 %v1448, -1.4531521
  %v1513 = vadd.f32 %v1449, -1.4531521
  %v1514 = vmul.f32 %v1450, %v1259
  %v1515 = vmul.f32 %v1451, %v1261
  %v1516 = vmul.f32 %v1452, %v1263
  %v1517 = vmul.f32 %v1453, %v1265
  %v1518 = vmul.f32 %v1454, %v1267
  %v1519 = vmul.f32 %v1455, %v1269
  %v1520 = vmul.f32 %v1456, %v1271
  %v1521 = vmul.f32 %v1457, %v1273
  %v1522 = vmul.f32 %v1458, %v1275
  %v1523 = vmul.f32 %v1459, %v1277
  %v1524 = vmul.f32 %v1460, %v1279
  %v1525 = vmul.f32 %v1461, %v1281
  %v1526 = vmul.f32 %v1462, %v1283
  %v1527 = vmul.f32 %v1463, %v1285
  %v1528 = vmul.f32 %v1464, %v1287
  %v1529 = vmul.f32 %v1465, %v1289
  %v1530 = vmul.f32 %v1466, %v1291
  %v1531 = vmul.f32 %v1467, %v1293
  %v1532 = vmul.f32 %v1468, %v1295
  %v1533 = vmul.f32 %v1469, %v1297
  %v1534 = vmul.f32 %v1470, %v1299
  %v1535 = vmul.f32 %v1471, %v1301
  %v1536 = vmul.f32 %v1472, %v1303
  %v1537 = vmul.f32 %v1473, %v1305
  %v1538 = vmul.f32 %v1474, %v1307
  %v1539 = vmul.f32 %v1475, %v1309
  %v1540 = vmul.f32 %v1476, %v1311
  %v1541 = vmul.f32 %v1477, %v1313
  %v1542 = vmul.f32 %v1478, %v1315
  %v1543 = vmul.f32 %v1479, %v1317
  %v1544 = vmul.f32 %v1480, %v1319
  %v1545 = vmul.f32 %v1481, %v1321
  %v1546 = vmul.f32 %v1482, %v1323
  %v1547 = vmul.f32 %v1483, %v1325
  %v1548 = vmul.f32 %v1484, %v1327
  %v1549 = vmul.f32 %v1485, %v1329
  %v1550 = vmul.f32 %v1486, %v1331
  %v1551 = vmul.f32 %v1487, %v1333
  %v1552 = vmul.f32 %v1488, %v1335
  %v1553 = vmul.f32 %v1489, %v1337
  %v1554 = vmul.f32 %v1490, %v1339
  %v1555 = vmul.f32 %v1491, %v1341
  %v1556 = vmul.f32 %v1492, %v1343
  %v1557 = vmul.f32 %v1493, %v1345
  %v1558 = vmul.f32 %v1494, %v1347
  %v1559 = vmul.f32 %v1495, %v1349
  %v1560 = vmul.f32 %v1496, %v1351
  %v1561 = vmul.f32 %v1497, %v1353
  %v1562 = vmul.f32 %v1498, %v1355
  %v1563 = vmul.f32 %v1499, %v1357
  %v1564 = vmul.f32 %v1500, %v1359
  %v1565 = vmul.f32 %v1501, %v1361
  %v1566 = vmul.f32 %v1502, %v1363
  %v1567 = vmul.f32 %v1503, %v1365
  %v1568 = vmul.f32 %v1504, %v1367
  %v1569 = vmul.f32 %v1505, %v1369
  %v1570 = vmul.f32 %v1506, %v1371
  %v1571 = vmul.f32 %v1507, %v1373
  %v1572 = vmul.f32 %v1508, %v1375
  %v1573 = vmul.f32 %v1509, %v1377
  %v1574 = vmul.f32 %v1510, %v1379
  %v1575 = vmul.f32 %v1511, %v1381
  %v1576 = vmul.f32 %v1512, %v1383
  %v1577 = vmul.f32 %v1513, %v1385
  %v1578 = vadd.f32 %v1514, 1.4214138
  %v1579 = vadd.f32 %v1515, 1.4214138
  %v1580 = vadd.f32 %v1516, 1.4214138
  %v1581 = vadd.f32 %v1517, 1.4214138
  %v1582 = vadd.f32 %v1518, 1.4214138
  %v1583 = vadd.f32 %v1519, 1.4214138
  %v1584 = vadd.f32 %v1520, 1.4214138
  %v1585 = vadd.f32 %v1521, 1.4214138
  %v1586 = vadd.f32 %v1522, 1.4214138
  %v1587 = vadd.f32 %v1523, 1.4214138
  %v1588 = vadd.f32 %v1524, 1.4214138
  %v1589 = vadd.f32 %v1525, 1.4214138
  %v1590 = vadd.f32 %v1526, 1.4214138
  %v1591 = vadd.f32 %v1527, 1.4214138
  %v1592 = vadd.f32 %v1528, 1.4214138
  %v1593 = vadd.f32 %v1529, 1.4214138
  %v1594 = vadd.f32 %v1530, 1.4214138
  %v1595 = vadd.f32 %v1531, 1.4214138
  %v1596 = vadd.f32 %v1532, 1.4214138
  %v1597 = vadd.f32 %v1533, 1.4214138
  %v1598 = vadd.f32 %v1534, 1.4214138
  %v1599 = vadd.f32 %v1535, 1.4214138
  %v1600 = vadd.f32 %v1536, 1.4214138
  %v1601 = vadd.f32 %v1537, 1.4214138
  %v1602 = vadd.f32 %v1538, 1.4214138
  %v1603 = vadd.f32 %v1539, 1.4214138
  %v1604 = vadd.f32 %v1540, 1.4214138
  %v1605 = vadd.f32 %v1541, 1.4214138
  %v1606 = vadd.f32 %v1542, 1.4214138
  %v1607 = vadd.f32 %v1543, 1.4214138
  %v1608 = vadd.f32 %v1544, 1.4214138
  %v1609 = vadd.f32 %v1545, 1.4214138
  %v1610 = vadd.f32 %v1546, 1.4214138
  %v1611 = vadd.f32 %v1547, 1.4214138
  %v1612 = vadd.f32 %v1548, 1.4214138
  %v1613 = vadd.f32 %v1549, 1.4214138
  %v1614 = vadd.f32 %v1550, 1.4214138
  %v1615 = vadd.f32 %v1551, 1.4214138
  %v1616 = vadd.f32 %v1552, 1.4214138
  %v1617 = vadd.f32 %v1553, 1.4214138
  %v1618 = vadd.f32 %v1554, 1.4214138
  %v1619 = vadd.f32 %v1555, 1.4214138
  %v1620 = vadd.f32 %v1556, 1.4214138
  %v1621 = vadd.f32 %v1557, 1.4214138
  %v1622 = vadd.f32 %v1558, 1.4214138
  %v1623 = vadd.f32 %v1559, 1.4214138
  %v1624 = vadd.f32 %v1560, 1.4214138
  %v1625 = vadd.f32 %v1561, 1.4214138
  %v1626 = vadd.f32 %v1562, 1.4214138
  %v1627 = vadd.f32 %v1563, 1.4214138
  %v1628 = vadd.f32 %v1564, 1.4214138
  %v1629 = vadd.f32 %v1565, 1.4214138
  %v1630 = vadd.f32 %v1566, 1.4214138
  %v1631 = vadd.f32 %v1567, 1.4214138
  %v1632 = vadd.f32 %v1568, 1.4214138
  %v1633 = vadd.f32 %v1569, 1.4214138
  %v1634 = vadd.f32 %v1570, 1.4214138
  %v1635 = vadd.f32 %v1571, 1.4214138
  %v1636 = vadd.f32 %v1572, 1.4214138
  %v1637 = vadd.f32 %v1573, 1.4214138
  %v1638 = vadd.f32 %v1574, 1.4214138
  %v1639 = vadd.f32 %v1575, 1.4214138
  %v1640 = vadd.f32 %v1576, 1.4214138
  %v1641 = vadd.f32 %v1577, 1.4214138
  %v1642 = vmul.f32 %v1578, %v1259
  %v1643 = vmul.f32 %v1579, %v1261
  %v1644 = vmul.f32 %v1580, %v1263
  %v1645 = vmul.f32 %v1581, %v1265
  %v1646 = vmul.f32 %v1582, %v1267
  %v1647 = vmul.f32 %v1583, %v1269
  %v1648 = vmul.f32 %v1584, %v1271
  %v1649 = vmul.f32 %v1585, %v1273
  %v1650 = vmul.f32 %v1586, %v1275
  %v1651 = vmul.f32 %v1587, %v1277
  %v1652 = vmul.f32 %v1588, %v1279
  %v1653 = vmul.f32 %v1589, %v1281
  %v1654 = vmul.f32 %v1590, %v1283
  %v1655 = vmul.f32 %v1591, %v1285
  %v1656 = vmul.f32 %v1592, %v1287
  %v1657 = vmul.f32 %v1593, %v1289
  %v1658 = vmul.f32 %v1594, %v1291
  %v1659 = vmul.f32 %v1595, %v1293
  %v1660 = vmul.f32 %v1596, %v1295
  %v1661 = vmul.f32 %v1597, %v1297
  %v1662 = vmul.f32 %v1598, %v1299
  %v1663 = vmul.f32 %v1599, %v1301
  %v1664 = vmul.f32 %v1600, %v1303
  %v1665 = vmul.f32 %v1601, %v1305
  %v1666 = vmul.f32 %v1602, %v1307
  %v1667 = vmul.f32 %v1603, %v1309
  %v1668 = vmul.f32 %v1604, %v1311
  %v1669 = vmul.f32 %v1605, %v1313
  %v1670 = vmul.f32 %v1606, %v1315
  %v1671 = vmul.f32 %v1607, %v1317
  %v1672 = vmul.f32 %v1608, %v1319
  %v1673 = vmul.f32 %v1609, %v1321
  %v1674 = vmul.f32 %v1610, %v1323
  %v1675 = vmul.f32 %v1611, %v1325
  %v1676 = vmul.f32 %v1612, %v1327
  %v1677 = vmul.f32 %v1613, %v1329
  %v1678 = vmul.f32 %v1614, %v1331
  %v1679 = vmul.f32 %v1615, %v1333
  %v1680 = vmul.f32 %v1616, %v1335
  %v1681 = vmul.f32 %v1617, %v1337
  %v1682 = vmul.f32 %v1618, %v1339
  %v1683 = vmul.f32 %v1619, %v1341
  %v1684 = vmul.f32 %v1620, %v1343
  %v1685 = vmul.f32 %v1621, %v1345
  %v1686 = vmul.f32 %v1622, %v1347
  %v1687 = vmul.f32 %v1623, %v1349
  %v1688 = vmul.f32 %v1624, %v1351
  %v1689 = vmul.f32 %v1625, %v1353
  %v1690 = vmul.f32 %v1626, %v1355
  %v1691 = vmul.f32 %v1627, %v1357
  %v1692 = vmul.f32 %v1628, %v1359
  %v1693 = vmul.f32 %v1629, %v1361
  %v1694 = vmul.f32 %v1630, %v1363
  %v1695 = vmul.f32 %v1631, %v1365
  %v1696 = vmul.f32 %v1632, %v1367
  %v1697 = vmul.f32 %v1633, %v1369
  %v1698 = vmul.f32 %v1634, %v1371
  %v1699 = vmul.f32 %v1635, %v1373
  %v1700 = vmul.f32 %v1636, %v1375
  %v1701 = vmul.f32 %v1637, %v1377
  %v1702 = vmul.f32 %v1638, %v1379
  %v1703 = vmul.f32 %v1639, %v1381
  %v1704 = vmul.f32 %v1640, %v1383
  %v1705 = vmul.f32 %v1641, %v1385
  %v1706 = vadd.f32 %v1642, -0.28449672
  %v1707 = vadd.f32 %v1643, -0.28449672
  %v1708 = vadd.f32 %v1644, -0.28449672
  %v1709 = vadd.f32 %v1645, -0.28449672
  %v1710 = vadd.f32 %v1646, -0.28449672
  %v1711 = vadd.f32 %v1647, -0.28449672
  %v1712 = vadd.f32 %v1648, -0.28449672
  %v1713 = vadd.f32 %v1649, -0.28449672
  %v1714 = vadd.f32 %v1650, -0.28449672
  %v1715 = vadd.f32 %v1651, -0.28449672
  %v1716 = vadd.f32 %v1652, -0.28449672
  %v1717 = vadd.f32 %v1653, -0.28449672
  %v1718 = vadd.f32 %v1654, -0.28449672
  %v1719 = vadd.f32 %v1655, -0.28449672
  %v1720 = vadd.f32 %v1656, -0.28449672
  %v1721 = vadd.f32 %v1657, -0.28449672
  %v1722 = vadd.f32 %v1658, -0.28449672
  %v1723 = vadd.f32 %v1659, -0.28449672
  %v1724 = vadd.f32 %v1660, -0.28449672
  %v1725 = vadd.f32 %v1661, -0.28449672
  %v1726 = vadd.f32 %v1662, -0.28449672
  %v1727 = vadd.f32 %v1663, -0.28449672
  %v1728 = vadd.f32 %v1664, -0.28449672
  %v1729 = vadd.f32 %v1665, -0.28449672
  %v1730 = vadd.f32 %v1666, -0.28449672
  %v1731 = vadd.f32 %v1667, -0.28449672
  %v1732 = vadd.f32 %v1668, -0.28449672
  %v1733 = vadd.f32 %v1669, -0.28449672
  %v1734 = vadd.f32 %v1670, -0.28449672
  %v1735 = vadd.f32 %v1671, -0.28449672
  %v1736 = vadd.f32 %v1672, -0.28449672
  %v1737 = vadd.f32 %v1673, -0.28449672
  %v1738 = vadd.f32 %v1674, -0.28449672
  %v1739 = vadd.f32 %v1675, -0.28449672
  %v1740 = vadd.f32 %v1676, -0.28449672
  %v1741 = vadd.f32 %v1677, -0.28449672
  %v1742 = vadd.f32 %v1678, -0.28449672
  %v1743 = vadd.f32 %v1679, -0.28449672
  %v1744 = vadd.f32 %v1680, -0.28449672
  %v1745 = vadd.f32 %v1681, -0.28449672
  %v1746 = vadd.f32 %v1682, -0.28449672
  %v1747 = vadd.f32 %v1683, -0.28449672
  %v1748 = vadd.f32 %v1684, -0.28449672
  %v1749 = vadd.f32 %v1685, -0.28449672
  %v1750 = vadd.f32 %v1686, -0.28449672
  %v1751 = vadd.f32 %v1687, -0.28449672
  %v1752 = vadd.f32 %v1688, -0.28449672
  %v1753 = vadd.f32 %v1689, -0.28449672
  %v1754 = vadd.f32 %v1690, -0.28449672
  %v1755 = vadd.f32 %v1691, -0.28449672
  %v1756 = vadd.f32 %v1692, -0.28449672
  %v1757 = vadd.f32 %v1693, -0.28449672
  %v1758 = vadd.f32 %v1694, -0.28449672
  %v1759 = vadd.f32 %v1695, -0.28449672
  %v1760 = vadd.f32 %v1696, -0.28449672
  %v1761 = vadd.f32 %v1697, -0.28449672
  %v1762 = vadd.f32 %v1698, -0.28449672
  %v1763 = vadd.f32 %v1699, -0.28449672
  %v1764 = vadd.f32 %v1700, -0.28449672
  %v1765 = vadd.f32 %v1701, -0.28449672
  %v1766 = vadd.f32 %v1702, -0.28449672
  %v1767 = vadd.f32 %v1703, -0.28449672
  %v1768 = vadd.f32 %v1704, -0.28449672
  %v1769 = vadd.f32 %v1705, -0.28449672
  %v1770 = vmul.f32 %v1706, %v1259
  %v1771 = vmul.f32 %v1707, %v1261
  %v1772 = vmul.f32 %v1708, %v1263
  %v1773 = vmul.f32 %v1709, %v1265
  %v1774 = vmul.f32 %v1710, %v1267
  %v1775 = vmul.f32 %v1711, %v1269
  %v1776 = vmul.f32 %v1712, %v1271
  %v1777 = vmul.f32 %v1713, %v1273
  %v1778 = vmul.f32 %v1714, %v1275
  %v1779 = vmul.f32 %v1715, %v1277
  %v1780 = vmul.f32 %v1716, %v1279
  %v1781 = vmul.f32 %v1717, %v1281
  %v1782 = vmul.f32 %v1718, %v1283
  %v1783 = vmul.f32 %v1719, %v1285
  %v1784 = vmul.f32 %v1720, %v1287
  %v1785 = vmul.f32 %v1721, %v1289
  %v1786 = vmul.f32 %v1722, %v1291
  %v1787 = vmul.f32 %v1723, %v1293
  %v1788 = vmul.f32 %v1724, %v1295
  %v1789 = vmul.f32 %v1725, %v1297
  %v1790 = vmul.f32 %v1726, %v1299
  %v1791 = vmul.f32 %v1727, %v1301
  %v1792 = vmul.f32 %v1728, %v1303
  %v1793 = vmul.f32 %v1729, %v1305
  %v1794 = vmul.f32 %v1730, %v1307
  %v1795 = vmul.f32 %v1731, %v1309
  %v1796 = vmul.f32 %v1732, %v1311
  %v1797 = vmul.f32 %v1733, %v1313
  %v1798 = vmul.f32 %v1734, %v1315
  %v1799 = vmul.f32 %v1735, %v1317
  %v1800 = vmul.f32 %v1736, %v1319
  %v1801 = vmul.f32 %v1737, %v1321
  %v1802 = vmul.f32 %v1738, %v1323
  %v1803 = vmul.f32 %v1739, %v1325
  %v1804 = vmul.f32 %v1740, %v1327
  %v1805 = vmul.f32 %v1741, %v1329
  %v1806 = vmul.f32 %v1742, %v1331
  %v1807 = vmul.f32 %v1743, %v1333
  %v1808 = vmul.f32 %v1744, %v1335
  %v1809 = vmul.f32 %v1745, %v1337
  %v1810 = vmul.f32 %v1746, %v1339
  %v1811 = vmul.f32 %v1747, %v1341
  %v1812 = vmul.f32 %v1748, %v1343
  %v1813 = vmul.f32 %v1749, %v1345
  %v1814 = vmul.f32 %v1750, %v1347
  %v1815 = vmul.f32 %v1751, %v1349
  %v1816 = vmul.f32 %v1752, %v1351
  %v1817 = vmul.f32 %v1753, %v1353
  %v1818 = vmul.f32 %v1754, %v1355
  %v1819 = vmul.f32 %v1755, %v1357
  %v1820 = vmul.f32 %v1756, %v1359
  %v1821 = vmul.f32 %v1757, %v1361
  %v1822 = vmul.f32 %v1758, %v1363
  %v1823 = vmul.f32 %v1759, %v1365
  %v1824 = vmul.f32 %v1760, %v1367
  %v1825 = vmul.f32 %v1761, %v1369
  %v1826 = vmul.f32 %v1762, %v1371
  %v1827 = vmul.f32 %v1763, %v1373
  %v1828 = vmul.f32 %v1764, %v1375
  %v1829 = vmul.f32 %v1765, %v1377
  %v1830 = vmul.f32 %v1766, %v1379
  %v1831 = vmul.f32 %v1767, %v1381
  %v1832 = vmul.f32 %v1768, %v1383
  %v1833 = vmul.f32 %v1769, %v1385
  %v1834 = vadd.f32 %v1770, 0.2548296
  %v1835 = vadd.f32 %v1771, 0.2548296
  %v1836 = vadd.f32 %v1772, 0.2548296
  %v1837 = vadd.f32 %v1773, 0.2548296
  %v1838 = vadd.f32 %v1774, 0.2548296
  %v1839 = vadd.f32 %v1775, 0.2548296
  %v1840 = vadd.f32 %v1776, 0.2548296
  %v1841 = vadd.f32 %v1777, 0.2548296
  %v1842 = vadd.f32 %v1778, 0.2548296
  %v1843 = vadd.f32 %v1779, 0.2548296
  %v1844 = vadd.f32 %v1780, 0.2548296
  %v1845 = vadd.f32 %v1781, 0.2548296
  %v1846 = vadd.f32 %v1782, 0.2548296
  %v1847 = vadd.f32 %v1783, 0.2548296
  %v1848 = vadd.f32 %v1784, 0.2548296
  %v1849 = vadd.f32 %v1785, 0.2548296
  %v1850 = vadd.f32 %v1786, 0.2548296
  %v1851 = vadd.f32 %v1787, 0.2548296
  %v1852 = vadd.f32 %v1788, 0.2548296
  %v1853 = vadd.f32 %v1789, 0.2548296
  %v1854 = vadd.f32 %v1790, 0.2548296
  %v1855 = vadd.f32 %v1791, 0.2548296
  %v1856 = vadd.f32 %v1792, 0.2548296
  %v1857 = vadd.f32 %v1793, 0.2548296
  %v1858 = vadd.f32 %v1794, 0.2548296
  %v1859 = vadd.f32 %v1795, 0.2548296
  %v1860 = vadd.f32 %v1796, 0.2548296
  %v1861 = vadd.f32 %v1797, 0.2548296
  %v1862 = vadd.f32 %v1798, 0.2548296
  %v1863 = vadd.f32 %v1799, 0.2548296
  %v1864 = vadd.f32 %v1800, 0.2548296
  %v1865 = vadd.f32 %v1801, 0.2548296
  %v1866 = vadd.f32 %v1802, 0.2548296
  %v1867 = vadd.f32 %v1803, 0.2548296
  %v1868 = vadd.f32 %v1804, 0.2548296
  %v1869 = vadd.f32 %v1805, 0.2548296
  %v1870 = vadd.f32 %v1806, 0.2548296
  %v1871 = vadd.f32 %v1807, 0.2548296
  %v1872 = vadd.f32 %v1808, 0.2548296
  %v1873 = vadd.f32 %v1809, 0.2548296
  %v1874 = vadd.f32 %v1810, 0.2548296
  %v1875 = vadd.f32 %v1811, 0.2548296
  %v1876 = vadd.f32 %v1812, 0.2548296
  %v1877 = vadd.f32 %v1813, 0.2548296
  %v1878 = vadd.f32 %v1814, 0.2548296
  %v1879 = vadd.f32 %v1815, 0.2548296
  %v1880 = vadd.f32 %v1816, 0.2548296
  %v1881 = vadd.f32 %v1817, 0.2548296
  %v1882 = vadd.f32 %v1818, 0.2548296
  %v1883 = vadd.f32 %v1819, 0.2548296
  %v1884 = vadd.f32 %v1820, 0.2548296
  %v1885 = vadd.f32 %v1821, 0.2548296
  %v1886 = vadd.f32 %v1822, 0.2548296
  %v1887 = vadd.f32 %v1823, 0.2548296
  %v1888 = vadd.f32 %v1824, 0.2548296
  %v1889 = vadd.f32 %v1825, 0.2548296
  %v1890 = vadd.f32 %v1826, 0.2548296
  %v1891 = vadd.f32 %v1827, 0.2548296
  %v1892 = vadd.f32 %v1828, 0.2548296
  %v1893 = vadd.f32 %v1829, 0.2548296
  %v1894 = vadd.f32 %v1830, 0.2548296
  %v1895 = vadd.f32 %v1831, 0.2548296
  %v1896 = vadd.f32 %v1832, 0.2548296
  %v1897 = vadd.f32 %v1833, 0.2548296
  %v1898 = vmul.f32 %v1834, %v1259
  %v1899 = vmul.f32 %v1835, %v1261
  %v1900 = vmul.f32 %v1836, %v1263
  %v1901 = vmul.f32 %v1837, %v1265
  %v1902 = vmul.f32 %v1838, %v1267
  %v1903 = vmul.f32 %v1839, %v1269
  %v1904 = vmul.f32 %v1840, %v1271
  %v1905 = vmul.f32 %v1841, %v1273
  %v1906 = vmul.f32 %v1842, %v1275
  %v1907 = vmul.f32 %v1843, %v1277
  %v1908 = vmul.f32 %v1844, %v1279
  %v1909 = vmul.f32 %v1845, %v1281
  %v1910 = vmul.f32 %v1846, %v1283
  %v1911 = vmul.f32 %v1847, %v1285
  %v1912 = vmul.f32 %v1848, %v1287
  %v1913 = vmul.f32 %v1849, %v1289
  %v1914 = vmul.f32 %v1850, %v1291
  %v1915 = vmul.f32 %v1851, %v1293
  %v1916 = vmul.f32 %v1852, %v1295
  %v1917 = vmul.f32 %v1853, %v1297
  %v1918 = vmul.f32 %v1854, %v1299
  %v1919 = vmul.f32 %v1855, %v1301
  %v1920 = vmul.f32 %v1856, %v1303
  %v1921 = vmul.f32 %v1857, %v1305
  %v1922 = vmul.f32 %v1858, %v1307
  %v1923 = vmul.f32 %v1859, %v1309
  %v1924 = vmul.f32 %v1860, %v1311
  %v1925 = vmul.f32 %v1861, %v1313
  %v1926 = vmul.f32 %v1862, %v1315
  %v1927 = vmul.f32 %v1863, %v1317
  %v1928 = vmul.f32 %v1864, %v1319
  %v1929 = vmul.f32 %v1865, %v1321
  %v1930 = vmul.f32 %v1866, %v1323
  %v1931 = vmul.f32 %v1867, %v1325
  %v1932 = vmul.f32 %v1868, %v1327
  %v1933 = vmul.f32 %v1869, %v1329
  %v1934 = vmul.f32 %v1870, %v1331
  %v1935 = vmul.f32 %v1871, %v1333
  %v1936 = vmul.f32 %v1872, %v1335
  %v1937 = vmul.f32 %v1873, %v1337
  %v1938 = vmul.f32 %v1874, %v1339
  %v1939 = vmul.f32 %v1875, %v1341
  %v1940 = vmul.f32 %v1876, %v1343
  %v1941 = vmul.f32 %v1877, %v1345
  %v1942 = vmul.f32 %v1878, %v1347
  %v1943 = vmul.f32 %v1879, %v1349
  %v1944 = vmul.f32 %v1880, %v1351
  %v1945 = vmul.f32 %v1881, %v1353
  %v1946 = vmul.f32 %v1882, %v1355
  %v1947 = vmul.f32 %v1883, %v1357
  %v1948 = vmul.f32 %v1884, %v1359
  %v1949 = vmul.f32 %v1885, %v1361
  %v1950 = vmul.f32 %v1886, %v1363
  %v1951 = vmul.f32 %v1887, %v1365
  %v1952 = vmul.f32 %v1888, %v1367
  %v1953 = vmul.f32 %v1889, %v1369
  %v1954 = vmul.f32 %v1890, %v1371
  %v1955 = vmul.f32 %v1891, %v1373
  %v1956 = vmul.f32 %v1892, %v1375
  %v1957 = vmul.f32 %v1893, %v1377
  %v1958 = vmul.f32 %v1894, %v1379
  %v1959 = vmul.f32 %v1895, %v1381
  %v1960 = vmul.f32 %v1896, %v1383
  %v1961 = vmul.f32 %v1897, %v1385
  %v1962 = vsub.f32 0.0, %v1066
  %v1963 = vsub.f32 0.0, %v1067
  %v1964 = vsub.f32 0.0, %v1068
  %v1965 = vsub.f32 0.0, %v1069
  %v1966 = vsub.f32 0.0, %v1070
  %v1967 = vsub.f32 0.0, %v1071
  %v1968 = vsub.f32 0.0, %v1072
  %v1969 = vsub.f32 0.0, %v1073
  %v1970 = vsub.f32 0.0, %v1074
  %v1971 = vsub.f32 0.0, %v1075
  %v1972 = vsub.f32 0.0, %v1076
  %v1973 = vsub.f32 0.0, %v1077
  %v1974 = vsub.f32 0.0, %v1078
  %v1975 = vsub.f32 0.0, %v1079
  %v1976 = vsub.f32 0.0, %v1080
  %v1977 = vsub.f32 0.0, %v1081
  %v1978 = vsub.f32 0.0, %v1082
  %v1979 = vsub.f32 0.0, %v1083
  %v1980 = vsub.f32 0.0, %v1084
  %v1981 = vsub.f32 0.0, %v1085
  %v1982 = vsub.f32 0.0, %v1086
  %v1983 = vsub.f32 0.0, %v1087
  %v1984 = vsub.f32 0.0, %v1088
  %v1985 = vsub.f32 0.0, %v1089
  %v1986 = vsub.f32 0.0, %v1090
  %v1987 = vsub.f32 0.0, %v1091
  %v1988 = vsub.f32 0.0, %v1092
  %v1989 = vsub.f32 0.0, %v1093
  %v1990 = vsub.f32 0.0, %v1094
  %v1991 = vsub.f32 0.0, %v1095
  %v1992 = vsub.f32 0.0, %v1096
  %v1993 = vsub.f32 0.0, %v1097
  %v1994 = vsub.f32 0.0, %v1098
  %v1995 = vsub.f32 0.0, %v1099
  %v1996 = vsub.f32 0.0, %v1100
  %v1997 = vsub.f32 0.0, %v1101
  %v1998 = vsub.f32 0.0, %v1102
  %v1999 = vsub.f32 0.0, %v1103
  %v2000 = vsub.f32 0.0, %v1104
  %v2001 = vsub.f32 0.0, %v1105
  %v2002 = vsub.f32 0.0, %v1106
  %v2003 = vsub.f32 0.0, %v1107
  %v2004 = vsub.f32 0.0, %v1108
  %v2005 = vsub.f32 0.0, %v1109
  %v2006 = vsub.f32 0.0, %v1110
  %v2007 = vsub.f32 0.0, %v1111
  %v2008 = vsub.f32 0.0, %v1112
  %v2009 = vsub.f32 0.0, %v1113
  %v2010 = vsub.f32 0.0, %v1114
  %v2011 = vsub.f32 0.0, %v1115
  %v2012 = vsub.f32 0.0, %v1116
  %v2013 = vsub.f32 0.0, %v1117
  %v2014 = vsub.f32 0.0, %v1118
  %v2015 = vsub.f32 0.0, %v1119
  %v2016 = vsub.f32 0.0, %v1120
  %v2017 = vsub.f32 0.0, %v1121
  %v2018 = vsub.f32 0.0, %v1122
  %v2019 = vsub.f32 0.0, %v1123
  %v2020 = vsub.f32 0.0, %v1124
  %v2021 = vsub.f32 0.0, %v1125
  %v2022 = vsub.f32 0.0, %v1126
  %v2023 = vsub.f32 0.0, %v1127
  %v2024 = vsub.f32 0.0, %v1128
  %v2025 = vsub.f32 0.0, %v1129
  %v2026 = vmul.f32 %v1962, %v1066
  %v2027 = vmul.f32 %v1963, %v1067
  %v2028 = vmul.f32 %v1964, %v1068
  %v2029 = vmul.f32 %v1965, %v1069
  %v2030 = vmul.f32 %v1966, %v1070
  %v2031 = vmul.f32 %v1967, %v1071
  %v2032 = vmul.f32 %v1968, %v1072
  %v2033 = vmul.f32 %v1969, %v1073
  %v2034 = vmul.f32 %v1970, %v1074
  %v2035 = vmul.f32 %v1971, %v1075
  %v2036 = vmul.f32 %v1972, %v1076
  %v2037 = vmul.f32 %v1973, %v1077
  %v2038 = vmul.f32 %v1974, %v1078
  %v2039 = vmul.f32 %v1975, %v1079
  %v2040 = vmul.f32 %v1976, %v1080
  %v2041 = vmul.f32 %v1977, %v1081
  %v2042 = vmul.f32 %v1978, %v1082
  %v2043 = vmul.f32 %v1979, %v1083
  %v2044 = vmul.f32 %v1980, %v1084
  %v2045 = vmul.f32 %v1981, %v1085
  %v2046 = vmul.f32 %v1982, %v1086
  %v2047 = vmul.f32 %v1983, %v1087
  %v2048 = vmul.f32 %v1984, %v1088
  %v2049 = vmul.f32 %v1985, %v1089
  %v2050 = vmul.f32 %v1986, %v1090
  %v2051 = vmul.f32 %v1987, %v1091
  %v2052 = vmul.f32 %v1988, %v1092
  %v2053 = vmul.f32 %v1989, %v1093
  %v2054 = vmul.f32 %v1990, %v1094
  %v2055 = vmul.f32 %v1991, %v1095
  %v2056 = vmul.f32 %v1992, %v1096
  %v2057 = vmul.f32 %v1993, %v1097
  %v2058 = vmul.f32 %v1994, %v1098
  %v2059 = vmul.f32 %v1995, %v1099
  %v2060 = vmul.f32 %v1996, %v1100
  %v2061 = vmul.f32 %v1997, %v1101
  %v2062 = vmul.f32 %v1998, %v1102
  %v2063 = vmul.f32 %v1999, %v1103
  %v2064 = vmul.f32 %v2000, %v1104
  %v2065 = vmul.f32 %v2001, %v1105
  %v2066 = vmul.f32 %v2002, %v1106
  %v2067 = vmul.f32 %v2003, %v1107
  %v2068 = vmul.f32 %v2004, %v1108
  %v2069 = vmul.f32 %v2005, %v1109
  %v2070 = vmul.f32 %v2006, %v1110
  %v2071 = vmul.f32 %v2007, %v1111
  %v2072 = vmul.f32 %v2008, %v1112
  %v2073 = vmul.f32 %v2009, %v1113
  %v2074 = vmul.f32 %v2010, %v1114
  %v2075 = vmul.f32 %v2011, %v1115
  %v2076 = vmul.f32 %v2012, %v1116
  %v2077 = vmul.f32 %v2013, %v1117
  %v2078 = vmul.f32 %v2014, %v1118
  %v2079 = vmul.f32 %v2015, %v1119
  %v2080 = vmul.f32 %v2016, %v1120
  %v2081 = vmul.f32 %v2017, %v1121
  %v2082 = vmul.f32 %v2018, %v1122
  %v2083 = vmul.f32 %v2019, %v1123
  %v2084 = vmul.f32 %v2020, %v1124
  %v2085 = vmul.f32 %v2021, %v1125
  %v2086 = vmul.f32 %v2022, %v1126
  %v2087 = vmul.f32 %v2023, %v1127
  %v2088 = vmul.f32 %v2024, %v1128
  %v2089 = vmul.f32 %v2025, %v1129
  %v2090 = vmul.f32 %v2026, 1.442695
  %v2091 = vpow.pop %v2090
  %v2092 = vmul.f32 %v2027, 1.442695
  %v2093 = vpow.pop %v2092
  %v2094 = vmul.f32 %v2028, 1.442695
  %v2095 = vpow.pop %v2094
  %v2096 = vmul.f32 %v2029, 1.442695
  %v2097 = vpow.pop %v2096
  %v2098 = vmul.f32 %v2030, 1.442695
  %v2099 = vpow.pop %v2098
  %v2100 = vmul.f32 %v2031, 1.442695
  %v2101 = vpow.pop %v2100
  %v2102 = vmul.f32 %v2032, 1.442695
  %v2103 = vpow.pop %v2102
  %v2104 = vmul.f32 %v2033, 1.442695
  %v2105 = vpow.pop %v2104
  %v2106 = vmul.f32 %v2034, 1.442695
  %v2107 = vpow.pop %v2106
  %v2108 = vmul.f32 %v2035, 1.442695
  %v2109 = vpow.pop %v2108
  %v2110 = vmul.f32 %v2036, 1.442695
  %v2111 = vpow.pop %v2110
  %v2112 = vmul.f32 %v2037, 1.442695
  %v2113 = vpow.pop %v2112
  %v2114 = vmul.f32 %v2038, 1.442695
  %v2115 = vpow.pop %v2114
  %v2116 = vmul.f32 %v2039, 1.442695
  %v2117 = vpow.pop %v2116
  %v2118 = vmul.f32 %v2040, 1.442695
  %v2119 = vpow.pop %v2118
  %v2120 = vmul.f32 %v2041, 1.442695
  %v2121 = vpow.pop %v2120
  %v2122 = vmul.f32 %v2042, 1.442695
  %v2123 = vpow.pop %v2122
  %v2124 = vmul.f32 %v2043, 1.442695
  %v2125 = vpow.pop %v2124
  %v2126 = vmul.f32 %v2044, 1.442695
  %v2127 = vpow.pop %v2126
  %v2128 = vmul.f32 %v2045, 1.442695
  %v2129 = vpow.pop %v2128
  %v2130 = vmul.f32 %v2046, 1.442695
  %v2131 = vpow.pop %v2130
  %v2132 = vmul.f32 %v2047, 1.442695
  %v2133 = vpow.pop %v2132
  %v2134 = vmul.f32 %v2048, 1.442695
  %v2135 = vpow.pop %v2134
  %v2136 = vmul.f32 %v2049, 1.442695
  %v2137 = vpow.pop %v2136
  %v2138 = vmul.f32 %v2050, 1.442695
  %v2139 = vpow.pop %v2138
  %v2140 = vmul.f32 %v2051, 1.442695
  %v2141 = vpow.pop %v2140
  %v2142 = vmul.f32 %v2052, 1.442695
  %v2143 = vpow.pop %v2142
  %v2144 = vmul.f32 %v2053, 1.442695
  %v2145 = vpow.pop %v2144
  %v2146 = vmul.f32 %v2054, 1.442695
  %v2147 = vpow.pop %v2146
  %v2148 = vmul.f32 %v2055, 1.442695
  %v2149 = vpow.pop %v2148
  %v2150 = vmul.f32 %v2056, 1.442695
  %v2151 = vpow.pop %v2150
  %v2152 = vmul.f32 %v2057, 1.442695
  %v2153 = vpow.pop %v2152
  %v2154 = vmul.f32 %v2058, 1.442695
  %v2155 = vpow.pop %v2154
  %v2156 = vmul.f32 %v2059, 1.442695
  %v2157 = vpow.pop %v2156
  %v2158 = vmul.f32 %v2060, 1.442695
  %v2159 = vpow.pop %v2158
  %v2160 = vmul.f32 %v2061, 1.442695
  %v2161 = vpow.pop %v2160
  %v2162 = vmul.f32 %v2062, 1.442695
  %v2163 = vpow.pop %v2162
  %v2164 = vmul.f32 %v2063, 1.442695
  %v2165 = vpow.pop %v2164
  %v2166 = vmul.f32 %v2064, 1.442695
  %v2167 = vpow.pop %v2166
  %v2168 = vmul.f32 %v2065, 1.442695
  %v2169 = vpow.pop %v2168
  %v2170 = vmul.f32 %v2066, 1.442695
  %v2171 = vpow.pop %v2170
  %v2172 = vmul.f32 %v2067, 1.442695
  %v2173 = vpow.pop %v2172
  %v2174 = vmul.f32 %v2068, 1.442695
  %v2175 = vpow.pop %v2174
  %v2176 = vmul.f32 %v2069, 1.442695
  %v2177 = vpow.pop %v2176
  %v2178 = vmul.f32 %v2070, 1.442695
  %v2179 = vpow.pop %v2178
  %v2180 = vmul.f32 %v2071, 1.442695
  %v2181 = vpow.pop %v2180
  %v2182 = vmul.f32 %v2072, 1.442695
  %v2183 = vpow.pop %v2182
  %v2184 = vmul.f32 %v2073, 1.442695
  %v2185 = vpow.pop %v2184
  %v2186 = vmul.f32 %v2074, 1.442695
  %v2187 = vpow.pop %v2186
  %v2188 = vmul.f32 %v2075, 1.442695
  %v2189 = vpow.pop %v2188
  %v2190 = vmul.f32 %v2076, 1.442695
  %v2191 = vpow.pop %v2190
  %v2192 = vmul.f32 %v2077, 1.442695
  %v2193 = vpow.pop %v2192
  %v2194 = vmul.f32 %v2078, 1.442695
  %v2195 = vpow.pop %v2194
  %v2196 = vmul.f32 %v2079, 1.442695
  %v2197 = vpow.pop %v2196
  %v2198 = vmul.f32 %v2080, 1.442695
  %v2199 = vpow.pop %v2198
  %v2200 = vmul.f32 %v2081, 1.442695
  %v2201 = vpow.pop %v2200
  %v2202 = vmul.f32 %v2082, 1.442695
  %v2203 = vpow.pop %v2202
  %v2204 = vmul.f32 %v2083, 1.442695
  %v2205 = vpow.pop %v2204
  %v2206 = vmul.f32 %v2084, 1.442695
  %v2207 = vpow.pop %v2206
  %v2208 = vmul.f32 %v2085, 1.442695
  %v2209 = vpow.pop %v2208
  %v2210 = vmul.f32 %v2086, 1.442695
  %v2211 = vpow.pop %v2210
  %v2212 = vmul.f32 %v2087, 1.442695
  %v2213 = vpow.pop %v2212
  %v2214 = vmul.f32 %v2088, 1.442695
  %v2215 = vpow.pop %v2214
  %v2216 = vmul.f32 %v2089, 1.442695
  %v2217 = vpow.pop %v2216
  %v2218 = vmul.f32 %v1898, %v2091
  %v2219 = vmul.f32 %v1899, %v2093
  %v2220 = vmul.f32 %v1900, %v2095
  %v2221 = vmul.f32 %v1901, %v2097
  %v2222 = vmul.f32 %v1902, %v2099
  %v2223 = vmul.f32 %v1903, %v2101
  %v2224 = vmul.f32 %v1904, %v2103
  %v2225 = vmul.f32 %v1905, %v2105
  %v2226 = vmul.f32 %v1906, %v2107
  %v2227 = vmul.f32 %v1907, %v2109
  %v2228 = vmul.f32 %v1908, %v2111
  %v2229 = vmul.f32 %v1909, %v2113
  %v2230 = vmul.f32 %v1910, %v2115
  %v2231 = vmul.f32 %v1911, %v2117
  %v2232 = vmul.f32 %v1912, %v2119
  %v2233 = vmul.f32 %v1913, %v2121
  %v2234 = vmul.f32 %v1914, %v2123
  %v2235 = vmul.f32 %v1915, %v2125
  %v2236 = vmul.f32 %v1916, %v2127
  %v2237 = vmul.f32 %v1917, %v2129
  %v2238 = vmul.f32 %v1918, %v2131
  %v2239 = vmul.f32 %v1919, %v2133
  %v2240 = vmul.f32 %v1920, %v2135
  %v2241 = vmul.f32 %v1921, %v2137
  %v2242 = vmul.f32 %v1922, %v2139
  %v2243 = vmul.f32 %v1923, %v2141
  %v2244 = vmul.f32 %v1924, %v2143
  %v2245 = vmul.f32 %v1925, %v2145
  %v2246 = vmul.f32 %v1926, %v2147
  %v2247 = vmul.f32 %v1927, %v2149
  %v2248 = vmul.f32 %v1928, %v2151
  %v2249 = vmul.f32 %v1929, %v2153
  %v2250 = vmul.f32 %v1930, %v2155
  %v2251 = vmul.f32 %v1931, %v2157
  %v2252 = vmul.f32 %v1932, %v2159
  %v2253 = vmul.f32 %v1933, %v2161
  %v2254 = vmul.f32 %v1934, %v2163
  %v2255 = vmul.f32 %v1935, %v2165
  %v2256 = vmul.f32 %v1936, %v2167
  %v2257 = vmul.f32 %v1937, %v2169
  %v2258 = vmul.f32 %v1938, %v2171
  %v2259 = vmul.f32 %v1939, %v2173
  %v2260 = vmul.f32 %v1940, %v2175
  %v2261 = vmul.f32 %v1941, %v2177
  %v2262 = vmul.f32 %v1942, %v2179
  %v2263 = vmul.f32 %v1943, %v2181
  %v2264 = vmul.f32 %v1944, %v2183
  %v2265 = vmul.f32 %v1945, %v2185
  %v2266 = vmul.f32 %v1946, %v2187
  %v2267 = vmul.f32 %v1947, %v2189
  %v2268 = vmul.f32 %v1948, %v2191
  %v2269 = vmul.f32 %v1949, %v2193
  %v2270 = vmul.f32 %v1950, %v2195
  %v2271 = vmul.f32 %v1951, %v2197
  %v2272 = vmul.f32 %v1952, %v2199
  %v2273 = vmul.f32 %v1953, %v2201
  %v2274 = vmul.f32 %v1954, %v2203
  %v2275 = vmul.f32 %v1955, %v2205
  %v2276 = vmul.f32 %v1956, %v2207
  %v2277 = vmul.f32 %v1957, %v2209
  %v2278 = vmul.f32 %v1958, %v2211
  %v2279 = vmul.f32 %v1959, %v2213
  %v2280 = vmul.f32 %v1960, %v2215
  %v2281 = vmul.f32 %v1961, %v2217
  %v2282 = vsub.f32 1.0, %v2218
  %v2283 = vsub.f32 1.0, %v2219
  %v2284 = vsub.f32 1.0, %v2220
  %v2285 = vsub.f32 1.0, %v2221
  %v2286 = vsub.f32 1.0, %v2222
  %v2287 = vsub.f32 1.0, %v2223
  %v2288 = vsub.f32 1.0, %v2224
  %v2289 = vsub.f32 1.0, %v2225
  %v2290 = vsub.f32 1.0, %v2226
  %v2291 = vsub.f32 1.0, %v2227
  %v2292 = vsub.f32 1.0, %v2228
  %v2293 = vsub.f32 1.0, %v2229
  %v2294 = vsub.f32 1.0, %v2230
  %v2295 = vsub.f32 1.0, %v2231
  %v2296 = vsub.f32 1.0, %v2232
  %v2297 = vsub.f32 1.0, %v2233
  %v2298 = vsub.f32 1.0, %v2234
  %v2299 = vsub.f32 1.0, %v2235
  %v2300 = vsub.f32 1.0, %v2236
  %v2301 = vsub.f32 1.0, %v2237
  %v2302 = vsub.f32 1.0, %v2238
  %v2303 = vsub.f32 1.0, %v2239
  %v2304 = vsub.f32 1.0, %v2240
  %v2305 = vsub.f32 1.0, %v2241
  %v2306 = vsub.f32 1.0, %v2242
  %v2307 = vsub.f32 1.0, %v2243
  %v2308 = vsub.f32 1.0, %v2244
  %v2309 = vsub.f32 1.0, %v2245
  %v2310 = vsub.f32 1.0, %v2246
  %v2311 = vsub.f32 1.0, %v2247
  %v2312 = vsub.f32 1.0, %v2248
  %v2313 = vsub.f32 1.0, %v2249
  %v2314 = vsub.f32 1.0, %v2250
  %v2315 = vsub.f32 1.0, %v2251
  %v2316 = vsub.f32 1.0, %v2252
  %v2317 = vsub.f32 1.0, %v2253
  %v2318 = vsub.f32 1.0, %v2254
  %v2319 = vsub.f32 1.0, %v2255
  %v2320 = vsub.f32 1.0, %v2256
  %v2321 = vsub.f32 1.0, %v2257
  %v2322 = vsub.f32 1.0, %v2258
  %v2323 = vsub.f32 1.0, %v2259
  %v2324 = vsub.f32 1.0, %v2260
  %v2325 = vsub.f32 1.0, %v2261
  %v2326 = vsub.f32 1.0, %v2262
  %v2327 = vsub.f32 1.0, %v2263
  %v2328 = vsub.f32 1.0, %v2264
  %v2329 = vsub.f32 1.0, %v2265
  %v2330 = vsub.f32 1.0, %v2266
  %v2331 = vsub.f32 1.0, %v2267
  %v2332 = vsub.f32 1.0, %v2268
  %v2333 = vsub.f32 1.0, %v2269
  %v2334 = vsub.f32 1.0, %v2270
  %v2335 = vsub.f32 1.0, %v2271
  %v2336 = vsub.f32 1.0, %v2272
  %v2337 = vsub.f32 1.0, %v2273
  %v2338 = vsub.f32 1.0, %v2274
  %v2339 = vsub.f32 1.0, %v2275
  %v2340 = vsub.f32 1.0, %v2276
  %v2341 = vsub.f32 1.0, %v2277
  %v2342 = vsub.f32 1.0, %v2278
  %v2343 = vsub.f32 1.0, %v2279
  %v2344 = vsub.f32 1.0, %v2280
  %v2345 = vsub.f32 1.0, %v2281
  %v2346 = vmul.f32 %v1002, %v2282
  %v2347 = vmul.f32 %v1003, %v2283
  %v2348 = vmul.f32 %v1004, %v2284
  %v2349 = vmul.f32 %v1005, %v2285
  %v2350 = vmul.f32 %v1006, %v2286
  %v2351 = vmul.f32 %v1007, %v2287
  %v2352 = vmul.f32 %v1008, %v2288
  %v2353 = vmul.f32 %v1009, %v2289
  %v2354 = vmul.f32 %v1010, %v2290
  %v2355 = vmul.f32 %v1011, %v2291
  %v2356 = vmul.f32 %v1012, %v2292
  %v2357 = vmul.f32 %v1013, %v2293
  %v2358 = vmul.f32 %v1014, %v2294
  %v2359 = vmul.f32 %v1015, %v2295
  %v2360 = vmul.f32 %v1016, %v2296
  %v2361 = vmul.f32 %v1017, %v2297
  %v2362 = vmul.f32 %v1018, %v2298
  %v2363 = vmul.f32 %v1019, %v2299
  %v2364 = vmul.f32 %v1020, %v2300
  %v2365 = vmul.f32 %v1021, %v2301
  %v2366 = vmul.f32 %v1022, %v2302
  %v2367 = vmul.f32 %v1023, %v2303
  %v2368 = vmul.f32 %v1024, %v2304
  %v2369 = vmul.f32 %v1025, %v2305
  %v2370 = vmul.f32 %v1026, %v2306
  %v2371 = vmul.f32 %v1027, %v2307
  %v2372 = vmul.f32 %v1028, %v2308
  %v2373 = vmul.f32 %v1029, %v2309
  %v2374 = vmul.f32 %v1030, %v2310
  %v2375 = vmul.f32 %v1031, %v2311
  %v2376 = vmul.f32 %v1032, %v2312
  %v2377 = vmul.f32 %v1033, %v2313
  %v2378 = vmul.f32 %v1034, %v2314
  %v2379 = vmul.f32 %v1035, %v2315
  %v2380 = vmul.f32 %v1036, %v2316
  %v2381 = vmul.f32 %v1037, %v2317
  %v2382 = vmul.f32 %v1038, %v2318
  %v2383 = vmul.f32 %v1039, %v2319
  %v2384 = vmul.f32 %v1040, %v2320
  %v2385 = vmul.f32 %v1041, %v2321
  %v2386 = vmul.f32 %v1042, %v2322
  %v2387 = vmul.f32 %v1043, %v2323
  %v2388 = vmul.f32 %v1044, %v2324
  %v2389 = vmul.f32 %v1045, %v2325
  %v2390 = vmul.f32 %v1046, %v2326
  %v2391 = vmul.f32 %v1047, %v2327
  %v2392 = vmul.f32 %v1048, %v2328
  %v2393 = vmul.f32 %v1049, %v2329
  %v2394 = vmul.f32 %v1050, %v2330
  %v2395 = vmul.f32 %v1051, %v2331
  %v2396 = vmul.f32 %v1052, %v2332
  %v2397 = vmul.f32 %v1053, %v2333
  %v2398 = vmul.f32 %v1054, %v2334
  %v2399 = vmul.f32 %v1055, %v2335
  %v2400 = vmul.f32 %v1056, %v2336
  %v2401 = vmul.f32 %v1057, %v2337
  %v2402 = vmul.f32 %v1058, %v2338
  %v2403 = vmul.f32 %v1059, %v2339
  %v2404 = vmul.f32 %v1060, %v2340
  %v2405 = vmul.f32 %v1061, %v2341
  %v2406 = vmul.f32 %v1062, %v2342
  %v2407 = vmul.f32 %v1063, %v2343
  %v2408 = vmul.f32 %v1064, %v2344
  %v2409 = vmul.f32 %v1065, %v2345
  %v2410 = vadd.f32 %v2346, 1.0
  %v2411 = vadd.f32 %v2347, 1.0
  %v2412 = vadd.f32 %v2348, 1.0
  %v2413 = vadd.f32 %v2349, 1.0
  %v2414 = vadd.f32 %v2350, 1.0
  %v2415 = vadd.f32 %v2351, 1.0
  %v2416 = vadd.f32 %v2352, 1.0
  %v2417 = vadd.f32 %v2353, 1.0
  %v2418 = vadd.f32 %v2354, 1.0
  %v2419 = vadd.f32 %v2355, 1.0
  %v2420 = vadd.f32 %v2356, 1.0
  %v2421 = vadd.f32 %v2357, 1.0
  %v2422 = vadd.f32 %v2358, 1.0
  %v2423 = vadd.f32 %v2359, 1.0
  %v2424 = vadd.f32 %v2360, 1.0
  %v2425 = vadd.f32 %v2361, 1.0
  %v2426 = vadd.f32 %v2362, 1.0
  %v2427 = vadd.f32 %v2363, 1.0
  %v2428 = vadd.f32 %v2364, 1.0
  %v2429 = vadd.f32 %v2365, 1.0
  %v2430 = vadd.f32 %v2366, 1.0
  %v2431 = vadd.f32 %v2367, 1.0
  %v2432 = vadd.f32 %v2368, 1.0
  %v2433 = vadd.f32 %v2369, 1.0
  %v2434 = vadd.f32 %v2370, 1.0
  %v2435 = vadd.f32 %v2371, 1.0
  %v2436 = vadd.f32 %v2372, 1.0
  %v2437 = vadd.f32 %v2373, 1.0
  %v2438 = vadd.f32 %v2374, 1.0
  %v2439 = vadd.f32 %v2375, 1.0
  %v2440 = vadd.f32 %v2376, 1.0
  %v2441 = vadd.f32 %v2377, 1.0
  %v2442 = vadd.f32 %v2378, 1.0
  %v2443 = vadd.f32 %v2379, 1.0
  %v2444 = vadd.f32 %v2380, 1.0
  %v2445 = vadd.f32 %v2381, 1.0
  %v2446 = vadd.f32 %v2382, 1.0
  %v2447 = vadd.f32 %v2383, 1.0
  %v2448 = vadd.f32 %v2384, 1.0
  %v2449 = vadd.f32 %v2385, 1.0
  %v2450 = vadd.f32 %v2386, 1.0
  %v2451 = vadd.f32 %v2387, 1.0
  %v2452 = vadd.f32 %v2388, 1.0
  %v2453 = vadd.f32 %v2389, 1.0
  %v2454 = vadd.f32 %v2390, 1.0
  %v2455 = vadd.f32 %v2391, 1.0
  %v2456 = vadd.f32 %v2392, 1.0
  %v2457 = vadd.f32 %v2393, 1.0
  %v2458 = vadd.f32 %v2394, 1.0
  %v2459 = vadd.f32 %v2395, 1.0
  %v2460 = vadd.f32 %v2396, 1.0
  %v2461 = vadd.f32 %v2397, 1.0
  %v2462 = vadd.f32 %v2398, 1.0
  %v2463 = vadd.f32 %v2399, 1.0
  %v2464 = vadd.f32 %v2400, 1.0
  %v2465 = vadd.f32 %v2401, 1.0
  %v2466 = vadd.f32 %v2402, 1.0
  %v2467 = vadd.f32 %v2403, 1.0
  %v2468 = vadd.f32 %v2404, 1.0
  %v2469 = vadd.f32 %v2405, 1.0
  %v2470 = vadd.f32 %v2406, 1.0
  %v2471 = vadd.f32 %v2407, 1.0
  %v2472 = vadd.f32 %v2408, 1.0
  %v2473 = vadd.f32 %v2409, 1.0
  %v2474 = vmul.f32 %v810, %v2410
  %v2475 = vmul.f32 %v811, %v2411
  %v2476 = vmul.f32 %v812, %v2412
  %v2477 = vmul.f32 %v813, %v2413
  %v2478 = vmul.f32 %v814, %v2414
  %v2479 = vmul.f32 %v815, %v2415
  %v2480 = vmul.f32 %v816, %v2416
  %v2481 = vmul.f32 %v817, %v2417
  %v2482 = vmul.f32 %v818, %v2418
  %v2483 = vmul.f32 %v819, %v2419
  %v2484 = vmul.f32 %v820, %v2420
  %v2485 = vmul.f32 %v821, %v2421
  %v2486 = vmul.f32 %v822, %v2422
  %v2487 = vmul.f32 %v823, %v2423
  %v2488 = vmul.f32 %v824, %v2424
  %v2489 = vmul.f32 %v825, %v2425
  %v2490 = vmul.f32 %v826, %v2426
  %v2491 = vmul.f32 %v827, %v2427
  %v2492 = vmul.f32 %v828, %v2428
  %v2493 = vmul.f32 %v829, %v2429
  %v2494 = vmul.f32 %v830, %v2430
  %v2495 = vmul.f32 %v831, %v2431
  %v2496 = vmul.f32 %v832, %v2432
  %v2497 = vmul.f32 %v833, %v2433
  %v2498 = vmul.f32 %v834, %v2434
  %v2499 = vmul.f32 %v835, %v2435
  %v2500 = vmul.f32 %v836, %v2436
  %v2501 = vmul.f32 %v837, %v2437
  %v2502 = vmul.f32 %v838, %v2438
  %v2503 = vmul.f32 %v839, %v2439
  %v2504 = vmul.f32 %v840, %v2440
  %v2505 = vmul.f32 %v841, %v2441
  %v2506 = vmul.f32 %v842, %v2442
  %v2507 = vmul.f32 %v843, %v2443
  %v2508 = vmul.f32 %v844, %v2444
  %v2509 = vmul.f32 %v845, %v2445
  %v2510 = vmul.f32 %v846, %v2446
  %v2511 = vmul.f32 %v847, %v2447
  %v2512 = vmul.f32 %v848, %v2448
  %v2513 = vmul.f32 %v849, %v2449
  %v2514 = vmul.f32 %v850, %v2450
  %v2515 = vmul.f32 %v851, %v2451
  %v2516 = vmul.f32 %v852, %v2452
  %v2517 = vmul.f32 %v853, %v2453
  %v2518 = vmul.f32 %v854, %v2454
  %v2519 = vmul.f32 %v855, %v2455
  %v2520 = vmul.f32 %v856, %v2456
  %v2521 = vmul.f32 %v857, %v2457
  %v2522 = vmul.f32 %v858, %v2458
  %v2523 = vmul.f32 %v859, %v2459
  %v2524 = vmul.f32 %v860, %v2460
  %v2525 = vmul.f32 %v861, %v2461
  %v2526 = vmul.f32 %v862, %v2462
  %v2527 = vmul.f32 %v863, %v2463
  %v2528 = vmul.f32 %v864, %v2464
  %v2529 = vmul.f32 %v865, %v2465
  %v2530 = vmul.f32 %v866, %v2466
  %v2531 = vmul.f32 %v867, %v2467
  %v2532 = vmul.f32 %v868, %v2468
  %v2533 = vmul.f32 %v869, %v2469
  %v2534 = vmul.f32 %v870, %v2470
  %v2535 = vmul.f32 %v871, %v2471
  %v2536 = vmul.f32 %v872, %v2472
  %v2537 = vmul.f32 %v873, %v2473
  %vm2538 = vcmask 31744
  %2539 = vst.msk [vmem:[%s4] sm:$0xff] %vm2538, %v2474
  %2540 = vst.msk [vmem:[%s4 + $0x8] sm:$0xff] %vm2538, %v2475
  %2541 = vst.msk [vmem:[%s4 + $0x10] sm:$0xff] %vm2538, %v2476
  %2542 = vst.msk [vmem:[%s4 + $0x18] sm:$0xff] %vm2538, %v2477
  %2543 = vst.msk [vmem:[%s4 + $0x20] sm:$0xff] %vm2538, %v2478
  %2544 = vst.msk [vmem:[%s4 + $0x28] sm:$0xff] %vm2538, %v2479
  %2545 = vst.msk [vmem:[%s4 + $0x30] sm:$0xff] %vm2538, %v2480
  %2546 = vst.msk [vmem:[%s4 + $0x38] sm:$0xff] %vm2538, %v2481
  %2547 = vst.msk [vmem:[%s4 + $0x40] sm:$0xff] %vm2538, %v2482
  %2548 = vst.msk [vmem:[%s4 + $0x48] sm:$0xff] %vm2538, %v2483
  %2549 = vst.msk [vmem:[%s4 + $0x50] sm:$0xff] %vm2538, %v2484
  %2550 = vst.msk [vmem:[%s4 + $0x58] sm:$0xff] %vm2538, %v2485
  %2551 = vst.msk [vmem:[%s4 + $0x60] sm:$0xff] %vm2538, %v2486
  %2552 = vst.msk [vmem:[%s4 + $0x68] sm:$0xff] %vm2538, %v2487
  %2553 = vst.msk [vmem:[%s4 + $0x70] sm:$0xff] %vm2538, %v2488
  %2554 = vst.msk [vmem:[%s4 + $0x78] sm:$0xff] %vm2538, %v2489
  %2555 = vst.msk [vmem:[%s4 + $0x80] sm:$0xff] %vm2538, %v2490
  %2556 = vst.msk [vmem:[%s4 + $0x88] sm:$0xff] %vm2538, %v2491
  %2557 = vst.msk [vmem:[%s4 + $0x90] sm:$0xff] %vm2538, %v2492
  %2558 = vst.msk [vmem:[%s4 + $0x98] sm:$0xff] %vm2538, %v2493
  %2559 = vst.msk [vmem:[%s4 + $0xa0] sm:$0xff] %vm2538, %v2494
  %2560 = vst.msk [vmem:[%s4 + $0xa8] sm:$0xff] %vm2538, %v2495
  %2561 = vst.msk [vmem:[%s4 + $0xb0] sm:$0xff] %vm2538, %v2496
  %2562 = vst.msk [vmem:[%s4 + $0xb8] sm:$0xff] %vm2538, %v2497
  %2563 = vst.msk [vmem:[%s4 + $0xc0] sm:$0xff] %vm2538, %v2498
  %2564 = vst.msk [vmem:[%s4 + $0xc8] sm:$0xff] %vm2538, %v2499
  %2565 = vst.msk [vmem:[%s4 + $0xd0] sm:$0xff] %vm2538, %v2500
  %2566 = vst.msk [vmem:[%s4 + $0xd8] sm:$0xff] %vm2538, %v2501
  %2567 = vst.msk [vmem:[%s4 + $0xe0] sm:$0xff] %vm2538, %v2502
  %2568 = vst.msk [vmem:[%s4 + $0xe8] sm:$0xff] %vm2538, %v2503
  %2569 = vst.msk [vmem:[%s4 + $0xf0] sm:$0xff] %vm2538, %v2504
  %2570 = vst.msk [vmem:[%s4 + $0xf8] sm:$0xff] %vm2538, %v2505
  %2571 = vst.msk [vmem:[%s4 + $0x100] sm:$0xff] %vm2538, %v2506
  %2572 = vst.msk [vmem:[%s4 + $0x108] sm:$0xff] %vm2538, %v2507
  %2573 = vst.msk [vmem:[%s4 + $0x110] sm:$0xff] %vm2538, %v2508
  %2574 = vst.msk [vmem:[%s4 + $0x118] sm:$0xff] %vm2538, %v2509
  %2575 = vst.msk [vmem:[%s4 + $0x120] sm:$0xff] %vm2538, %v2510
  %2576 = vst.msk [vmem:[%s4 + $0x128] sm:$0xff] %vm2538, %v2511
  %2577 = vst.msk [vmem:[%s4 + $0x130] sm:$0xff] %vm2538, %v2512
  %2578 = vst.msk [vmem:[%s4 + $0x138] sm:$0xff] %vm2538, %v2513
  %2579 = vst.msk [vmem:[%s4 + $0x140] sm:$0xff] %vm2538, %v2514
  %2580 = vst.msk [vmem:[%s4 + $0x148] sm:$0xff] %vm2538, %v2515
  %2581 = vst.msk [vmem:[%s4 + $0x150] sm:$0xff] %vm2538, %v2516
  %2582 = vst.msk [vmem:[%s4 + $0x158] sm:$0xff] %vm2538, %v2517
  %2583 = vst.msk [vmem:[%s4 + $0x160] sm:$0xff] %vm2538, %v2518
  %2584 = vst.msk [vmem:[%s4 + $0x168] sm:$0xff] %vm2538, %v2519
  %2585 = vst.msk [vmem:[%s4 + $0x170] sm:$0xff] %vm2538, %v2520
  %2586 = vst.msk [vmem:[%s4 + $0x178] sm:$0xff] %vm2538, %v2521
  %2587 = vst.msk [vmem:[%s4 + $0x180] sm:$0xff] %vm2538, %v2522
  %2588 = vst.msk [vmem:[%s4 + $0x188] sm:$0xff] %vm2538, %v2523
  %2589 = vst.msk [vmem:[%s4 + $0x190] sm:$0xff] %vm2538, %v2524
  %2590 = vst.msk [vmem:[%s4 + $0x198] sm:$0xff] %vm2538, %v2525
  %2591 = vst.msk [vmem:[%s4 + $0x1a0] sm:$0xff] %vm2538, %v2526
  %2592 = vst.msk [vmem:[%s4 + $0x1a8] sm:$0xff] %vm2538, %v2527
  %2593 = vst.msk [vmem:[%s4 + $0x1b0] sm:$0xff] %vm2538, %v2528
  %2594 = vst.msk [vmem:[%s4 + $0x1b8] sm:$0xff] %vm2538, %v2529
  %2595 = vst.msk [vmem:[%s4 + $0x1c0] sm:$0xff] %vm2538, %v2530
  %2596 = vst.msk [vmem:[%s4 + $0x1c8] sm:$0xff] %vm2538, %v2531
  %2597 = vst.msk [vmem:[%s4 + $0x1d0] sm:$0xff] %vm2538, %v2532
  %2598 = vst.msk [vmem:[%s4 + $0x1d8] sm:$0xff] %vm2538, %v2533
  %2599 = vst.msk [vmem:[%s4 + $0x1e0] sm:$0xff] %vm2538, %v2534
  %2600 = vst.msk [vmem:[%s4 + $0x1e8] sm:$0xff] %vm2538, %v2535
  %2601 = vst.msk [vmem:[%s4 + $0x1f0] sm:$0xff] %vm2538, %v2536
  %2602 = vst.msk [vmem:[%s4 + $0x1f8] sm:$0xff] %vm2538, %v2537
  // Predicated region
  $region18: #{csfm_forward.5} parent=0 // pred_check
    _
  $region19: #{csfm_forward.5} parent=0 // pred_check_branch
    %2604 = sbr.rel (0) target = $region21
  $region20: #{csfm_forward.5} parent=0 // pred_region
    _
  $region21: #{csfm_forward.5} parent=0 // pred_fallthru
    _
  // Predicated region
  $region22: #{csfm_forward.5} parent=0 // pred_check
    _
  $region23: #{csfm_forward.5} parent=0 // pred_check_branch
    %2606 = sbr.rel (0) target = $region25
  $region24: #{csfm_forward.5} parent=0 // pred_region
    _
  $region25: #{csfm_forward.5} parent=0 // pred_fallthru
    _

// kernel: csfm_forward.6
$region0: #{csfm_forward.6}
  #allocation0 [shape = 'u32[]', space=smem, size = 0x4, offset = 0x4, fixed_abs, tag = 'smem constant byte address 0x4 - core index']
  #allocation1 [shape = 'u32[144,128]{1,0:T(1,128)}', space=vmem, size = 0x12000, scoped, tag = 'internal scratch']
  %s0 = inlined_call_operand.vmem [shape: f32[2,256,8], index: 0, kind: input, shape index: {}]
  %s1 = inlined_call_operand.vmem [shape: f32[8,8], index: 1, kind: input, shape index: {}]
  %s2 = inlined_call_operand.vmem [shape: f32[2,8], index: 2, kind: output, shape index: {}]
  %s3 = sld [smem:[#allocation0]]
  $region18: #{csfm_forward.6} parent=0
    _
  %s5 = ssub.s32 1, %s3
  %s6 = scalar_select 0, %s5, %s3
  // Predicated region
  $region2: #{csfm_forward.6} parent=0 // pred_check
    _
  $region3: #{csfm_forward.6} parent=0 // pred_check_branch
    %8 = sbr.rel (0) target = $region5
  $region4: #{csfm_forward.6} parent=0 // pred_region
    _
  $region5: #{csfm_forward.6} parent=0 // pred_fallthru
    _
  // Predicated region
  $region6: #{csfm_forward.6} parent=0 // pred_check
    _
  $region7: #{csfm_forward.6} parent=0 // pred_check_branch
    %10 = sbr.rel (0) target = $region9
  $region8: #{csfm_forward.6} parent=0 // pred_region
    _
  $region9: #{csfm_forward.6} parent=0 // pred_fallthru
    _
  %v11 = vld [vmem:[%s0] sm:$0xff]
  %v12 = vld [vmem:[%s0 + $0x8] sm:$0xff]
  %v13 = vld [vmem:[%s0 + $0x10] sm:$0xff]
  %v14 = vld [vmem:[%s0 + $0x18] sm:$0xff]
  %v15 = vld [vmem:[%s0 + $0x20] sm:$0xff]
  %v16 = vld [vmem:[%s0 + $0x28] sm:$0xff]
  %v17 = vld [vmem:[%s0 + $0x30] sm:$0xff]
  %v18 = vld [vmem:[%s0 + $0x38] sm:$0xff]
  %v19 = vld [vmem:[%s0 + $0x40] sm:$0xff]
  %v20 = vld [vmem:[%s0 + $0x48] sm:$0xff]
  %v21 = vld [vmem:[%s0 + $0x50] sm:$0xff]
  %v22 = vld [vmem:[%s0 + $0x58] sm:$0xff]
  %v23 = vld [vmem:[%s0 + $0x60] sm:$0xff]
  %v24 = vld [vmem:[%s0 + $0x68] sm:$0xff]
  %v25 = vld [vmem:[%s0 + $0x70] sm:$0xff]
  %v26 = vld [vmem:[%s0 + $0x78] sm:$0xff]
  %v27 = vld [vmem:[%s0 + $0x80] sm:$0xff]
  %v28 = vld [vmem:[%s0 + $0x88] sm:$0xff]
  %v29 = vld [vmem:[%s0 + $0x90] sm:$0xff]
  %v30 = vld [vmem:[%s0 + $0x98] sm:$0xff]
  %v31 = vld [vmem:[%s0 + $0xa0] sm:$0xff]
  %v32 = vld [vmem:[%s0 + $0xa8] sm:$0xff]
  %v33 = vld [vmem:[%s0 + $0xb0] sm:$0xff]
  %v34 = vld [vmem:[%s0 + $0xb8] sm:$0xff]
  %v35 = vld [vmem:[%s0 + $0xc0] sm:$0xff]
  %v36 = vld [vmem:[%s0 + $0xc8] sm:$0xff]
  %v37 = vld [vmem:[%s0 + $0xd0] sm:$0xff]
  %v38 = vld [vmem:[%s0 + $0xd8] sm:$0xff]
  %v39 = vld [vmem:[%s0 + $0xe0] sm:$0xff]
  %v40 = vld [vmem:[%s0 + $0xe8] sm:$0xff]
  %v41 = vld [vmem:[%s0 + $0xf0] sm:$0xff]
  %v42 = vld [vmem:[%s0 + $0xf8] sm:$0xff]
  %v43 = vld [vmem:[%s0 + $0x100] sm:$0xff]
  %v44 = vld [vmem:[%s0 + $0x108] sm:$0xff]
  %v45 = vld [vmem:[%s0 + $0x110] sm:$0xff]
  %v46 = vld [vmem:[%s0 + $0x118] sm:$0xff]
  %v47 = vld [vmem:[%s0 + $0x120] sm:$0xff]
  %v48 = vld [vmem:[%s0 + $0x128] sm:$0xff]
  %v49 = vld [vmem:[%s0 + $0x130] sm:$0xff]
  %v50 = vld [vmem:[%s0 + $0x138] sm:$0xff]
  %v51 = vld [vmem:[%s0 + $0x140] sm:$0xff]
  %v52 = vld [vmem:[%s0 + $0x148] sm:$0xff]
  %v53 = vld [vmem:[%s0 + $0x150] sm:$0xff]
  %v54 = vld [vmem:[%s0 + $0x158] sm:$0xff]
  %v55 = vld [vmem:[%s0 + $0x160] sm:$0xff]
  %v56 = vld [vmem:[%s0 + $0x168] sm:$0xff]
  %v57 = vld [vmem:[%s0 + $0x170] sm:$0xff]
  %v58 = vld [vmem:[%s0 + $0x178] sm:$0xff]
  %v59 = vld [vmem:[%s0 + $0x180] sm:$0xff]
  %v60 = vld [vmem:[%s0 + $0x188] sm:$0xff]
  %v61 = vld [vmem:[%s0 + $0x190] sm:$0xff]
  %v62 = vld [vmem:[%s0 + $0x198] sm:$0xff]
  %v63 = vld [vmem:[%s0 + $0x1a0] sm:$0xff]
  %v64 = vld [vmem:[%s0 + $0x1a8] sm:$0xff]
  %v65 = vld [vmem:[%s0 + $0x1b0] sm:$0xff]
  %v66 = vld [vmem:[%s0 + $0x1b8] sm:$0xff]
  %v67 = vld [vmem:[%s0 + $0x1c0] sm:$0xff]
  %v68 = vld [vmem:[%s0 + $0x1c8] sm:$0xff]
  %v69 = vld [vmem:[%s0 + $0x1d0] sm:$0xff]
  %v70 = vld [vmem:[%s0 + $0x1d8] sm:$0xff]
  %v71 = vld [vmem:[%s0 + $0x1e0] sm:$0xff]
  %v72 = vld [vmem:[%s0 + $0x1e8] sm:$0xff]
  %v73 = vld [vmem:[%s0 + $0x1f0] sm:$0xff]
  %v74 = vld [vmem:[%s0 + $0x1f8] sm:$0xff]
  %vm75 = vcmask 64512
  %v76 = vsel %vm75, %v11, 0.0
  %v77 = vsel %vm75, %v12, 0.0
  %v78 = vadd.f32 %v76, %v77
  %v79 = vsel %vm75, %v13, 0.0
  %v80 = vadd.f32 %v78, %v79
  %v81 = vsel %vm75, %v14, 0.0
  %v82 = vadd.f32 %v80, %v81
  %v83 = vsel %vm75, %v15, 0.0
  %v84 = vadd.f32 %v82, %v83
  %v85 = vsel %vm75, %v16, 0.0
  %v86 = vadd.f32 %v84, %v85
  %v87 = vsel %vm75, %v17, 0.0
  %v88 = vadd.f32 %v86, %v87
  %v89 = vsel %vm75, %v18, 0.0
  %v90 = vadd.f32 %v88, %v89
  %v91 = vsel %vm75, %v19, 0.0
  %v92 = vadd.f32 %v90, %v91
  %v93 = vsel %vm75, %v20, 0.0
  %v94 = vadd.f32 %v92, %v93
  %v95 = vsel %vm75, %v21, 0.0
  %v96 = vadd.f32 %v94, %v95
  %v97 = vsel %vm75, %v22, 0.0
  %v98 = vadd.f32 %v96, %v97
  %v99 = vsel %vm75, %v23, 0.0
  %v100 = vadd.f32 %v98, %v99
  %v101 = vsel %vm75, %v24, 0.0
  %v102 = vadd.f32 %v100, %v101
  %v103 = vsel %vm75, %v25, 0.0
  %v104 = vadd.f32 %v102, %v103
  %v105 = vsel %vm75, %v26, 0.0
  %v106 = vadd.f32 %v104, %v105
  %v107 = vsel %vm75, %v27, 0.0
  %v108 = vadd.f32 %v106, %v107
  %v109 = vsel %vm75, %v28, 0.0
  %v110 = vadd.f32 %v108, %v109
  %v111 = vsel %vm75, %v29, 0.0
  %v112 = vadd.f32 %v110, %v111
  %v113 = vsel %vm75, %v30, 0.0
  %v114 = vadd.f32 %v112, %v113
  %v115 = vsel %vm75, %v31, 0.0
  %v116 = vadd.f32 %v114, %v115
  %v117 = vsel %vm75, %v32, 0.0
  %v118 = vadd.f32 %v116, %v117
  %v119 = vsel %vm75, %v33, 0.0
  %v120 = vadd.f32 %v118, %v119
  %v121 = vsel %vm75, %v34, 0.0
  %v122 = vadd.f32 %v120, %v121
  %v123 = vsel %vm75, %v35, 0.0
  %v124 = vadd.f32 %v122, %v123
  %v125 = vsel %vm75, %v36, 0.0
  %v126 = vadd.f32 %v124, %v125
  %v127 = vsel %vm75, %v37, 0.0
  %v128 = vadd.f32 %v126, %v127
  %v129 = vsel %vm75, %v38, 0.0
  %v130 = vadd.f32 %v128, %v129
  %v131 = vsel %vm75, %v39, 0.0
  %v132 = vadd.f32 %v130, %v131
  %v133 = vsel %vm75, %v40, 0.0
  %v134 = vadd.f32 %v132, %v133
  %v135 = vsel %vm75, %v41, 0.0
  %v136 = vadd.f32 %v134, %v135
  %v137 = vsel %vm75, %v42, 0.0
  %v138 = vadd.f32 %v136, %v137
  %v139 = vrot.slane %v138, 4
  %v140 = vadd.f32 %v138, %v139
  %v141 = vrot.slane %v140, 2
  %v142 = vadd.f32 %v140, %v141
  %v143 = vrot.slane %v142, 1
  %v144 = vadd.f32 %v142, %v143
  %v145 = vsel %vm75, %v43, 0.0
  %v146 = vsel %vm75, %v44, 0.0
  %v147 = vadd.f32 %v145, %v146
  %v148 = vsel %vm75, %v45, 0.0
  %v149 = vadd.f32 %v147, %v148
  %v150 = vsel %vm75, %v46, 0.0
  %v151 = vadd.f32 %v149, %v150
  %v152 = vsel %vm75, %v47, 0.0
  %v153 = vadd.f32 %v151, %v152
  %v154 = vsel %vm75, %v48, 0.0
  %v155 = vadd.f32 %v153, %v154
  %v156 = vsel %vm75, %v49, 0.0
  %v157 = vadd.f32 %v155, %v156
  %v158 = vsel %vm75, %v50, 0.0
  %v159 = vadd.f32 %v157, %v158
  %v160 = vsel %vm75, %v51, 0.0
  %v161 = vadd.f32 %v159, %v160
  %v162 = vsel %vm75, %v52, 0.0
  %v163 = vadd.f32 %v161, %v162
  %v164 = vsel %vm75, %v53, 0.0
  %v165 = vadd.f32 %v163, %v164
  %v166 = vsel %vm75, %v54, 0.0
  %v167 = vadd.f32 %v165, %v166
  %v168 = vsel %vm75, %v55, 0.0
  %v169 = vadd.f32 %v167, %v168
  %v170 = vsel %vm75, %v56, 0.0
  %v171 = vadd.f32 %v169, %v170
  %v172 = vsel %vm75, %v57, 0.0
  %v173 = vadd.f32 %v171, %v172
  %v174 = vsel %vm75, %v58, 0.0
  %v175 = vadd.f32 %v173, %v174
  %v176 = vsel %vm75, %v59, 0.0
  %v177 = vadd.f32 %v175, %v176
  %v178 = vsel %vm75, %v60, 0.0
  %v179 = vadd.f32 %v177, %v178
  %v180 = vsel %vm75, %v61, 0.0
  %v181 = vadd.f32 %v179, %v180
  %v182 = vsel %vm75, %v62, 0.0
  %v183 = vadd.f32 %v181, %v182
  %v184 = vsel %vm75, %v63, 0.0
  %v185 = vadd.f32 %v183, %v184
  %v186 = vsel %vm75, %v64, 0.0
  %v187 = vadd.f32 %v185, %v186
  %v188 = vsel %vm75, %v65, 0.0
  %v189 = vadd.f32 %v187, %v188
  %v190 = vsel %vm75, %v66, 0.0
  %v191 = vadd.f32 %v189, %v190
  %v192 = vsel %vm75, %v67, 0.0
  %v193 = vadd.f32 %v191, %v192
  %v194 = vsel %vm75, %v68, 0.0
  %v195 = vadd.f32 %v193, %v194
  %v196 = vsel %vm75, %v69, 0.0
  %v197 = vadd.f32 %v195, %v196
  %v198 = vsel %vm75, %v70, 0.0
  %v199 = vadd.f32 %v197, %v198
  %v200 = vsel %vm75, %v71, 0.0
  %v201 = vadd.f32 %v199, %v200
  %v202 = vsel %vm75, %v72, 0.0
  %v203 = vadd.f32 %v201, %v202
  %v204 = vsel %vm75, %v73, 0.0
  %v205 = vadd.f32 %v203, %v204
  %v206 = vsel %vm75, %v74, 0.0
  %v207 = vadd.f32 %v205, %v206
  %v208 = vrot.slane %v207, 4
  %v209 = vadd.f32 %v207, %v208
  %v210 = vrot.slane %v209, 2
  %v211 = vadd.f32 %v209, %v210
  %v212 = vrot.slane %v211, 1
  %v213 = vadd.f32 %v211, %v212
  %v214 = vrcp.pop 256.0
  %v215 = vmul.f32 %v144, %v214
  %v216 = vmul.f32 %v213, %v214
  %v217 = vld [vmem:[%s1] sm:$0xff]
  %vm220 = vcmask 1041409
  %v221 = vsel %vm220, %v216, %v215
  %v222 = vsel %vm75, %v221, 0
  %224 = vmatprep.subr.mxu0 0.0
  %225 = vmatpush1.msra.mxu0 0.0
  %226 = vmatprep.subr.mxu0 0.0
  %227 = vmatpush1.msra.mxu0 0.0
  %228 = vmatprep.subr.mxu0 0.0
  %229 = vmatpush1.msra.mxu0 0.0
  %230 = vmatprep.subr.mxu0 0.0
  %231 = vmatpush1.msra.mxu0 0.0
  %232 = vmatprep.subr.mxu0 0.0
  %233 = vmatpush1.msra.mxu0 0.0
  %234 = vmatprep.subr.mxu0 0.0
  %235 = vmatpush1.msra.mxu0 0.0
  %236 = vmatprep.subr.mxu0 0.0
  %237 = vmatpush1.msra.mxu0 0.0
  %238 = vmatprep.subr.mxu0 0.0
  %239 = vmatpush1.msra.mxu0 0.0
  %240 = vmatprep.subr.mxu0 0.0
  %241 = vmatpush1.msra.mxu0 0.0
  %242 = vmatprep.subr.mxu0 0.0
  %243 = vmatpush1.msra.mxu0 0.0
  %244 = vmatprep.subr.mxu0 0.0
  %245 = vmatpush1.msra.mxu0 0.0
  %246 = vmatprep.subr.mxu0 0.0
  %247 = vmatpush1.msra.mxu0 0.0
  %248 = vmatprep.subr.mxu0 0.0
  %249 = vmatpush1.msra.mxu0 0.0
  %250 = vmatprep.subr.mxu0 0.0
  %251 = vmatpush1.msra.mxu0 0.0
  %252 = vmatprep.subr.mxu0 0.0
  %253 = vmatpush1.msra.mxu0 0.0
  %254 = vmatprep.subr.mxu0 0.0
  %255 = vmatpush1.msra.mxu0 %v217
  %256 = vmatprep.subr.mxu0 0.0
  %257 = vmatpush2.msra.mxu0 0.0
  %258 = vmatprep.subr.mxu0 0.0
  %259 = vmatpush2.msra.mxu0 0.0
  %260 = vmatprep.subr.mxu0 0.0
  %261 = vmatpush2.msra.mxu0 0.0
  %262 = vmatprep.subr.mxu0 0.0
  %263 = vmatpush2.msra.mxu0 0.0
  %264 = vmatprep.subr.mxu0 0.0
  %265 = vmatpush2.msra.mxu0 0.0
  %266 = vmatprep.subr.mxu0 0.0
  %267 = vmatpush2.msra.mxu0 0.0
  %268 = vmatprep.subr.mxu0 0.0
  %269 = vmatpush2.msra.mxu0 0.0
  %270 = vmatprep.subr.mxu0 0.0
  %271 = vmatpush2.msra.mxu0 0.0
  %272 = vmatprep.subr.mxu0 0.0
  %273 = vmatpush2.msra.mxu0 0.0
  %274 = vmatprep.subr.mxu0 0.0
  %275 = vmatpush2.msra.mxu0 0.0
  %276 = vmatprep.subr.mxu0 0.0
  %277 = vmatpush2.msra.mxu0 0.0
  %278 = vmatprep.subr.mxu0 0.0
  %279 = vmatpush2.msra.mxu0 0.0
  %280 = vmatprep.subr.mxu0 0.0
  %281 = vmatpush2.msra.mxu0 0.0
  %282 = vmatprep.subr.mxu0 0.0
  %283 = vmatpush2.msra.mxu0 0.0
  %284 = vmatprep.subr.mxu0 0.0
  %285 = vmatpush2.msra.mxu0 0.0
  %286 = vmatprep.subr.mxu0 0.0
  %287 = vmatpush2.msra.mxu0 0.0
  %288 = vmatprep.mubr.f32.mxu0 0.0
  %289 = vmatmul.mubr.f32.gmra.mxu0 %v222
  %v290 = vpop.f32.mrf.mxu0
  %v291 = vadd.f32 0.0, %v290
  %v292 = vpop.f32.mrf.mxu0
  %293 = vdwg.mxu0
  %v294 = vsub.f32 0.0, %v291
  %v295 = vmul.f32 %v294, 1.442695
  %v296 = vpow.pop %v295
  %v297 = vadd.f32 %v296, 1.0
  %v298 = vrcp.pop %v297
  %v299 = vmul.f32 1.0, %v298
  %vm300 = vcmask 58368
  %301 = vst.msk [vmem:[%s2] sm:$0x3] %vm300, %v299
  // Predicated region
  $region10: #{csfm_forward.6} parent=0 // pred_check
    _
  $region11: #{csfm_forward.6} parent=0 // pred_check_branch
    %303 = sbr.rel (0) target = $region13
  $region12: #{csfm_forward.6} parent=0 // pred_region
    _
  $region13: #{csfm_forward.6} parent=0 // pred_fallthru
    _
  // Predicated region
  $region14: #{csfm_forward.6} parent=0 // pred_check
    _
  $region15: #{csfm_forward.6} parent=0 // pred_check_branch
    %305 = sbr.rel (0) target = $region17
  $region16: #{csfm_forward.6} parent=0 // pred_region
    _
  $region17: #{csfm_forward.6} parent=0 // pred_fallthru
    _

// kernel: csfm_forward.7
$region0: #{csfm_forward.7}
  #allocation0 [shape = 'u32[]', space=smem, size = 0x4, offset = 0x4, fixed_abs, tag = 'smem constant byte address 0x4 - core index']
  #allocation1 [shape = 'u32[144,128]{1,0:T(1,128)}', space=vmem, size = 0x12000, scoped, tag = 'internal scratch']
  #allocation2 [shape = 'f32[1,1]{1,0:T(1,128)S(1)}', space=vmem, size = 0x200, scoped, tag = 'scoped memory for csfm_forward.7']
  %s0 = inlined_call_operand.vmem [shape: f32[2,256,8], index: 0, kind: input, shape index: {}]
  %s1 = inlined_call_operand.vmem [shape: f32[2,1,8], index: 1, kind: input, shape index: {}]
  %s2 = inlined_call_operand.vmem [shape: f32[8,4], index: 2, kind: input, shape index: {}]
  %s3 = inlined_call_operand.vmem [shape: f32[1,8], index: 3, kind: input, shape index: {}]
  %s4 = inlined_call_operand.<no memory space> [shape: f32[1,1], index: 4, kind: input, shape index: {}]
  %s5 = inlined_call_operand.vmem [shape: f32[2,256,4], index: 5, kind: output, shape index: {}]
  %s6 = sld [smem:[#allocation0]]
  $region53: #{csfm_forward.7} parent=0
    _
  %s8 = ssub.s32 1, %s6
  %s9 = scalar_select 0, %s8, %s6
  %v10 = vstv %s4
  %11 = vst [vmem:[#allocation2] sm:$0x1] %v10
  loop: start=0, step=1, limit=4
  $region2: #{csfm_forward.7} parent=0 // loop_pre_header
    _
  $region3: #{csfm_forward.7} parent=0 // loop_header
    %s13 = sphi 0, %s17
    %p14 = scmp.ge.s32.totalorder %s13, 4
    %s23 = sphi 0, %s25
    %s26 = sphi 0, %s23
    %s27 = sphi 0, %s26
    %s43 = sphi 0, %s27
    %s49 = sphi 0, %s51
    %s52 = sphi 0, %s49
    %s53 = sphi 0, %s52
    %s69 = sphi 0, %s53
    %s73 = sphi 0, %s73
    %s75 = sphi 0, %s73
    %s76 = sphi 0, %s75
    %s90 = sphi 0, %s76
    %s94 = sphi 0, %s94
    %s96 = sphi 0, %s94
    %s97 = sphi 0, %s96
    %s111 = sphi 0, %s97
    %s115 = sphi 0, %s115
    %s117 = sphi 0, %s115
    %s118 = sphi 0, %s117
    %s132 = sphi 0, %s118
    %s138 = sphi 0, %s140
    %s141 = sphi 0, %s138
    %s142 = sphi 0, %s141
    %s158 = sphi 0, %s142
  $region4: #{csfm_forward.7} parent=0 // loop_header_branch
    %16 = sbr.rel (%p14) target = $region8
  $region5: #{csfm_forward.7} parent=0 // loop_body
    %s18 = ssub.s32 %s13, 1
    %s19 = ssub.s32 %s13, 2
    %s20 = sadd.s32 %s13, 1
    %s21 = ssub.s32 %s13, %s20
    %p22 = scmp.eq.s32.totalorder %s21, 0
    %s24 = sadd.s32 %s23, 1
    %s25 = scalar_select %p22, %s23, %s24
    %p28 = pneg %p22
    %p29 = scmp.eq.s32.totalorder %s13, 1
    %p30 = por %p28, %p29
    %p31 = scmp.ne.s32.totalorder %s23, %s26
    %p32 = scmp.eq.s32.totalorder %s13, 0
    %p33 = por %p31, %p32
    %p34 = scmp.ne.s32.totalorder %s23, %s26
    %p35 = scmp.eq.s32.totalorder %s18, 1
    %p36 = por %p34, %p35
    %p37 = scmp.ne.s32.totalorder %s26, %s27
    %p38 = scmp.eq.s32.totalorder %s18, 0
    %p39 = por %p37, %p38
    %p40 = scmp.ne.s32.totalorder %s26, %s27
    %p41 = scmp.eq.s32.totalorder %s19, 1
    %p42 = por %p40, %p41
    %p44 = scmp.ne.s32.totalorder %s27, %s43
    %p45 = scmp.eq.s32.totalorder %s19, 0
    %p46 = por %p44, %p45
    %s47 = ssub.s32 %s13, %s20
    %p48 = scmp.eq.s32.totalorder %s47, 0
    %s50 = sadd.s32 %s49, 1
    %s51 = scalar_select %p48, %s49, %s50
    %p54 = pneg %p48
    %p55 = scmp.eq.s32.totalorder %s13, 1
    %p56 = por %p54, %p55
    %p57 = scmp.ne.s32.totalorder %s49, %s52
    %p58 = scmp.eq.s32.totalorder %s13, 0
    %p59 = por %p57, %p58
    %p60 = scmp.ne.s32.totalorder %s49, %s52
    %p61 = scmp.eq.s32.totalorder %s18, 1
    %p62 = por %p60, %p61
    %p63 = scmp.ne.s32.totalorder %s52, %s53
    %p64 = scmp.eq.s32.totalorder %s18, 0
    %p65 = por %p63, %p64
    %p66 = scmp.ne.s32.totalorder %s52, %s53
    %p67 = scmp.eq.s32.totalorder %s19, 1
    %p68 = por %p66, %p67
    %p70 = scmp.ne.s32.totalorder %s53, %s69
    %p71 = scmp.eq.s32.totalorder %s19, 0
    %p72 = por %p70, %p71
    %s74 = sadd.s32 %s73, 1
    %p77 = scmp.eq.s32.totalorder %s13, 1
    %p78 = scmp.ne.s32.totalorder %s73, %s75
    %p79 = scmp.eq.s32.totalorder %s13, 0
    %p80 = por %p78, %p79
    %p81 = scmp.ne.s32.totalorder %s73, %s75
    %p82 = scmp.eq.s32.totalorder %s18, 1
    %p83 = por %p81, %p82
    %p84 = scmp.ne.s32.totalorder %s75, %s76
    %p85 = scmp.eq.s32.totalorder %s18, 0
    %p86 = por %p84, %p85
    %p87 = scmp.ne.s32.totalorder %s75, %s76
    %p88 = scmp.eq.s32.totalorder %s19, 1
    %p89 = por %p87, %p88
    %p91 = scmp.ne.s32.totalorder %s76, %s90
    %p92 = scmp.eq.s32.totalorder %s19, 0
    %p93 = por %p91, %p92
    %s95 = sadd.s32 %s94, 1
    %p98 = scmp.eq.s32.totalorder %s13, 1
    %p99 = scmp.ne.s32.totalorder %s94, %s96
    %p100 = scmp.eq.s32.totalorder %s13, 0
    %p101 = por %p99, %p100
    %p102 = scmp.ne.s32.totalorder %s94, %s96
    %p103 = scmp.eq.s32.totalorder %s18, 1
    %p104 = por %p102, %p103
    %p105 = scmp.ne.s32.totalorder %s96, %s97
    %p106 = scmp.eq.s32.totalorder %s18, 0
    %p107 = por %p105, %p106
    %p108 = scmp.ne.s32.totalorder %s96, %s97
    %p109 = scmp.eq.s32.totalorder %s19, 1
    %p110 = por %p108, %p109
    %p112 = scmp.ne.s32.totalorder %s97, %s111
    %p113 = scmp.eq.s32.totalorder %s19, 0
    %p114 = por %p112, %p113
    %s116 = sadd.s32 %s115, 1
    %p119 = scmp.eq.s32.totalorder %s13, 1
    %p120 = scmp.ne.s32.totalorder %s115, %s117
    %p121 = scmp.eq.s32.totalorder %s13, 0
    %p122 = por %p120, %p121
    %p123 = scmp.ne.s32.totalorder %s115, %s117
    %p124 = scmp.eq.s32.totalorder %s18, 1
    %p125 = por %p123, %p124
    %p126 = scmp.ne.s32.totalorder %s117, %s118
    %p127 = scmp.eq.s32.totalorder %s18, 0
    %p128 = por %p126, %p127
    %p129 = scmp.ne.s32.totalorder %s117, %s118
    %p130 = scmp.eq.s32.totalorder %s19, 1
    %p131 = por %p129, %p130
    %p133 = scmp.ne.s32.totalorder %s118, %s132
    %p134 = scmp.eq.s32.totalorder %s19, 0
    %p135 = por %p133, %p134
    %s136 = ssub.s32 %s13, %s20
    %p137 = scmp.eq.s32.totalorder %s136, 0
    %s139 = sadd.s32 %s138, 1
    %s140 = scalar_select %p137, %s138, %s139
    %p143 = pneg %p137
    %p144 = scmp.eq.s32.totalorder %s13, 1
    %p145 = por %p143, %p144
    %p146 = scmp.ne.s32.totalorder %s138, %s141
    %p147 = scmp.eq.s32.totalorder %s13, 0
    %p148 = por %p146, %p147
    %p149 = scmp.ne.s32.totalorder %s138, %s141
    %p150 = scmp.eq.s32.totalorder %s18, 1
    %p151 = por %p149, %p150
    %p152 = scmp.ne.s32.totalorder %s141, %s142
    %p153 = scmp.eq.s32.totalorder %s18, 0
    %p154 = por %p152, %p153
    %p155 = scmp.ne.s32.totalorder %s141, %s142
    %p156 = scmp.eq.s32.totalorder %s19, 1
    %p157 = por %p155, %p156
    %p159 = scmp.ne.s32.totalorder %s142, %s158
    %p160 = scmp.eq.s32.totalorder %s19, 0
    %p161 = por %p159, %p160
    %p162 = scmp.le.s32.totalorder 1, %s13
    %p163 = scmp.lt.s32.totalorder %s13, 3
    %p164 = pnand %p162, %p163
    %p165 = pneg %p164
    // Predicated region
    $region9: #{csfm_forward.7} parent=5 // pred_check
      _
    $region10: #{csfm_forward.7} parent=5 // pred_check_branch
      %167 = sbr.rel (%p164) target = $region12
    $region11: #{csfm_forward.7} parent=5 // pred_region
      %s168 = ssub.s32 %s13, 1
      // Predicated region
      $region13: #{csfm_forward.7} parent=11 // pred_check
        %p169 = pneg %p86
      $region14: #{csfm_forward.7} parent=11 // pred_check_branch
        %171 = sbr.rel (%p169) target = $region16
      $region15: #{csfm_forward.7} parent=11 // pred_region
        _
      $region16: #{csfm_forward.7} parent=11 // pred_fallthru
        _
      // Predicated region
      $region17: #{csfm_forward.7} parent=11 // pred_check
        %p172 = pneg %p107
      $region18: #{csfm_forward.7} parent=11 // pred_check_branch
        %174 = sbr.rel (%p172) target = $region20
      $region19: #{csfm_forward.7} parent=11 // pred_region
        _
      $region20: #{csfm_forward.7} parent=11 // pred_fallthru
        _
      // Predicated region
      $region21: #{csfm_forward.7} parent=11 // pred_check
        %p175 = pneg %p128
      $region22: #{csfm_forward.7} parent=11 // pred_check_branch
        %177 = sbr.rel (%p175) target = $region24
      $region23: #{csfm_forward.7} parent=11 // pred_region
        _
      $region24: #{csfm_forward.7} parent=11 // pred_fallthru
        _
    $region12: #{csfm_forward.7} parent=5 // pred_fallthru
      _
    %p178 = scmp.lt.s32.totalorder %s13, 2
    // Predicated region
    $region25: #{csfm_forward.7} parent=5 // pred_check
      %p179 = pneg %p178
    $region26: #{csfm_forward.7} parent=5 // pred_check_branch
      %181 = sbr.rel (%p179) target = $region28
    $region27: #{csfm_forward.7} parent=5 // pred_region
      // Predicated region
      $region29: #{csfm_forward.7} parent=27 // pred_check
        %p182 = pneg %p33
      $region30: #{csfm_forward.7} parent=27 // pred_check_branch
        %184 = sbr.rel (%p182) target = $region32
      $region31: #{csfm_forward.7} parent=27 // pred_region
        %p185 = scmp.lt.s32.totalorder %s13, 1
        %s186 = scalar_select %p185, %s13, 1
        %s187 = smul.addr %s186, 32
        %s188 = smul.addr %s187, 8
        %s189 = scalar_lea.vmem %s0, %s188
      $region32: #{csfm_forward.7} parent=27 // pred_fallthru
        _
      // Predicated region
      $region33: #{csfm_forward.7} parent=27 // pred_check
        %p190 = pneg %p59
      $region34: #{csfm_forward.7} parent=27 // pred_check_branch
        %192 = sbr.rel (%p190) target = $region36
      $region35: #{csfm_forward.7} parent=27 // pred_region
        %p193 = scmp.lt.s32.totalorder %s13, 1
        %s194 = scalar_select %p193, %s13, 1
        %s195 = scalar_lea.vmem %s1, %s194
      $region36: #{csfm_forward.7} parent=27 // pred_fallthru
        _
    $region28: #{csfm_forward.7} parent=5 // pred_fallthru
      _
    %p196 = scmp.le.s32.totalorder 1, %s13
    %p197 = scmp.lt.s32.totalorder %s13, 3
    %p198 = pnand %p196, %p197
    %p199 = pneg %p198
    // Predicated region
    $region37: #{csfm_forward.7} parent=5 // pred_check
      _
    $region38: #{csfm_forward.7} parent=5 // pred_check_branch
      %201 = sbr.rel (%p198) target = $region40
    $region39: #{csfm_forward.7} parent=5 // pred_region
      %s202 = ssub.s32 %s13, 1
      %p203 = scmp.lt.s32.totalorder %s18, 1
      %s204 = scalar_select %p203, %s18, 1
      %s205 = smul.addr %s204, 32
      %s206 = smul.addr %s205, 8
      %s207 = scalar_lea.vmem %s0, %s206
      %p208 = pneg %p39
      %p209 = pneg %p36
      %p210 = scmp.lt.s32.totalorder %s18, 1
      %s211 = scalar_select %p210, %s18, 1
      %s212 = scalar_lea.vmem %s1, %s211
      %p213 = pneg %p65
      %p214 = pneg %p62
      %p215 = pneg %p86
      %p216 = pneg %p83
      %p217 = pneg %p107
      %p218 = pneg %p104
      %p219 = pneg %p128
      %p220 = pneg %p125
      %p221 = pneg %p154
      %p222 = pneg %p151
      %p223 = scmp.lt.s32.totalorder %s18, 1
      %s224 = scalar_select %p223, %s18, 1
      %s225 = smul.addr %s224, 32
      %s226 = smul.addr %s225, 8
      %s227 = scalar_lea.vmem %s5, %s226
      %p228 = scmp.lt.s32.totalorder %s18, 1
      %s229 = scalar_select %p228, %s18, 1
      %s230 = smul.addr %s229, 32
      %s231 = smul.addr %s230, 8
      %s232 = scalar_lea.vmem %s0, %s231
      %p233 = scmp.lt.s32.totalorder %s18, 1
      %s234 = scalar_select %p233, %s18, 1
      %s235 = scalar_lea.vmem %s1, %s234
      %p236 = scmp.lt.s32.totalorder %s18, 1
      %s237 = scalar_select %p236, %s18, 1
      %s238 = smul.addr %s237, 32
      %s239 = smul.addr %s238, 8
      %s240 = scalar_lea.vmem %s5, %s239
      %v241 = vld [vmem:[%s232] sm:$0xff]
      %v242 = vld [vmem:[%s232 + $0x8] sm:$0xff]
      %v243 = vld [vmem:[%s232 + $0x10] sm:$0xff]
      %v244 = vld [vmem:[%s232 + $0x18] sm:$0xff]
      %v245 = vld [vmem:[%s232 + $0x20] sm:$0xff]
      %v246 = vld [vmem:[%s232 + $0x28] sm:$0xff]
      %v247 = vld [vmem:[%s232 + $0x30] sm:$0xff]
      %v248 = vld [vmem:[%s232 + $0x38] sm:$0xff]
      %v249 = vld [vmem:[%s232 + $0x40] sm:$0xff]
      %v250 = vld [vmem:[%s232 + $0x48] sm:$0xff]
      %v251 = vld [vmem:[%s232 + $0x50] sm:$0xff]
      %v252 = vld [vmem:[%s232 + $0x58] sm:$0xff]
      %v253 = vld [vmem:[%s232 + $0x60] sm:$0xff]
      %v254 = vld [vmem:[%s232 + $0x68] sm:$0xff]
      %v255 = vld [vmem:[%s232 + $0x70] sm:$0xff]
      %v256 = vld [vmem:[%s232 + $0x78] sm:$0xff]
      %v257 = vld [vmem:[%s232 + $0x80] sm:$0xff]
      %v258 = vld [vmem:[%s232 + $0x88] sm:$0xff]
      %v259 = vld [vmem:[%s232 + $0x90] sm:$0xff]
      %v260 = vld [vmem:[%s232 + $0x98] sm:$0xff]
      %v261 = vld [vmem:[%s232 + $0xa0] sm:$0xff]
      %v262 = vld [vmem:[%s232 + $0xa8] sm:$0xff]
      %v263 = vld [vmem:[%s232 + $0xb0] sm:$0xff]
      %v264 = vld [vmem:[%s232 + $0xb8] sm:$0xff]
      %v265 = vld [vmem:[%s232 + $0xc0] sm:$0xff]
      %v266 = vld [vmem:[%s232 + $0xc8] sm:$0xff]
      %v267 = vld [vmem:[%s232 + $0xd0] sm:$0xff]
      %v268 = vld [vmem:[%s232 + $0xd8] sm:$0xff]
      %v269 = vld [vmem:[%s232 + $0xe0] sm:$0xff]
      %v270 = vld [vmem:[%s232 + $0xe8] sm:$0xff]
      %v271 = vld [vmem:[%s232 + $0xf0] sm:$0xff]
      %v272 = vld [vmem:[%s232 + $0xf8] sm:$0xff]
      %v273 = vld [vmem:[%s235] sm:$0x1]
      %v275 = vlaneseq
      %v276 = vshrl.u32 %v275, 7
      %v277 = vsub.s32 0, %v276
      %v278 = vrot.slane %v273, %v277
      %v280 = vmul.f32 %v241, %v278
      %v281 = vmul.f32 %v242, %v278
      %v282 = vmul.f32 %v243, %v278
      %v283 = vmul.f32 %v244, %v278
      %v284 = vmul.f32 %v245, %v278
      %v285 = vmul.f32 %v246, %v278
      %v286 = vmul.f32 %v247, %v278
      %v287 = vmul.f32 %v248, %v278
      %v288 = vmul.f32 %v249, %v278
      %v289 = vmul.f32 %v250, %v278
      %v290 = vmul.f32 %v251, %v278
      %v291 = vmul.f32 %v252, %v278
      %v292 = vmul.f32 %v253, %v278
      %v293 = vmul.f32 %v254, %v278
      %v294 = vmul.f32 %v255, %v278
      %v295 = vmul.f32 %v256, %v278
      %v296 = vmul.f32 %v257, %v278
      %v297 = vmul.f32 %v258, %v278
      %v298 = vmul.f32 %v259, %v278
      %v299 = vmul.f32 %v260, %v278
      %v300 = vmul.f32 %v261, %v278
      %v301 = vmul.f32 %v262, %v278
      %v302 = vmul.f32 %v263, %v278
      %v303 = vmul.f32 %v264, %v278
      %v304 = vmul.f32 %v265, %v278
      %v305 = vmul.f32 %v266, %v278
      %v306 = vmul.f32 %v267, %v278
      %v307 = vmul.f32 %v268, %v278
      %v308 = vmul.f32 %v269, %v278
      %v309 = vmul.f32 %v270, %v278
      %v310 = vmul.f32 %v271, %v278
      %v311 = vmul.f32 %v272, %v278
      %v312 = vld [vmem:[%s2] sm:$0xff]
      %vm313 = vcmask 64512
      %v315 = vsel %vm313, %v280, 0
      %v318 = vsel %vm313, %v281, 0
      %v321 = vsel %vm313, %v282, 0
      %v324 = vsel %vm313, %v283, 0
      %v327 = vsel %vm313, %v284, 0
      %v330 = vsel %vm313, %v285, 0
      %v333 = vsel %vm313, %v286, 0
      %v336 = vsel %vm313, %v287, 0
      %v339 = vsel %vm313, %v288, 0
      %v342 = vsel %vm313, %v289, 0
      %v345 = vsel %vm313, %v290, 0
      %v348 = vsel %vm313, %v291, 0
      %v351 = vsel %vm313, %v292, 0
      %v354 = vsel %vm313, %v293, 0
      %v357 = vsel %vm313, %v294, 0
      %v360 = vsel %vm313, %v295, 0
      %v363 = vsel %vm313, %v296, 0
      %v366 = vsel %vm313, %v297, 0
      %v369 = vsel %vm313, %v298, 0
      %v372 = vsel %vm313, %v299, 0
      %v375 = vsel %vm313, %v300, 0
      %v378 = vsel %vm313, %v301, 0
      %v381 = vsel %vm313, %v302, 0
      %v384 = vsel %vm313, %v303, 0
      %v387 = vsel %vm313, %v304, 0
      %v390 = vsel %vm313, %v305, 0
      %v393 = vsel %vm313, %v306, 0
      %v396 = vsel %vm313, %v307, 0
      %v399 = vsel %vm313, %v308, 0
      %v402 = vsel %vm313, %v309, 0
      %v405 = vsel %vm313, %v310, 0
      %v408 = vsel %vm313, %v311, 0
      %410 = vmatprep.subr.mxu0 0.0
      %411 = vmatpush1.msra.mxu0 0.0
      %412 = vmatprep.subr.mxu0 0.0
      %413 = vmatpush1.msra.mxu0 0.0
      %414 = vmatprep.subr.mxu0 0.0
      %415 = vmatpush1.msra.mxu0 0.0
      %416 = vmatprep.subr.mxu0 0.0
      %417 = vmatpush1.msra.mxu0 0.0
      %418 = vmatprep.subr.mxu0 0.0
      %419 = vmatpush1.msra.mxu0 0.0
      %420 = vmatprep.subr.mxu0 0.0
      %421 = vmatpush1.msra.mxu0 0.0
      %422 = vmatprep.subr.mxu0 0.0
      %423 = vmatpush1.msra.mxu0 0.0
      %424 = vmatprep.subr.mxu0 0.0
      %425 = vmatpush1.msra.mxu0 0.0
      %426 = vmatprep.subr.mxu0 0.0
      %427 = vmatpush1.msra.mxu0 0.0
      %428 = vmatprep.subr.mxu0 0.0
      %429 = vmatpush1.msra.mxu0 0.0
      %430 = vmatprep.subr.mxu0 0.0
      %431 = vmatpush1.msra.mxu0 0.0
      %432 = vmatprep.subr.mxu0 0.0
      %433 = vmatpush1.msra.mxu0 0.0
      %434 = vmatprep.subr.mxu0 0.0
      %435 = vmatpush1.msra.mxu0 0.0
      %436 = vmatprep.subr.mxu0 0.0
      %437 = vmatpush1.msra.mxu0 0.0
      %438 = vmatprep.subr.mxu0 0.0
      %439 = vmatpush1.msra.mxu0 0.0
      %440 = vmatprep.subr.mxu0 0.0
      %441 = vmatpush1.msra.mxu0 %v312
      %442 = vmatprep.subr.mxu0 0.0
      %443 = vmatpush2.msra.mxu0 0.0
      %444 = vmatprep.subr.mxu0 0.0
      %445 = vmatpush2.msra.mxu0 0.0
      %446 = vmatprep.subr.mxu0 0.0
      %447 = vmatpush2.msra.mxu0 0.0
      %448 = vmatprep.subr.mxu0 0.0
      %449 = vmatpush2.msra.mxu0 0.0
      %450 = vmatprep.subr.mxu0 0.0
      %451 = vmatpush2.msra.mxu0 0.0
      %452 = vmatprep.subr.mxu0 0.0
      %453 = vmatpush2.msra.mxu0 0.0
      %454 = vmatprep.subr.mxu0 0.0
      %455 = vmatpush2.msra.mxu0 0.0
      %456 = vmatprep.subr.mxu0 0.0
      %457 = vmatpush2.msra.mxu0 0.0
      %458 = vmatprep.subr.mxu0 0.0
      %459 = vmatpush2.msra.mxu0 0.0
      %460 = vmatprep.subr.mxu0 0.0
      %461 = vmatpush2.msra.mxu0 0.0
      %462 = vmatprep.subr.mxu0 0.0
      %463 = vmatpush2.msra.mxu0 0.0
      %464 = vmatprep.subr.mxu0 0.0
      %465 = vmatpush2.msra.mxu0 0.0
      %466 = vmatprep.subr.mxu0 0.0
      %467 = vmatpush2.msra.mxu0 0.0
      %468 = vmatprep.subr.mxu0 0.0
      %469 = vmatpush2.msra.mxu0 0.0
      %470 = vmatprep.subr.mxu0 0.0
      %471 = vmatpush2.msra.mxu0 0.0
      %472 = vmatprep.subr.mxu0 0.0
      %473 = vmatpush2.msra.mxu0 0.0
      %474 = vmatprep.mubr.f32.mxu0 0.0
      %475 = vmatmul.mubr.f32.gmra.mxu0 %v315
      %v476 = vpop.f32.mrf.mxu0
      %v477 = vadd.f32 0.0, %v476
      %v478 = vpop.f32.mrf.mxu0
      %479 = vmatprep.mubr.f32.mxu0 0.0
      %480 = vmatmul.mubr.f32.gmra.mxu0 %v318
      %v481 = vpop.f32.mrf.mxu0
      %v482 = vadd.f32 0.0, %v481
      %v483 = vpop.f32.mrf.mxu0
      %484 = vmatprep.mubr.f32.mxu0 0.0
      %485 = vmatmul.mubr.f32.gmra.mxu0 %v321
      %v486 = vpop.f32.mrf.mxu0
      %v487 = vadd.f32 0.0, %v486
      %v488 = vpop.f32.mrf.mxu0
      %489 = vmatprep.mubr.f32.mxu0 0.0
      %490 = vmatmul.mubr.f32.gmra.mxu0 %v324
      %v491 = vpop.f32.mrf.mxu0
      %v492 = vadd.f32 0.0, %v491
      %v493 = vpop.f32.mrf.mxu0
      %494 = vmatprep.mubr.f32.mxu0 0.0
      %495 = vmatmul.mubr.f32.gmra.mxu0 %v327
      %v496 = vpop.f32.mrf.mxu0
      %v497 = vadd.f32 0.0, %v496
      %v498 = vpop.f32.mrf.mxu0
      %499 = vmatprep.mubr.f32.mxu0 0.0
      %500 = vmatmul.mubr.f32.gmra.mxu0 %v330
      %v501 = vpop.f32.mrf.mxu0
      %v502 = vadd.f32 0.0, %v501
      %v503 = vpop.f32.mrf.mxu0
      %504 = vmatprep.mubr.f32.mxu0 0.0
      %505 = vmatmul.mubr.f32.gmra.mxu0 %v333
      %v506 = vpop.f32.mrf.mxu0
      %v507 = vadd.f32 0.0, %v506
      %v508 = vpop.f32.mrf.mxu0
      %509 = vmatprep.mubr.f32.mxu0 0.0
      %510 = vmatmul.mubr.f32.gmra.mxu0 %v336
      %v511 = vpop.f32.mrf.mxu0
      %v512 = vadd.f32 0.0, %v511
      %v513 = vpop.f32.mrf.mxu0
      %514 = vmatprep.mubr.f32.mxu0 0.0
      %515 = vmatmul.mubr.f32.gmra.mxu0 %v339
      %v516 = vpop.f32.mrf.mxu0
      %v517 = vadd.f32 0.0, %v516
      %v518 = vpop.f32.mrf.mxu0
      %519 = vmatprep.mubr.f32.mxu0 0.0
      %520 = vmatmul.mubr.f32.gmra.mxu0 %v342
      %v521 = vpop.f32.mrf.mxu0
      %v522 = vadd.f32 0.0, %v521
      %v523 = vpop.f32.mrf.mxu0
      %524 = vmatprep.mubr.f32.mxu0 0.0
      %525 = vmatmul.mubr.f32.gmra.mxu0 %v345
      %v526 = vpop.f32.mrf.mxu0
      %v527 = vadd.f32 0.0, %v526
      %v528 = vpop.f32.mrf.mxu0
      %529 = vmatprep.mubr.f32.mxu0 0.0
      %530 = vmatmul.mubr.f32.gmra.mxu0 %v348
      %v531 = vpop.f32.mrf.mxu0
      %v532 = vadd.f32 0.0, %v531
      %v533 = vpop.f32.mrf.mxu0
      %534 = vmatprep.mubr.f32.mxu0 0.0
      %535 = vmatmul.mubr.f32.gmra.mxu0 %v351
      %v536 = vpop.f32.mrf.mxu0
      %v537 = vadd.f32 0.0, %v536
      %v538 = vpop.f32.mrf.mxu0
      %539 = vmatprep.mubr.f32.mxu0 0.0
      %540 = vmatmul.mubr.f32.gmra.mxu0 %v354
      %v541 = vpop.f32.mrf.mxu0
      %v542 = vadd.f32 0.0, %v541
      %v543 = vpop.f32.mrf.mxu0
      %544 = vmatprep.mubr.f32.mxu0 0.0
      %545 = vmatmul.mubr.f32.gmra.mxu0 %v357
      %v546 = vpop.f32.mrf.mxu0
      %v547 = vadd.f32 0.0, %v546
      %v548 = vpop.f32.mrf.mxu0
      %549 = vmatprep.mubr.f32.mxu0 0.0
      %550 = vmatmul.mubr.f32.gmra.mxu0 %v360
      %v551 = vpop.f32.mrf.mxu0
      %v552 = vadd.f32 0.0, %v551
      %v553 = vpop.f32.mrf.mxu0
      %554 = vmatprep.mubr.f32.mxu0 0.0
      %555 = vmatmul.mubr.f32.gmra.mxu0 %v363
      %v556 = vpop.f32.mrf.mxu0
      %v557 = vadd.f32 0.0, %v556
      %v558 = vpop.f32.mrf.mxu0
      %559 = vmatprep.mubr.f32.mxu0 0.0
      %560 = vmatmul.mubr.f32.gmra.mxu0 %v366
      %v561 = vpop.f32.mrf.mxu0
      %v562 = vadd.f32 0.0, %v561
      %v563 = vpop.f32.mrf.mxu0
      %564 = vmatprep.mubr.f32.mxu0 0.0
      %565 = vmatmul.mubr.f32.gmra.mxu0 %v369
      %v566 = vpop.f32.mrf.mxu0
      %v567 = vadd.f32 0.0, %v566
      %v568 = vpop.f32.mrf.mxu0
      %569 = vmatprep.mubr.f32.mxu0 0.0
      %570 = vmatmul.mubr.f32.gmra.mxu0 %v372
      %v571 = vpop.f32.mrf.mxu0
      %v572 = vadd.f32 0.0, %v571
      %v573 = vpop.f32.mrf.mxu0
      %574 = vmatprep.mubr.f32.mxu0 0.0
      %575 = vmatmul.mubr.f32.gmra.mxu0 %v375
      %v576 = vpop.f32.mrf.mxu0
      %v577 = vadd.f32 0.0, %v576
      %v578 = vpop.f32.mrf.mxu0
      %579 = vmatprep.mubr.f32.mxu0 0.0
      %580 = vmatmul.mubr.f32.gmra.mxu0 %v378
      %v581 = vpop.f32.mrf.mxu0
      %v582 = vadd.f32 0.0, %v581
      %v583 = vpop.f32.mrf.mxu0
      %584 = vmatprep.mubr.f32.mxu0 0.0
      %585 = vmatmul.mubr.f32.gmra.mxu0 %v381
      %v586 = vpop.f32.mrf.mxu0
      %v587 = vadd.f32 0.0, %v586
      %v588 = vpop.f32.mrf.mxu0
      %589 = vmatprep.mubr.f32.mxu0 0.0
      %590 = vmatmul.mubr.f32.gmra.mxu0 %v384
      %v591 = vpop.f32.mrf.mxu0
      %v592 = vadd.f32 0.0, %v591
      %v593 = vpop.f32.mrf.mxu0
      %594 = vmatprep.mubr.f32.mxu0 0.0
      %595 = vmatmul.mubr.f32.gmra.mxu0 %v387
      %v596 = vpop.f32.mrf.mxu0
      %v597 = vadd.f32 0.0, %v596
      %v598 = vpop.f32.mrf.mxu0
      %599 = vmatprep.mubr.f32.mxu0 0.0
      %600 = vmatmul.mubr.f32.gmra.mxu0 %v390
      %v601 = vpop.f32.mrf.mxu0
      %v602 = vadd.f32 0.0, %v601
      %v603 = vpop.f32.mrf.mxu0
      %604 = vmatprep.mubr.f32.mxu0 0.0
      %605 = vmatmul.mubr.f32.gmra.mxu0 %v393
      %v606 = vpop.f32.mrf.mxu0
      %v607 = vadd.f32 0.0, %v606
      %v608 = vpop.f32.mrf.mxu0
      %609 = vmatprep.mubr.f32.mxu0 0.0
      %610 = vmatmul.mubr.f32.gmra.mxu0 %v396
      %v611 = vpop.f32.mrf.mxu0
      %v612 = vadd.f32 0.0, %v611
      %v613 = vpop.f32.mrf.mxu0
      %614 = vmatprep.mubr.f32.mxu0 0.0
      %615 = vmatmul.mubr.f32.gmra.mxu0 %v399
      %v616 = vpop.f32.mrf.mxu0
      %v617 = vadd.f32 0.0, %v616
      %v618 = vpop.f32.mrf.mxu0
      %619 = vmatprep.mubr.f32.mxu0 0.0
      %620 = vmatmul.mubr.f32.gmra.mxu0 %v402
      %v621 = vpop.f32.mrf.mxu0
      %v622 = vadd.f32 0.0, %v621
      %v623 = vpop.f32.mrf.mxu0
      %624 = vmatprep.mubr.f32.mxu0 0.0
      %625 = vmatmul.mubr.f32.gmra.mxu0 %v405
      %v626 = vpop.f32.mrf.mxu0
      %v627 = vadd.f32 0.0, %v626
      %v628 = vpop.f32.mrf.mxu0
      %629 = vmatprep.mubr.f32.mxu0 0.0
      %630 = vmatmul.mubr.f32.gmra.mxu0 %v408
      %v631 = vpop.f32.mrf.mxu0
      %v632 = vadd.f32 0.0, %v631
      %v633 = vpop.f32.mrf.mxu0
      %634 = vdwg.mxu0
      %v635 = vld [vmem:[%s3] sm:$0x1]
      %v637 = vlaneseq
      %v638 = vshrl.u32 %v637, 7
      %v639 = vsub.s32 0, %v638
      %v640 = vrot.slane %v635, %v639
      %v642 = vmul.f32 %v241, %v640
      %v643 = vmul.f32 %v242, %v640
      %v644 = vmul.f32 %v243, %v640
      %v645 = vmul.f32 %v244, %v640
      %v646 = vmul.f32 %v245, %v640
      %v647 = vmul.f32 %v246, %v640
      %v648 = vmul.f32 %v247, %v640
      %v649 = vmul.f32 %v248, %v640
      %v650 = vmul.f32 %v249, %v640
      %v651 = vmul.f32 %v250, %v640
      %v652 = vmul.f32 %v251, %v640
      %v653 = vmul.f32 %v252, %v640
      %v654 = vmul.f32 %v253, %v640
      %v655 = vmul.f32 %v254, %v640
      %v656 = vmul.f32 %v255, %v640
      %v657 = vmul.f32 %v256, %v640
      %v658 = vmul.f32 %v257, %v640
      %v659 = vmul.f32 %v258, %v640
      %v660 = vmul.f32 %v259, %v640
      %v661 = vmul.f32 %v260, %v640
      %v662 = vmul.f32 %v261, %v640
      %v663 = vmul.f32 %v262, %v640
      %v664 = vmul.f32 %v263, %v640
      %v665 = vmul.f32 %v264, %v640
      %v666 = vmul.f32 %v265, %v640
      %v667 = vmul.f32 %v266, %v640
      %v668 = vmul.f32 %v267, %v640
      %v669 = vmul.f32 %v268, %v640
      %v670 = vmul.f32 %v269, %v640
      %v671 = vmul.f32 %v270, %v640
      %v672 = vmul.f32 %v271, %v640
      %v673 = vmul.f32 %v272, %v640
      %v674 = vsel %vm313, %v642, 0.0
      %675 = vadd.xlane.f32.xlu0 %v674
      %v676 = vpop.xlane.xlu0 %675
      %v677 = vsel %vm313, %v643, 0.0
      %678 = vadd.xlane.f32.xlu0 %v677
      %v679 = vpop.xlane.xlu0 %678
      %v680 = vsel %vm313, %v644, 0.0
      %681 = vadd.xlane.f32.xlu0 %v680
      %v682 = vpop.xlane.xlu0 %681
      %v683 = vsel %vm313, %v645, 0.0
      %684 = vadd.xlane.f32.xlu0 %v683
      %v685 = vpop.xlane.xlu0 %684
      %v686 = vsel %vm313, %v646, 0.0
      %687 = vadd.xlane.f32.xlu0 %v686
      %v688 = vpop.xlane.xlu0 %687
      %v689 = vsel %vm313, %v647, 0.0
      %690 = vadd.xlane.f32.xlu0 %v689
      %v691 = vpop.xlane.xlu0 %690
      %v692 = vsel %vm313, %v648, 0.0
      %693 = vadd.xlane.f32.xlu0 %v692
      %v694 = vpop.xlane.xlu0 %693
      %v695 = vsel %vm313, %v649, 0.0
      %696 = vadd.xlane.f32.xlu0 %v695
      %v697 = vpop.xlane.xlu0 %696
      %v698 = vsel %vm313, %v650, 0.0
      %699 = vadd.xlane.f32.xlu0 %v698
      %v700 = vpop.xlane.xlu0 %699
      %v701 = vsel %vm313, %v651, 0.0
      %702 = vadd.xlane.f32.xlu0 %v701
      %v703 = vpop.xlane.xlu0 %702
      %v704 = vsel %vm313, %v652, 0.0
      %705 = vadd.xlane.f32.xlu0 %v704
      %v706 = vpop.xlane.xlu0 %705
      %v707 = vsel %vm313, %v653, 0.0
      %708 = vadd.xlane.f32.xlu0 %v707
      %v709 = vpop.xlane.xlu0 %708
      %v710 = vsel %vm313, %v654, 0.0
      %711 = vadd.xlane.f32.xlu0 %v710
      %v712 = vpop.xlane.xlu0 %711
      %v713 = vsel %vm313, %v655, 0.0
      %714 = vadd.xlane.f32.xlu0 %v713
      %v715 = vpop.xlane.xlu0 %714
      %v716 = vsel %vm313, %v656, 0.0
      %717 = vadd.xlane.f32.xlu0 %v716
      %v718 = vpop.xlane.xlu0 %717
      %v719 = vsel %vm313, %v657, 0.0
      %720 = vadd.xlane.f32.xlu0 %v719
      %v721 = vpop.xlane.xlu0 %720
      %v722 = vsel %vm313, %v658, 0.0
      %723 = vadd.xlane.f32.xlu0 %v722
      %v724 = vpop.xlane.xlu0 %723
      %v725 = vsel %vm313, %v659, 0.0
      %726 = vadd.xlane.f32.xlu0 %v725
      %v727 = vpop.xlane.xlu0 %726
      %v728 = vsel %vm313, %v660, 0.0
      %729 = vadd.xlane.f32.xlu0 %v728
      %v730 = vpop.xlane.xlu0 %729
      %v731 = vsel %vm313, %v661, 0.0
      %732 = vadd.xlane.f32.xlu0 %v731
      %v733 = vpop.xlane.xlu0 %732
      %v734 = vsel %vm313, %v662, 0.0
      %735 = vadd.xlane.f32.xlu0 %v734
      %v736 = vpop.xlane.xlu0 %735
      %v737 = vsel %vm313, %v663, 0.0
      %738 = vadd.xlane.f32.xlu0 %v737
      %v739 = vpop.xlane.xlu0 %738
      %v740 = vsel %vm313, %v664, 0.0
      %741 = vadd.xlane.f32.xlu0 %v740
      %v742 = vpop.xlane.xlu0 %741
      %v743 = vsel %vm313, %v665, 0.0
      %744 = vadd.xlane.f32.xlu0 %v743
      %v745 = vpop.xlane.xlu0 %744
      %v746 = vsel %vm313, %v666, 0.0
      %747 = vadd.xlane.f32.xlu0 %v746
      %v748 = vpop.xlane.xlu0 %747
      %v749 = vsel %vm313, %v667, 0.0
      %750 = vadd.xlane.f32.xlu0 %v749
      %v751 = vpop.xlane.xlu0 %750
      %v752 = vsel %vm313, %v668, 0.0
      %753 = vadd.xlane.f32.xlu0 %v752
      %v754 = vpop.xlane.xlu0 %753
      %v755 = vsel %vm313, %v669, 0.0
      %756 = vadd.xlane.f32.xlu0 %v755
      %v757 = vpop.xlane.xlu0 %756
      %v758 = vsel %vm313, %v670, 0.0
      %759 = vadd.xlane.f32.xlu0 %v758
      %v760 = vpop.xlane.xlu0 %759
      %v761 = vsel %vm313, %v671, 0.0
      %762 = vadd.xlane.f32.xlu0 %v761
      %v763 = vpop.xlane.xlu0 %762
      %v764 = vsel %vm313, %v672, 0.0
      %765 = vadd.xlane.f32.xlu0 %v764
      %v766 = vpop.xlane.xlu0 %765
      %v767 = vsel %vm313, %v673, 0.0
      %768 = vadd.xlane.f32.xlu0 %v767
      %v769 = vpop.xlane.xlu0 %768
      %v770 = vld [vmem:[#allocation2] sm:$0x1]
      %v772 = vlaneseq
      %v773 = vshrl.u32 %v772, 7
      %v774 = vsub.s32 0, %v773
      %v775 = vrot.slane %v770, %v774
      %v777 = vadd.f32 %v676, %v775
      %v778 = vadd.f32 %v679, %v775
      %v779 = vadd.f32 %v682, %v775
      %v780 = vadd.f32 %v685, %v775
      %v781 = vadd.f32 %v688, %v775
      %v782 = vadd.f32 %v691, %v775
      %v783 = vadd.f32 %v694, %v775
      %v784 = vadd.f32 %v697, %v775
      %v785 = vadd.f32 %v700, %v775
      %v786 = vadd.f32 %v703, %v775
      %v787 = vadd.f32 %v706, %v775
      %v788 = vadd.f32 %v709, %v775
      %v789 = vadd.f32 %v712, %v775
      %v790 = vadd.f32 %v715, %v775
      %v791 = vadd.f32 %v718, %v775
      %v792 = vadd.f32 %v721, %v775
      %v793 = vadd.f32 %v724, %v775
      %v794 = vadd.f32 %v727, %v775
      %v795 = vadd.f32 %v730, %v775
      %v796 = vadd.f32 %v733, %v775
      %v797 = vadd.f32 %v736, %v775
      %v798 = vadd.f32 %v739, %v775
      %v799 = vadd.f32 %v742, %v775
      %v800 = vadd.f32 %v745, %v775
      %v801 = vadd.f32 %v748, %v775
      %v802 = vadd.f32 %v751, %v775
      %v803 = vadd.f32 %v754, %v775
      %v804 = vadd.f32 %v757, %v775
      %v805 = vadd.f32 %v760, %v775
      %v806 = vadd.f32 %v763, %v775
      %v807 = vadd.f32 %v766, %v775
      %v808 = vadd.f32 %v769, %v775
      %v809 = vsub.f32 0.0, %v777
      %v810 = vsub.f32 0.0, %v778
      %v811 = vsub.f32 0.0, %v779
      %v812 = vsub.f32 0.0, %v780
      %v813 = vsub.f32 0.0, %v781
      %v814 = vsub.f32 0.0, %v782
      %v815 = vsub.f32 0.0, %v783
      %v816 = vsub.f32 0.0, %v784
      %v817 = vsub.f32 0.0, %v785
      %v818 = vsub.f32 0.0, %v786
      %v819 = vsub.f32 0.0, %v787
      %v820 = vsub.f32 0.0, %v788
      %v821 = vsub.f32 0.0, %v789
      %v822 = vsub.f32 0.0, %v790
      %v823 = vsub.f32 0.0, %v791
      %v824 = vsub.f32 0.0, %v792
      %v825 = vsub.f32 0.0, %v793
      %v826 = vsub.f32 0.0, %v794
      %v827 = vsub.f32 0.0, %v795
      %v828 = vsub.f32 0.0, %v796
      %v829 = vsub.f32 0.0, %v797
      %v830 = vsub.f32 0.0, %v798
      %v831 = vsub.f32 0.0, %v799
      %v832 = vsub.f32 0.0, %v800
      %v833 = vsub.f32 0.0, %v801
      %v834 = vsub.f32 0.0, %v802
      %v835 = vsub.f32 0.0, %v803
      %v836 = vsub.f32 0.0, %v804
      %v837 = vsub.f32 0.0, %v805
      %v838 = vsub.f32 0.0, %v806
      %v839 = vsub.f32 0.0, %v807
      %v840 = vsub.f32 0.0, %v808
      %v841 = vmul.f32 %v809, 1.442695
      %v842 = vpow.pop %v841
      %v843 = vmul.f32 %v810, 1.442695
      %v844 = vpow.pop %v843
      %v845 = vmul.f32 %v811, 1.442695
      %v846 = vpow.pop %v845
      %v847 = vmul.f32 %v812, 1.442695
      %v848 = vpow.pop %v847
      %v849 = vmul.f32 %v813, 1.442695
      %v850 = vpow.pop %v849
      %v851 = vmul.f32 %v814, 1.442695
      %v852 = vpow.pop %v851
      %v853 = vmul.f32 %v815, 1.442695
      %v854 = vpow.pop %v853
      %v855 = vmul.f32 %v816, 1.442695
      %v856 = vpow.pop %v855
      %v857 = vmul.f32 %v817, 1.442695
      %v858 = vpow.pop %v857
      %v859 = vmul.f32 %v818, 1.442695
      %v860 = vpow.pop %v859
      %v861 = vmul.f32 %v819, 1.442695
      %v862 = vpow.pop %v861
      %v863 = vmul.f32 %v820, 1.442695
      %v864 = vpow.pop %v863
      %v865 = vmul.f32 %v821, 1.442695
      %v866 = vpow.pop %v865
      %v867 = vmul.f32 %v822, 1.442695
      %v868 = vpow.pop %v867
      %v869 = vmul.f32 %v823, 1.442695
      %v870 = vpow.pop %v869
      %v871 = vmul.f32 %v824, 1.442695
      %v872 = vpow.pop %v871
      %v873 = vmul.f32 %v825, 1.442695
      %v874 = vpow.pop %v873
      %v875 = vmul.f32 %v826, 1.442695
      %v876 = vpow.pop %v875
      %v877 = vmul.f32 %v827, 1.442695
      %v878 = vpow.pop %v877
      %v879 = vmul.f32 %v828, 1.442695
      %v880 = vpow.pop %v879
      %v881 = vmul.f32 %v829, 1.442695
      %v882 = vpow.pop %v881
      %v883 = vmul.f32 %v830, 1.442695
      %v884 = vpow.pop %v883
      %v885 = vmul.f32 %v831, 1.442695
      %v886 = vpow.pop %v885
      %v887 = vmul.f32 %v832, 1.442695
      %v888 = vpow.pop %v887
      %v889 = vmul.f32 %v833, 1.442695
      %v890 = vpow.pop %v889
      %v891 = vmul.f32 %v834, 1.442695
      %v892 = vpow.pop %v891
      %v893 = vmul.f32 %v835, 1.442695
      %v894 = vpow.pop %v893
      %v895 = vmul.f32 %v836, 1.442695
      %v896 = vpow.pop %v895
      %v897 = vmul.f32 %v837, 1.442695
      %v898 = vpow.pop %v897
      %v899 = vmul.f32 %v838, 1.442695
      %v900 = vpow.pop %v899
      %v901 = vmul.f32 %v839, 1.442695
      %v902 = vpow.pop %v901
      %v903 = vmul.f32 %v840, 1.442695
      %v904 = vpow.pop %v903
      %v905 = vadd.f32 %v842, 1.0
      %v906 = vadd.f32 %v844, 1.0
      %v907 = vadd.f32 %v846, 1.0
      %v908 = vadd.f32 %v848, 1.0
      %v909 = vadd.f32 %v850, 1.0
      %v910 = vadd.f32 %v852, 1.0
      %v911 = vadd.f32 %v854, 1.0
      %v912 = vadd.f32 %v856, 1.0
      %v913 = vadd.f32 %v858, 1.0
      %v914 = vadd.f32 %v860, 1.0
      %v915 = vadd.f32 %v862, 1.0
      %v916 = vadd.f32 %v864, 1.0
      %v917 = vadd.f32 %v866, 1.0
      %v918 = vadd.f32 %v868, 1.0
      %v919 = vadd.f32 %v870, 1.0
      %v920 = vadd.f32 %v872, 1.0
      %v921 = vadd.f32 %v874, 1.0
      %v922 = vadd.f32 %v876, 1.0
      %v923 = vadd.f32 %v878, 1.0
      %v924 = vadd.f32 %v880, 1.0
      %v925 = vadd.f32 %v882, 1.0
      %v926 = vadd.f32 %v884, 1.0
      %v927 = vadd.f32 %v886, 1.0
      %v928 = vadd.f32 %v888, 1.0
      %v929 = vadd.f32 %v890, 1.0
      %v930 = vadd.f32 %v892, 1.0
      %v931 = vadd.f32 %v894, 1.0
      %v932 = vadd.f32 %v896, 1.0
      %v933 = vadd.f32 %v898, 1.0
      %v934 = vadd.f32 %v900, 1.0
      %v935 = vadd.f32 %v902, 1.0
      %v936 = vadd.f32 %v904, 1.0
      %v937 = vrcp.pop %v905
      %v938 = vmul.f32 1.0, %v937
      %v939 = vrcp.pop %v906
      %v940 = vmul.f32 1.0, %v939
      %v941 = vrcp.pop %v907
      %v942 = vmul.f32 1.0, %v941
      %v943 = vrcp.pop %v908
      %v944 = vmul.f32 1.0, %v943
      %v945 = vrcp.pop %v909
      %v946 = vmul.f32 1.0, %v945
      %v947 = vrcp.pop %v910
      %v948 = vmul.f32 1.0, %v947
      %v949 = vrcp.pop %v911
      %v950 = vmul.f32 1.0, %v949
      %v951 = vrcp.pop %v912
      %v952 = vmul.f32 1.0, %v951
      %v953 = vrcp.pop %v913
      %v954 = vmul.f32 1.0, %v953
      %v955 = vrcp.pop %v914
      %v956 = vmul.f32 1.0, %v955
      %v957 = vrcp.pop %v915
      %v958 = vmul.f32 1.0, %v957
      %v959 = vrcp.pop %v916
      %v960 = vmul.f32 1.0, %v959
      %v961 = vrcp.pop %v917
      %v962 = vmul.f32 1.0, %v961
      %v963 = vrcp.pop %v918
      %v964 = vmul.f32 1.0, %v963
      %v965 = vrcp.pop %v919
      %v966 = vmul.f32 1.0, %v965
      %v967 = vrcp.pop %v920
      %v968 = vmul.f32 1.0, %v967
      %v969 = vrcp.pop %v921
      %v970 = vmul.f32 1.0, %v969
      %v971 = vrcp.pop %v922
      %v972 = vmul.f32 1.0, %v971
      %v973 = vrcp.pop %v923
      %v974 = vmul.f32 1.0, %v973
      %v975 = vrcp.pop %v924
      %v976 = vmul.f32 1.0, %v975
      %v977 = vrcp.pop %v925
      %v978 = vmul.f32 1.0, %v977
      %v979 = vrcp.pop %v926
      %v980 = vmul.f32 1.0, %v979
      %v981 = vrcp.pop %v927
      %v982 = vmul.f32 1.0, %v981
      %v983 = vrcp.pop %v928
      %v984 = vmul.f32 1.0, %v983
      %v985 = vrcp.pop %v929
      %v986 = vmul.f32 1.0, %v985
      %v987 = vrcp.pop %v930
      %v988 = vmul.f32 1.0, %v987
      %v989 = vrcp.pop %v931
      %v990 = vmul.f32 1.0, %v989
      %v991 = vrcp.pop %v932
      %v992 = vmul.f32 1.0, %v991
      %v993 = vrcp.pop %v933
      %v994 = vmul.f32 1.0, %v993
      %v995 = vrcp.pop %v934
      %v996 = vmul.f32 1.0, %v995
      %v997 = vrcp.pop %v935
      %v998 = vmul.f32 1.0, %v997
      %v999 = vrcp.pop %v936
      %v1000 = vmul.f32 1.0, %v999
      %1002 = vset.pattern.permute.xlu0 0
      %1003 = vperm.xlu0 %1002, %v938
      %v1004 = vpop.permute.xlu0 %1003
      %1007 = vset.pattern.permute.xlu0 0
      %1008 = vperm.xlu0 %1007, %v940
      %v1009 = vpop.permute.xlu0 %1008
      %1012 = vset.pattern.permute.xlu0 0
      %1013 = vperm.xlu0 %1012, %v942
      %v1014 = vpop.permute.xlu0 %1013
      %1017 = vset.pattern.permute.xlu0 0
      %1018 = vperm.xlu0 %1017, %v944
      %v1019 = vpop.permute.xlu0 %1018
      %1022 = vset.pattern.permute.xlu0 0
      %1023 = vperm.xlu0 %1022, %v946
      %v1024 = vpop.permute.xlu0 %1023
      %1027 = vset.pattern.permute.xlu0 0
      %1028 = vperm.xlu0 %1027, %v948
      %v1029 = vpop.permute.xlu0 %1028
      %1032 = vset.pattern.permute.xlu0 0
      %1033 = vperm.xlu0 %1032, %v950
      %v1034 = vpop.permute.xlu0 %1033
      %1037 = vset.pattern.permute.xlu0 0
      %1038 = vperm.xlu0 %1037, %v952
      %v1039 = vpop.permute.xlu0 %1038
      %1042 = vset.pattern.permute.xlu0 0
      %1043 = vperm.xlu0 %1042, %v954
      %v1044 = vpop.permute.xlu0 %1043
      %1047 = vset.pattern.permute.xlu0 0
      %1048 = vperm.xlu0 %1047, %v956
      %v1049 = vpop.permute.xlu0 %1048
      %1052 = vset.pattern.permute.xlu0 0
      %1053 = vperm.xlu0 %1052, %v958
      %v1054 = vpop.permute.xlu0 %1053
      %1057 = vset.pattern.permute.xlu0 0
      %1058 = vperm.xlu0 %1057, %v960
      %v1059 = vpop.permute.xlu0 %1058
      %1062 = vset.pattern.permute.xlu0 0
      %1063 = vperm.xlu0 %1062, %v962
      %v1064 = vpop.permute.xlu0 %1063
      %1067 = vset.pattern.permute.xlu0 0
      %1068 = vperm.xlu0 %1067, %v964
      %v1069 = vpop.permute.xlu0 %1068
      %1072 = vset.pattern.permute.xlu0 0
      %1073 = vperm.xlu0 %1072, %v966
      %v1074 = vpop.permute.xlu0 %1073
      %1077 = vset.pattern.permute.xlu0 0
      %1078 = vperm.xlu0 %1077, %v968
      %v1079 = vpop.permute.xlu0 %1078
      %1082 = vset.pattern.permute.xlu0 0
      %1083 = vperm.xlu0 %1082, %v970
      %v1084 = vpop.permute.xlu0 %1083
      %1087 = vset.pattern.permute.xlu0 0
      %1088 = vperm.xlu0 %1087, %v972
      %v1089 = vpop.permute.xlu0 %1088
      %1092 = vset.pattern.permute.xlu0 0
      %1093 = vperm.xlu0 %1092, %v974
      %v1094 = vpop.permute.xlu0 %1093
      %1097 = vset.pattern.permute.xlu0 0
      %1098 = vperm.xlu0 %1097, %v976
      %v1099 = vpop.permute.xlu0 %1098
      %1102 = vset.pattern.permute.xlu0 0
      %1103 = vperm.xlu0 %1102, %v978
      %v1104 = vpop.permute.xlu0 %1103
      %1107 = vset.pattern.permute.xlu0 0
      %1108 = vperm.xlu0 %1107, %v980
      %v1109 = vpop.permute.xlu0 %1108
      %1112 = vset.pattern.permute.xlu0 0
      %1113 = vperm.xlu0 %1112, %v982
      %v1114 = vpop.permute.xlu0 %1113
      %1117 = vset.pattern.permute.xlu0 0
      %1118 = vperm.xlu0 %1117, %v984
      %v1119 = vpop.permute.xlu0 %1118
      %1122 = vset.pattern.permute.xlu0 0
      %1123 = vperm.xlu0 %1122, %v986
      %v1124 = vpop.permute.xlu0 %1123
      %1127 = vset.pattern.permute.xlu0 0
      %1128 = vperm.xlu0 %1127, %v988
      %v1129 = vpop.permute.xlu0 %1128
      %1132 = vset.pattern.permute.xlu0 0
      %1133 = vperm.xlu0 %1132, %v990
      %v1134 = vpop.permute.xlu0 %1133
      %1137 = vset.pattern.permute.xlu0 0
      %1138 = vperm.xlu0 %1137, %v992
      %v1139 = vpop.permute.xlu0 %1138
      %1142 = vset.pattern.permute.xlu0 0
      %1143 = vperm.xlu0 %1142, %v994
      %v1144 = vpop.permute.xlu0 %1143
      %1147 = vset.pattern.permute.xlu0 0
      %1148 = vperm.xlu0 %1147, %v996
      %v1149 = vpop.permute.xlu0 %1148
      %1152 = vset.pattern.permute.xlu0 0
      %1153 = vperm.xlu0 %1152, %v998
      %v1154 = vpop.permute.xlu0 %1153
      %1157 = vset.pattern.permute.xlu0 0
      %1158 = vperm.xlu0 %1157, %v1000
      %v1159 = vpop.permute.xlu0 %1158
      %v1161 = vmul.f32 %v477, %v1004
      %v1162 = vmul.f32 %v482, %v1009
      %v1163 = vmul.f32 %v487, %v1014
      %v1164 = vmul.f32 %v492, %v1019
      %v1165 = vmul.f32 %v497, %v1024
      %v1166 = vmul.f32 %v502, %v1029
      %v1167 = vmul.f32 %v507, %v1034
      %v1168 = vmul.f32 %v512, %v1039
      %v1169 = vmul.f32 %v517, %v1044
      %v1170 = vmul.f32 %v522, %v1049
      %v1171 = vmul.f32 %v527, %v1054
      %v1172 = vmul.f32 %v532, %v1059
      %v1173 = vmul.f32 %v537, %v1064
      %v1174 = vmul.f32 %v542, %v1069
      %v1175 = vmul.f32 %v547, %v1074
      %v1176 = vmul.f32 %v552, %v1079
      %v1177 = vmul.f32 %v557, %v1084
      %v1178 = vmul.f32 %v562, %v1089
      %v1179 = vmul.f32 %v567, %v1094
      %v1180 = vmul.f32 %v572, %v1099
      %v1181 = vmul.f32 %v577, %v1104
      %v1182 = vmul.f32 %v582, %v1109
      %v1183 = vmul.f32 %v587, %v1114
      %v1184 = vmul.f32 %v592, %v1119
      %v1185 = vmul.f32 %v597, %v1124
      %v1186 = vmul.f32 %v602, %v1129
      %v1187 = vmul.f32 %v607, %v1134
      %v1188 = vmul.f32 %v612, %v1139
      %v1189 = vmul.f32 %v617, %v1144
      %v1190 = vmul.f32 %v622, %v1149
      %v1191 = vmul.f32 %v627, %v1154
      %v1192 = vmul.f32 %v632, %v1159
      %vm1193 = vcmask 31744
      %1194 = vst.msk [vmem:[%s240] sm:$0xff] %vm1193, %v1161
      %1195 = vst.msk [vmem:[%s240 + $0x8] sm:$0xff] %vm1193, %v1162
      %1196 = vst.msk [vmem:[%s240 + $0x10] sm:$0xff] %vm1193, %v1163
      %1197 = vst.msk [vmem:[%s240 + $0x18] sm:$0xff] %vm1193, %v1164
      %1198 = vst.msk [vmem:[%s240 + $0x20] sm:$0xff] %vm1193, %v1165
      %1199 = vst.msk [vmem:[%s240 + $0x28] sm:$0xff] %vm1193, %v1166
      %1200 = vst.msk [vmem:[%s240 + $0x30] sm:$0xff] %vm1193, %v1167
      %1201 = vst.msk [vmem:[%s240 + $0x38] sm:$0xff] %vm1193, %v1168
      %1202 = vst.msk [vmem:[%s240 + $0x40] sm:$0xff] %vm1193, %v1169
      %1203 = vst.msk [vmem:[%s240 + $0x48] sm:$0xff] %vm1193, %v1170
      %1204 = vst.msk [vmem:[%s240 + $0x50] sm:$0xff] %vm1193, %v1171
      %1205 = vst.msk [vmem:[%s240 + $0x58] sm:$0xff] %vm1193, %v1172
      %1206 = vst.msk [vmem:[%s240 + $0x60] sm:$0xff] %vm1193, %v1173
      %1207 = vst.msk [vmem:[%s240 + $0x68] sm:$0xff] %vm1193, %v1174
      %1208 = vst.msk [vmem:[%s240 + $0x70] sm:$0xff] %vm1193, %v1175
      %1209 = vst.msk [vmem:[%s240 + $0x78] sm:$0xff] %vm1193, %v1176
      %1210 = vst.msk [vmem:[%s240 + $0x80] sm:$0xff] %vm1193, %v1177
      %1211 = vst.msk [vmem:[%s240 + $0x88] sm:$0xff] %vm1193, %v1178
      %1212 = vst.msk [vmem:[%s240 + $0x90] sm:$0xff] %vm1193, %v1179
      %1213 = vst.msk [vmem:[%s240 + $0x98] sm:$0xff] %vm1193, %v1180
      %1214 = vst.msk [vmem:[%s240 + $0xa0] sm:$0xff] %vm1193, %v1181
      %1215 = vst.msk [vmem:[%s240 + $0xa8] sm:$0xff] %vm1193, %v1182
      %1216 = vst.msk [vmem:[%s240 + $0xb0] sm:$0xff] %vm1193, %v1183
      %1217 = vst.msk [vmem:[%s240 + $0xb8] sm:$0xff] %vm1193, %v1184
      %1218 = vst.msk [vmem:[%s240 + $0xc0] sm:$0xff] %vm1193, %v1185
      %1219 = vst.msk [vmem:[%s240 + $0xc8] sm:$0xff] %vm1193, %v1186
      %1220 = vst.msk [vmem:[%s240 + $0xd0] sm:$0xff] %vm1193, %v1187
      %1221 = vst.msk [vmem:[%s240 + $0xd8] sm:$0xff] %vm1193, %v1188
      %1222 = vst.msk [vmem:[%s240 + $0xe0] sm:$0xff] %vm1193, %v1189
      %1223 = vst.msk [vmem:[%s240 + $0xe8] sm:$0xff] %vm1193, %v1190
      %1224 = vst.msk [vmem:[%s240 + $0xf0] sm:$0xff] %vm1193, %v1191
      %1225 = vst.msk [vmem:[%s240 + $0xf8] sm:$0xff] %vm1193, %v1192
      %p1226 = scmp.lt.s32.totalorder %s18, 1
      %s1227 = scalar_select %p1226, %s18, 1
      %s1228 = smul.addr %s1227, 32
      %s1229 = smul.addr %s1228, 8
      %s1230 = scalar_lea.vmem %s5, %s1229
      // Predicated region
      $region41: #{csfm_forward.7} parent=39 // pred_check
        %p1231 = pneg %p151
      $region42: #{csfm_forward.7} parent=39 // pred_check_branch
        %1233 = sbr.rel (%p1231) target = $region44
      $region43: #{csfm_forward.7} parent=39 // pred_region
        _
      $region44: #{csfm_forward.7} parent=39 // pred_fallthru
        _
    $region40: #{csfm_forward.7} parent=5 // pred_fallthru
      _
    %p1234 = scmp.le.s32.totalorder 2, %s13
    // Predicated region
    $region45: #{csfm_forward.7} parent=5 // pred_check
      %p1235 = pneg %p1234
    $region46: #{csfm_forward.7} parent=5 // pred_check_branch
      %1237 = sbr.rel (%p1235) target = $region48
    $region47: #{csfm_forward.7} parent=5 // pred_region
      %s1238 = ssub.s32 %s13, 2
      // Predicated region
      $region49: #{csfm_forward.7} parent=47 // pred_check
        %p1239 = pneg %p157
      $region50: #{csfm_forward.7} parent=47 // pred_check_branch
        %1241 = sbr.rel (%p1239) target = $region52
      $region51: #{csfm_forward.7} parent=47 // pred_region
        %p1242 = scmp.lt.s32.totalorder %s19, 1
        %s1243 = scalar_select %p1242, %s19, 1
        %s1244 = smul.addr %s1243, 32
        %s1245 = smul.addr %s1244, 8
        %s1246 = scalar_lea.vmem %s5, %s1245
      $region52: #{csfm_forward.7} parent=47 // pred_fallthru
        _
    $region48: #{csfm_forward.7} parent=5 // pred_fallthru
      _
  $region6: #{csfm_forward.7} parent=0 // loop_footer
    %s17 = sadd.s32 1, %s13
  $region7: #{csfm_forward.7} parent=0 // loop_footer_branch
    %12 = sbr.rel target = $region3
  $region8: #{csfm_forward.7} parent=0 // loop_exit
    _

</llo_original>
